<compile_context>
chip_gen: v7x
topology: tpu7x:2x2x1
jax: 0.10.0
libtpu: 0.0.40
codegen_flags: <defaults>
</compile_context>

<pallas_src>
import functools
import math

import jax
import jax.numpy as jnp
from jax import lax
from jax.experimental import pallas as pl
from jax.experimental.pallas import tpu as pltpu


def _round_up(x, m):
    return (x + m - 1) // m * m


def _pick_batch_tile(n, max_tile=8):
    """Largest divisor of n that still leaves >= 2 grid steps (v7x dual-TC)."""
    if n <= 1:
        return 1
    target = min(max_tile, n // 2)
    best = 1
    for t in range(1, target + 1):
        if n % t == 0:
            best = t
    return best


# ------------------------------ fused kernel ------------------------------- #

def _fused_forward_kernel(x_ref, w1_ref, wd_ref, w2_ref, w3_ref, w4_ref,
                          scale_ref, bias_ref, wl_ref, bl_ref,
                          feat_ref, logits_ref,
                          padA, padB,
                          *, H, W, Wpad, P, n_class, B_TILE):
    """B_TILE batch images per grid step.

    x_ref   : (B_TILE, PADBUF, Cin) bf16  zero-padded input, flattened row-major
              with row stride Wpad (>= W+2, multiple of 8) + 2 overshoot rows.
    w1..w4  : (9*Cin, Cout) bf16 im2col conv weights (tap order dh*3+dw);
              wd: (Cin, Cmid) 1x1 downsample.
    scale/bias: (1, Cmid) f32 shared inference-mode BN affine.
    wl_ref  : (P*P*Cmid, n_class) bf16 linear weight in pooled (p, c) order.
    bl_ref  : (1, n_class) f32 linear bias.
    feat_ref: (B_TILE, L, Cmid) f32 feature map (garbage cols sliced in wrapper).
    logits_ref: (B_TILE, 1, n_class) f32.
    padA/B  : (B_TILE, PADBUF, Cmid) bf16 padded scratch (padA holds t1 then t3).
    """
    L = H * Wpad                      # flattened conv-output length per image
    BTL = B_TILE * L
    base = Wpad + 1                   # flat index of padded pixel (1, 1)
    PADBUF = (H + 2) * Wpad + 2
    Cmid = padA.shape[-1]

    scale = scale_ref[...]            # (1, Cmid)
    bias = bias_ref[...]

    # Validity mask for the (Wpad - W) garbage columns of each flattened output
    # row; single full-size iota -> no broadcast materialized per use-site.
    row = lax.broadcasted_iota(jnp.int32, (BTL, Cmid), 0)
    valid = (row % Wpad) < W          # (BTL, Cmid) bool

    tap_offsets = [dh * Wpad + dw for dh in range(3) for dw in range(3)]

    def conv3x3(src_ref, w_ref):
        """im2col 3x3 conv: ONE (BTL, 9*Cin) @ (9*Cin, Cout) MXU matmul."""
        rows = []
        for b in range(B_TILE):
            taps = [src_ref[b, off:off + L, :] for off in tap_offsets]
            rows.append(jnp.concatenate(taps, axis=1))        # (L, 9*Cin) bf16
        patch = rows[0] if B_TILE == 1 else jnp.concatenate(rows, axis=0)
        return jnp.dot(patch, w_ref[...], preferred_element_type=jnp.float32)

    def bn(v):
        return v * scale + bias

    def zero_halo(pad_ref):
        # Only pad/overshoot rows; interior rows are fully overwritten each step.
        for b in range(B_TILE):
            pad_ref[b, 0:base, :] = jnp.zeros((base, Cmid), pad_ref.dtype)
            pad_ref[b, base + L:, :] = jnp.zeros((PADBUF - base - L, Cmid),
                                                 pad_ref.dtype)

    def write_interior(pad_ref, vals_f32):
        v = jnp.where(valid, vals_f32, 0.0).astype(pad_ref.dtype)   # one bf16 pack
        for b in range(B_TILE):
            pad_ref[b, base:base + L, :] = v[b * L:(b + 1) * L, :]

    zero_halo(padA)
    zero_halo(padB)

    # ------------------------------ resblock1 ------------------------------ #
    t1 = jnp.maximum(bn(conv3x3(x_ref, w1_ref)), 0.0)               # (BTL, Cmid)
    write_interior(padA, t1)

    t2 = bn(conv3x3(padA, w2_ref))
    xi = [x_ref[b, base:base + L, :] for b in range(B_TILE)]
    x_int = xi[0] if B_TILE == 1 else jnp.concatenate(xi, axis=0)   # (BTL, Cin)
    res1 = bn(jnp.dot(x_int, wd_ref[...], preferred_element_type=jnp.float32))
    out1 = jnp.maximum(t2 + res1, 0.0)
    write_interior(padB, out1)

    # ------------------------------ resblock2 ------------------------------ #
    t3 = jnp.maximum(bn(conv3x3(padB, w3_ref)), 0.0)
    write_interior(padA, t3)                                        # reuse padA

    t4 = bn(conv3x3(padA, w4_ref))
    feature = jnp.maximum(t4 + out1, 0.0)                           # identity residual

    for b in range(B_TILE):
        feat_ref[b] = feature[b * L:(b + 1) * L, :].astype(feat_ref.dtype)

    # -------- AdaptiveMaxPool2d((P, P)) + Linear: one K = P*P*Cmid matmul --- #
    pooled_rows = []
    for b in range(B_TILE):
        fb = feature[b * L:(b + 1) * L, :]
        bins = []
        for i in range(P):
            h0 = (i * H) // P
            h1 = -(-((i + 1) * H) // P)
            for j in range(P):
                w0 = (j * W) // P
                w1 = -(-((j + 1) * W) // P)
                blk = None
                for r in range(h0, h1):
                    seg = fb[r * Wpad + w0:r * Wpad + w1, :]        # (bin_w, Cmid)
                    blk = seg if blk is None else jnp.maximum(blk, seg)
                bins.append(jnp.max(blk, axis=0, keepdims=True))    # (1, Cmid)
        pooled_rows.append(jnp.concatenate(bins, axis=1))           # (1, P*P*Cmid)
    pooled = pooled_rows[0] if B_TILE == 1 else jnp.concatenate(pooled_rows, axis=0)
    logits = jnp.dot(pooled.astype(jnp.bfloat16), wl_ref[...],
                     preferred_element_type=jnp.float32) + bl_ref[...]
    logits_ref[...] = logits.reshape(B_TILE, 1, n_class).astype(logits_ref.dtype)


# -------------------------------- wrapper ----------------------------------- #

def texture_scene_forward(params, x_nhwc, P=3, batch_tile=None):
    """Returns (feature [NHWC], logits)."""
    N, H, W, Cin = x_nhwc.shape
    Cmid = params["rb1_conv1"].shape[-1]
    n_class = params["lin_b"].shape[0]

    Wpad = _round_up(W + 2, 8)            # row stride: sublane-aligned dh shifts
    L = H * Wpad
    PADBUF = (H + 2) * Wpad + 2           # padded image rows + 2 tap-overshoot rows

    B_TILE = batch_tile if batch_tile is not None else _pick_batch_tile(N)
    assert N % B_TILE == 0

    # Zero-pad to (H+2, Wpad), flatten row-major, add 2 trailing overshoot rows.
    x_pad = jnp.pad(x_nhwc, ((0, 0), (1, 1), (1, Wpad - W - 1), (0, 0)))
    x_flat = jnp.pad(x_pad.reshape(N, (H + 2) * Wpad, Cin), ((0, 0), (0, 2), (0, 0)))
    x_flat = x_flat.astype(jnp.bfloat16)

    bf = lambda a: a.astype(jnp.bfloat16)
    # im2col conv weights: (9, Cin, Cout) -> (9*Cin, Cout), tap order dh*3+dw.
    w1 = bf(params["rb1_conv1"].reshape(-1, Cmid))
    w2 = bf(params["rb1_conv2"].reshape(-1, Cmid))
    w3 = bf(params["rb2_conv1"].reshape(-1, Cmid))
    w4 = bf(params["rb2_conv2"].reshape(-1, Cmid))
    wd = bf(params["rb1_down"])
    # Linear weight: NCHW-flatten order (c*P*P + p) -> pooled order (p*Cmid + c).
    wl = bf(params["lin_w"].reshape(Cmid, P * P, n_class)
            .transpose(1, 0, 2).reshape(P * P * Cmid, n_class))
    bl = params["lin_b"].reshape(1, n_class)

    kern = functools.partial(_fused_forward_kernel, H=H, W=W, Wpad=Wpad,
                             P=P, n_class=n_class, B_TILE=B_TILE)

    flops = N * (2 * L * (9 * Cin) * Cmid            # rb1 conv1
                 + 3 * 2 * L * (9 * Cmid) * Cmid     # rb1 conv2, rb2 conv1/2
                 + 2 * L * Cin * Cmid                # 1x1 downsample
                 + 2 * (P * P * Cmid) * n_class)     # linear
    bytes_accessed = (x_flat.size * 2
                      + (w1.size + w2.size + w3.size + w4.size + wd.size + wl.size) * 2
                      + N * L * Cmid * 4 + N * n_class * 4)

    feat_flat, logits3 = pl.pallas_call(
        kern,
        grid=(N // B_TILE,),
        in_specs=[
            pl.BlockSpec((B_TILE, PADBUF, Cin), lambda n: (n, 0, 0)),   # x (padded flat)
            pl.BlockSpec((9 * Cin, Cmid), lambda n: (0, 0)),            # rb1 conv1
            pl.BlockSpec((Cin, Cmid), lambda n: (0, 0)),                # rb1 downsample
            pl.BlockSpec((9 * Cmid, Cmid), lambda n: (0, 0)),           # rb1 conv2
            pl.BlockSpec((9 * Cmid, Cmid), lambda n: (0, 0)),           # rb2 conv1
            pl.BlockSpec((9 * Cmid, Cmid), lambda n: (0, 0)),           # rb2 conv2
            pl.BlockSpec((1, Cmid), lambda n: (0, 0)),                  # bn scale
            pl.BlockSpec((1, Cmid), lambda n: (0, 0)),                  # bn bias
            pl.BlockSpec((P * P * Cmid, n_class), lambda n: (0, 0)),    # linear weight
            pl.BlockSpec((1, n_class), lambda n: (0, 0)),               # linear bias
        ],
        out_specs=(
            pl.BlockSpec((B_TILE, L, Cmid), lambda n: (n, 0, 0)),
            pl.BlockSpec((B_TILE, 1, n_class), lambda n: (n, 0, 0)),
        ),
        out_shape=(
            jax.ShapeDtypeStruct((N, L, Cmid), jnp.float32),
            jax.ShapeDtypeStruct((N, 1, n_class), jnp.float32),
        ),
        scratch_shapes=[
            pltpu.VMEM((B_TILE, PADBUF, Cmid), jnp.bfloat16),           # t1 / t3
            pltpu.VMEM((B_TILE, PADBUF, Cmid), jnp.bfloat16),           # out1
        ],
        compiler_params=pltpu.CompilerParams(dimension_semantics=("parallel",)),
        cost_estimate=pl.CostEstimate(flops=flops, transcendentals=0,
                                      bytes_accessed=bytes_accessed),
    )(x_flat, w1, wd, w2, w3, w4, params["bn_scale"], params["bn_bias"], wl, bl)

    feature = feat_flat.reshape(N, H, Wpad, Cmid)[:, :, :W, :]
    logits = logits3.reshape(N, n_class)
    return feature, logits


# ------------------------------ init & reference ---------------------------- #

def init_params(key, cin, cmid, P, nclass):
    ks = jax.random.split(key, 6)

    def conv3x3_w(k, ci, co):          # PyTorch init: normal(0, sqrt(2/(3*3*co)))
        return jax.random.normal(k, (9, ci, co), jnp.float32) * math.sqrt(2.0 / (9 * co))

    def conv1x1_w(k, ci, co):          # normal(0, sqrt(2/(1*1*co)))
        return jax.random.normal(k, (ci, co), jnp.float32) * math.sqrt(2.0 / co)

    eps = 1e-5
    return dict(
        rb1_conv1=conv3x3_w(ks[0], cin, cmid),
        rb1_conv2=conv3x3_w(ks[1], cmid, cmid),
        rb1_down=conv1x1_w(ks[2], cin, cmid),
        rb2_conv1=conv3x3_w(ks[3], cmid, cmid),
        rb2_conv2=conv3x3_w(ks[4], cmid, cmid),
        bn_scale=jnp.full((1, cmid), 1.0 / math.sqrt(1.0 + eps), jnp.float32),
        bn_bias=jnp.zeros((1, cmid), jnp.float32),
        lin_w=jax.random.normal(ks[5], (cmid * P * P, nclass), jnp.float32) * 0.05,
        lin_b=jnp.zeros((nclass,), jnp.float32),
    )


def ref_forward(params, x_nhwc, P=3):
    """Pure-JAX reference (same bf16-input / f32-accumulate math as the kernel)."""
    s, b = params["bn_scale"][0], params["bn_bias"][0]
    bf = lambda a: a.astype(jnp.bfloat16)

    def conv3(x, w9):
        ci, co = w9.shape[1], w9.shape[2]
        w = w9.reshape(3, 3, ci, co)
        return lax.conv_general_dilated(
            bf(x), bf(w), (1, 1), "SAME",
            dimension_numbers=("NHWC", "HWIO", "NHWC"),
            preferred_element_type=jnp.float32)

    def bn(x):
        return x * s + b

    def block(x, w1, w2, wdown):
        t = jnp.maximum(bn(conv3(x, w1)), 0.0)
        t = bn(conv3(t, w2))
        if wdown is not None:
            res = bn(jnp.einsum("nhwc,co->nhwo", bf(x), bf(wdown),
                                preferred_element_type=jnp.float32))
        else:
            res = x
        return jnp.maximum(t + res, 0.0)

    o1 = block(x_nhwc, params["rb1_conv1"], params["rb1_conv2"], params["rb1_down"])
    feat = block(o1, params["rb2_conv1"], params["rb2_conv2"], None)
    N, H, W, C = feat.shape
    pooled = feat.reshape(N, P, H // P, P, W // P, C).max(axis=(2, 4))   # (N, P, P, C)
    flat = jnp.transpose(pooled, (0, 3, 1, 2)).reshape(N, C * P * P)     # NCHW flatten
    logits = jnp.dot(bf(flat), bf(params["lin_w"]),
                     preferred_element_type=jnp.float32) + params["lin_b"]
    return feat, logits


# ---------------------------------- main ------------------------------------ #

if __name__ == "__main__":
    N, Cin, Cmid, H, W, P, NCLASS = 2, 32, 16, 12, 12, 3, 3
    key = jax.random.PRNGKey(0)
    kx, kp = jax.random.split(key)

    x_nchw = jax.random.normal(kx, (N, Cin, H, W), jnp.float32)   # PyTorch-style input
    x_nhwc = jnp.transpose(x_nchw, (0, 2, 3, 1))

    params = init_params(kp, Cin, Cmid, P, NCLASS)

    fwd = jax.jit(functools.partial(texture_scene_forward, P=P))
    feature, logits = fwd(params, x_nhwc)
    jax.block_until_ready((feature, logits))

    feat_ref, logits_ref = ref_forward(params, x_nhwc, P)
    assert feature.shape == (N, H, W, Cmid) and logits.shape == (N, NCLASS)
    assert jnp.allclose(feature, feat_ref, atol=3e-2, rtol=3e-2), "feature mismatch vs reference"
    assert jnp.allclose(logits, logits_ref, atol=3e-2, rtol=3e-2), "logits mismatch vs reference"

    print("KERNEL_OK")
</pallas_src>

<mosaic_0001>
module attributes {stable_mosaic.version = 11 : i64} {
  func.func @_fused_forward_kernel(%arg0: i32, %arg1: memref<1x226x32xbf16, #tpu.memory_space<vmem>>, %arg2: memref<288x16xbf16, #tpu.memory_space<vmem>>, %arg3: memref<32x16xbf16, #tpu.memory_space<vmem>>, %arg4: memref<144x16xbf16, #tpu.memory_space<vmem>>, %arg5: memref<144x16xbf16, #tpu.memory_space<vmem>>, %arg6: memref<144x16xbf16, #tpu.memory_space<vmem>>, %arg7: memref<1x16xf32, #tpu.memory_space<vmem>>, %arg8: memref<1x16xf32, #tpu.memory_space<vmem>>, %arg9: memref<144x3xbf16, #tpu.memory_space<vmem>>, %arg10: memref<1x3xf32, #tpu.memory_space<vmem>>, %arg11: memref<1x192x16xf32, #tpu.memory_space<vmem>>, %arg12: memref<1x1x3xf32, #tpu.memory_space<vmem>>, %arg13: memref<1x226x16xbf16, #tpu.memory_space<vmem>>, %arg14: memref<1x226x16xbf16, #tpu.memory_space<vmem>>) attributes {dimension_semantics = [#tpu.dimension_semantics<parallel>], iteration_bounds = array<i64: 2>, scalar_prefetch = 0 : i64, scratch_operands = 2 : i64, tpu.core_type = #tpu.core_type<tc>, window_params = [{transform_indices = @transform_0, window_bounds = array<i64: 1, 226, 32>}, {pipeline_mode = #tpu.pipeline_mode<synchronous>, transform_indices = @transform_1, window_bounds = array<i64: 288, 16>}, {pipeline_mode = #tpu.pipeline_mode<synchronous>, transform_indices = @transform_2, window_bounds = array<i64: 32, 16>}, {pipeline_mode = #tpu.pipeline_mode<synchronous>, transform_indices = @transform_3, window_bounds = array<i64: 144, 16>}, {pipeline_mode = #tpu.pipeline_mode<synchronous>, transform_indices = @transform_4, window_bounds = array<i64: 144, 16>}, {pipeline_mode = #tpu.pipeline_mode<synchronous>, transform_indices = @transform_5, window_bounds = array<i64: 144, 16>}, {pipeline_mode = #tpu.pipeline_mode<synchronous>, transform_indices = @transform_6, window_bounds = array<i64: 1, 16>}, {pipeline_mode = #tpu.pipeline_mode<synchronous>, transform_indices = @transform_7, window_bounds = array<i64: 1, 16>}, {pipeline_mode = #tpu.pipeline_mode<synchronous>, transform_indices = @transform_8, window_bounds = array<i64: 144, 3>}, {pipeline_mode = #tpu.pipeline_mode<synchronous>, transform_indices = @transform_9, window_bounds = array<i64: 1, 3>}, {transform_indices = @transform_10, window_bounds = array<i64: 1, 192, 16>}, {transform_indices = @transform_11, window_bounds = array<i64: 1, 1, 3>}]} {
    %c0 = arith.constant 0 : index
    %c0_0 = arith.constant 0 : index
    %0 = vector.load %arg7[%c0, %c0_0] : memref<1x16xf32, #tpu.memory_space<vmem>>, vector<1x16xf32>
    %c0_1 = arith.constant 0 : index
    %c0_2 = arith.constant 0 : index
    %1 = vector.load %arg8[%c0_1, %c0_2] : memref<1x16xf32, #tpu.memory_space<vmem>>, vector<1x16xf32>
    %2 = tpu.iota {dimensions = array<i32: 0>} : vector<192x16xi32>
    %c16_i32 = arith.constant 16 : i32
    %c0_i32 = arith.constant 0 : i32
    %3 = arith.cmpi eq, %c16_i32, %c0_i32 : i32
    %c1_i32 = arith.constant 1 : i32
    %4 = arith.select %3, %c1_i32, %c16_i32 : i32
    %5 = vector.broadcast %4 : i32 to vector<192x16xi32>
    %6 = arith.remsi %2, %5 : vector<192x16xi32>
    %c0_i32_3 = arith.constant 0 : i32
    %7 = vector.broadcast %c0_i32_3 : i32 to vector<192x16xi32>
    %8 = arith.cmpi ne, %6, %7 : vector<192x16xi32>
    %c0_i32_4 = arith.constant 0 : i32
    %9 = vector.broadcast %c0_i32_4 : i32 to vector<192x16xi32>
    %10 = arith.cmpi slt, %6, %9 : vector<192x16xi32>
    %c0_i32_5 = arith.constant 0 : i32
    %11 = arith.cmpi slt, %4, %c0_i32_5 : i32
    %12 = vector.broadcast %11 : i1 to vector<192x16xi1>
    %13 = vector.broadcast %12 : vector<192x16xi1> to vector<192x16xi1>
    %14 = arith.xori %10, %13 : vector<192x16xi1>
    %15 = arith.andi %14, %8 : vector<192x16xi1>
    %16 = vector.broadcast %4 : i32 to vector<192x16xi32>
    %17 = arith.addi %6, %16 : vector<192x16xi32>
    %18 = arith.select %15, %17, %6 : vector<192x16xi1>, vector<192x16xi32>
    %c12_i32 = arith.constant 12 : i32
    %19 = vector.broadcast %c12_i32 : i32 to vector<192x16xi32>
    %20 = arith.cmpi slt, %18, %19 : vector<192x16xi32>
    %cst = arith.constant 0.000000e+00 : bf16
    %21 = vector.broadcast %cst : bf16 to vector<17x16xbf16>
    %c0_6 = arith.constant 0 : index
    %c0_7 = arith.constant 0 : index
    %c0_8 = arith.constant 0 : index
    %22 = vector.load %arg13[%c0_6, %c0_7, %c0_8] : memref<1x226x16xbf16, #tpu.memory_space<vmem>>, vector<1x17x16xbf16>
    %23 = vector.shape_cast %22 : vector<1x17x16xbf16> to vector<17x16xbf16>
    %24 = vector.shape_cast %21 : vector<17x16xbf16> to vector<1x17x16xbf16>
    tpu.vector_store %arg13[%c0_6, %c0_7, %c0_8], %24 {strides = array<i32>} : memref<1x226x16xbf16, #tpu.memory_space<vmem>>, vector<1x17x16xbf16>,
    %cst_9 = arith.constant 0.000000e+00 : bf16
    %25 = vector.broadcast %cst_9 : bf16 to vector<17x16xbf16>
    %c0_10 = arith.constant 0 : index
    %c209 = arith.constant 209 : index
    %c0_11 = arith.constant 0 : index
    %26 = vector.load %arg13[%c0_10, %c209, %c0_11] : memref<1x226x16xbf16, #tpu.memory_space<vmem>>, vector<1x17x16xbf16>
    %27 = vector.shape_cast %26 : vector<1x17x16xbf16> to vector<17x16xbf16>
    %28 = vector.shape_cast %25 : vector<17x16xbf16> to vector<1x17x16xbf16>
    tpu.vector_store %arg13[%c0_10, %c209, %c0_11], %28 {strides = array<i32>} : memref<1x226x16xbf16, #tpu.memory_space<vmem>>, vector<1x17x16xbf16>,
    %cst_12 = arith.constant 0.000000e+00 : bf16
    %29 = vector.broadcast %cst_12 : bf16 to vector<17x16xbf16>
    %c0_13 = arith.constant 0 : index
    %c0_14 = arith.constant 0 : index
    %c0_15 = arith.constant 0 : index
    %30 = vector.load %arg14[%c0_13, %c0_14, %c0_15] : memref<1x226x16xbf16, #tpu.memory_space<vmem>>, vector<1x17x16xbf16>
    %31 = vector.shape_cast %30 : vector<1x17x16xbf16> to vector<17x16xbf16>
    %32 = vector.shape_cast %29 : vector<17x16xbf16> to vector<1x17x16xbf16>
    tpu.vector_store %arg14[%c0_13, %c0_14, %c0_15], %32 {strides = array<i32>} : memref<1x226x16xbf16, #tpu.memory_space<vmem>>, vector<1x17x16xbf16>,
    %cst_16 = arith.constant 0.000000e+00 : bf16
    %33 = vector.broadcast %cst_16 : bf16 to vector<17x16xbf16>
    %c0_17 = arith.constant 0 : index
    %c209_18 = arith.constant 209 : index
    %c0_19 = arith.constant 0 : index
    %34 = vector.load %arg14[%c0_17, %c209_18, %c0_19] : memref<1x226x16xbf16, #tpu.memory_space<vmem>>, vector<1x17x16xbf16>
    %35 = vector.shape_cast %34 : vector<1x17x16xbf16> to vector<17x16xbf16>
    %36 = vector.shape_cast %33 : vector<17x16xbf16> to vector<1x17x16xbf16>
    tpu.vector_store %arg14[%c0_17, %c209_18, %c0_19], %36 {strides = array<i32>} : memref<1x226x16xbf16, #tpu.memory_space<vmem>>, vector<1x17x16xbf16>,
    %c0_20 = arith.constant 0 : index
    %c0_21 = arith.constant 0 : index
    %c0_22 = arith.constant 0 : index
    %37 = vector.load %arg1[%c0_20, %c0_21, %c0_22] : memref<1x226x32xbf16, #tpu.memory_space<vmem>>, vector<1x192x32xbf16>
    %38 = vector.shape_cast %37 : vector<1x192x32xbf16> to vector<192x32xbf16>
    %c0_23 = arith.constant 0 : index
    %c1 = arith.constant 1 : index
    %c0_24 = arith.constant 0 : index
    %39 = vector.load %arg1[%c0_23, %c1, %c0_24] : memref<1x226x32xbf16, #tpu.memory_space<vmem>>, vector<1x192x32xbf16>
    %40 = vector.shape_cast %39 : vector<1x192x32xbf16> to vector<192x32xbf16>
    %c0_25 = arith.constant 0 : index
    %c2 = arith.constant 2 : index
    %c0_26 = arith.constant 0 : index
    %41 = vector.load %arg1[%c0_25, %c2, %c0_26] : memref<1x226x32xbf16, #tpu.memory_space<vmem>>, vector<1x192x32xbf16>
    %42 = vector.shape_cast %41 : vector<1x192x32xbf16> to vector<192x32xbf16>
    %c0_27 = arith.constant 0 : index
    %c16 = arith.constant 16 : index
    %c0_28 = arith.constant 0 : index
    %43 = vector.load %arg1[%c0_27, %c16, %c0_28] : memref<1x226x32xbf16, #tpu.memory_space<vmem>>, vector<1x192x32xbf16>
    %44 = vector.shape_cast %43 : vector<1x192x32xbf16> to vector<192x32xbf16>
    %c0_29 = arith.constant 0 : index
    %c17 = arith.constant 17 : index
    %c0_30 = arith.constant 0 : index
    %45 = vector.load %arg1[%c0_29, %c17, %c0_30] : memref<1x226x32xbf16, #tpu.memory_space<vmem>>, vector<1x192x32xbf16>
    %46 = vector.shape_cast %45 : vector<1x192x32xbf16> to vector<192x32xbf16>
    %c0_31 = arith.constant 0 : index
    %c18 = arith.constant 18 : index
    %c0_32 = arith.constant 0 : index
    %47 = vector.load %arg1[%c0_31, %c18, %c0_32] : memref<1x226x32xbf16, #tpu.memory_space<vmem>>, vector<1x192x32xbf16>
    %48 = vector.shape_cast %47 : vector<1x192x32xbf16> to vector<192x32xbf16>
    %c0_33 = arith.constant 0 : index
    %c32 = arith.constant 32 : index
    %c0_34 = arith.constant 0 : index
    %49 = vector.load %arg1[%c0_33, %c32, %c0_34] : memref<1x226x32xbf16, #tpu.memory_space<vmem>>, vector<1x192x32xbf16>
    %50 = vector.shape_cast %49 : vector<1x192x32xbf16> to vector<192x32xbf16>
    %c0_35 = arith.constant 0 : index
    %c33 = arith.constant 33 : index
    %c0_36 = arith.constant 0 : index
    %51 = vector.load %arg1[%c0_35, %c33, %c0_36] : memref<1x226x32xbf16, #tpu.memory_space<vmem>>, vector<1x192x32xbf16>
    %52 = vector.shape_cast %51 : vector<1x192x32xbf16> to vector<192x32xbf16>
    %c0_37 = arith.constant 0 : index
    %c34 = arith.constant 34 : index
    %c0_38 = arith.constant 0 : index
    %53 = vector.load %arg1[%c0_37, %c34, %c0_38] : memref<1x226x32xbf16, #tpu.memory_space<vmem>>, vector<1x192x32xbf16>
    %54 = vector.shape_cast %53 : vector<1x192x32xbf16> to vector<192x32xbf16>
    %55 = tpu.concatenate %38, %40, %42, %44, %46, %48, %50, %52, %54 in 1 : vector<192x32xbf16>, vector<192x32xbf16>, vector<192x32xbf16>, vector<192x32xbf16>, vector<192x32xbf16>, vector<192x32xbf16>, vector<192x32xbf16>, vector<192x32xbf16>, vector<192x32xbf16> -> vector<192x288xbf16>
    %c0_39 = arith.constant 0 : index
    %c0_40 = arith.constant 0 : index
    %56 = vector.load %arg2[%c0_39, %c0_40] : memref<288x16xbf16, #tpu.memory_space<vmem>>, vector<288x16xbf16>
    %cst_41 = arith.constant dense<0.000000e+00> : vector<192x16xf32>
    %57 = tpu.matmul %55, %56, %cst_41 {dimension_numbers = #tpu.dot_dimension_numbers<[1], [0], [0], [1], [0, 0, 1, 1], [], []>} : vector<192x288xbf16>, vector<288x16xbf16>, vector<192x16xf32> -> vector<192x16xf32>
    %58 = vector.broadcast %0 : vector<1x16xf32> to vector<192x16xf32>
    %59 = arith.mulf %57, %58 : vector<192x16xf32>
    %60 = vector.broadcast %1 : vector<1x16xf32> to vector<192x16xf32>
    %61 = arith.addf %59, %60 : vector<192x16xf32>
    %cst_42 = arith.constant 0.000000e+00 : f32
    %62 = vector.broadcast %cst_42 : f32 to vector<192x16xf32>
    %63 = arith.maximumf %61, %62 : vector<192x16xf32>
    %cst_43 = arith.constant 0.000000e+00 : f32
    %64 = vector.broadcast %cst_43 : f32 to vector<192x16xf32>
    %65 = arith.select %20, %63, %64 : vector<192x16xi1>, vector<192x16xf32>
    %66 = arith.truncf %65 : vector<192x16xf32> to vector<192x16xbf16>
    %c0_44 = arith.constant 0 : index
    %c17_45 = arith.constant 17 : index
    %c0_46 = arith.constant 0 : index
    %67 = vector.load %arg13[%c0_44, %c17_45, %c0_46] : memref<1x226x16xbf16, #tpu.memory_space<vmem>>, vector<1x192x16xbf16>
    %68 = vector.shape_cast %67 : vector<1x192x16xbf16> to vector<192x16xbf16>
    %69 = vector.shape_cast %66 : vector<192x16xbf16> to vector<1x192x16xbf16>
    tpu.vector_store %arg13[%c0_44, %c17_45, %c0_46], %69 {strides = array<i32>} : memref<1x226x16xbf16, #tpu.memory_space<vmem>>, vector<1x192x16xbf16>,
    %c0_47 = arith.constant 0 : index
    %c0_48 = arith.constant 0 : index
    %c0_49 = arith.constant 0 : index
    %70 = vector.load %arg13[%c0_47, %c0_48, %c0_49] : memref<1x226x16xbf16, #tpu.memory_space<vmem>>, vector<1x192x16xbf16>
    %71 = vector.shape_cast %70 : vector<1x192x16xbf16> to vector<192x16xbf16>
    %c0_50 = arith.constant 0 : index
    %c1_51 = arith.constant 1 : index
    %c0_52 = arith.constant 0 : index
    %72 = vector.load %arg13[%c0_50, %c1_51, %c0_52] : memref<1x226x16xbf16, #tpu.memory_space<vmem>>, vector<1x192x16xbf16>
    %73 = vector.shape_cast %72 : vector<1x192x16xbf16> to vector<192x16xbf16>
    %c0_53 = arith.constant 0 : index
    %c2_54 = arith.constant 2 : index
    %c0_55 = arith.constant 0 : index
    %74 = vector.load %arg13[%c0_53, %c2_54, %c0_55] : memref<1x226x16xbf16, #tpu.memory_space<vmem>>, vector<1x192x16xbf16>
    %75 = vector.shape_cast %74 : vector<1x192x16xbf16> to vector<192x16xbf16>
    %c0_56 = arith.constant 0 : index
    %c16_57 = arith.constant 16 : index
    %c0_58 = arith.constant 0 : index
    %76 = vector.load %arg13[%c0_56, %c16_57, %c0_58] : memref<1x226x16xbf16, #tpu.memory_space<vmem>>, vector<1x192x16xbf16>
    %77 = vector.shape_cast %76 : vector<1x192x16xbf16> to vector<192x16xbf16>
    %c0_59 = arith.constant 0 : index
    %c17_60 = arith.constant 17 : index
    %c0_61 = arith.constant 0 : index
    %78 = vector.load %arg13[%c0_59, %c17_60, %c0_61] : memref<1x226x16xbf16, #tpu.memory_space<vmem>>, vector<1x192x16xbf16>
    %79 = vector.shape_cast %78 : vector<1x192x16xbf16> to vector<192x16xbf16>
    %c0_62 = arith.constant 0 : index
    %c18_63 = arith.constant 18 : index
    %c0_64 = arith.constant 0 : index
    %80 = vector.load %arg13[%c0_62, %c18_63, %c0_64] : memref<1x226x16xbf16, #tpu.memory_space<vmem>>, vector<1x192x16xbf16>
    %81 = vector.shape_cast %80 : vector<1x192x16xbf16> to vector<192x16xbf16>
    %c0_65 = arith.constant 0 : index
    %c32_66 = arith.constant 32 : index
    %c0_67 = arith.constant 0 : index
    %82 = vector.load %arg13[%c0_65, %c32_66, %c0_67] : memref<1x226x16xbf16, #tpu.memory_space<vmem>>, vector<1x192x16xbf16>
    %83 = vector.shape_cast %82 : vector<1x192x16xbf16> to vector<192x16xbf16>
    %c0_68 = arith.constant 0 : index
    %c33_69 = arith.constant 33 : index
    %c0_70 = arith.constant 0 : index
    %84 = vector.load %arg13[%c0_68, %c33_69, %c0_70] : memref<1x226x16xbf16, #tpu.memory_space<vmem>>, vector<1x192x16xbf16>
    %85 = vector.shape_cast %84 : vector<1x192x16xbf16> to vector<192x16xbf16>
    %c0_71 = arith.constant 0 : index
    %c34_72 = arith.constant 34 : index
    %c0_73 = arith.constant 0 : index
    %86 = vector.load %arg13[%c0_71, %c34_72, %c0_73] : memref<1x226x16xbf16, #tpu.memory_space<vmem>>, vector<1x192x16xbf16>
    %87 = vector.shape_cast %86 : vector<1x192x16xbf16> to vector<192x16xbf16>
    %88 = tpu.concatenate %71, %73, %75, %77, %79, %81, %83, %85, %87 in 1 : vector<192x16xbf16>, vector<192x16xbf16>, vector<192x16xbf16>, vector<192x16xbf16>, vector<192x16xbf16>, vector<192x16xbf16>, vector<192x16xbf16>, vector<192x16xbf16>, vector<192x16xbf16> -> vector<192x144xbf16>
    %c0_74 = arith.constant 0 : index
    %c0_75 = arith.constant 0 : index
    %89 = vector.load %arg4[%c0_74, %c0_75] : memref<144x16xbf16, #tpu.memory_space<vmem>>, vector<144x16xbf16>
    %cst_76 = arith.constant dense<0.000000e+00> : vector<192x16xf32>
    %90 = tpu.matmul %88, %89, %cst_76 {dimension_numbers = #tpu.dot_dimension_numbers<[1], [0], [0], [1], [0, 0, 1, 1], [], []>} : vector<192x144xbf16>, vector<144x16xbf16>, vector<192x16xf32> -> vector<192x16xf32>
    %91 = vector.broadcast %0 : vector<1x16xf32> to vector<192x16xf32>
    %92 = arith.mulf %90, %91 : vector<192x16xf32>
    %93 = vector.broadcast %1 : vector<1x16xf32> to vector<192x16xf32>
    %94 = arith.addf %92, %93 : vector<192x16xf32>
    %c0_77 = arith.constant 0 : index
    %c17_78 = arith.constant 17 : index
    %c0_79 = arith.constant 0 : index
    %95 = vector.load %arg1[%c0_77, %c17_78, %c0_79] : memref<1x226x32xbf16, #tpu.memory_space<vmem>>, vector<1x192x32xbf16>
    %96 = vector.shape_cast %95 : vector<1x192x32xbf16> to vector<192x32xbf16>
    %c0_80 = arith.constant 0 : index
    %c0_81 = arith.constant 0 : index
    %97 = vector.load %arg3[%c0_80, %c0_81] : memref<32x16xbf16, #tpu.memory_space<vmem>>, vector<32x16xbf16>
    %cst_82 = arith.constant dense<0.000000e+00> : vector<192x16xf32>
    %98 = tpu.matmul %96, %97, %cst_82 {dimension_numbers = #tpu.dot_dimension_numbers<[1], [0], [0], [1], [0, 0, 1, 1], [], []>} : vector<192x32xbf16>, vector<32x16xbf16>, vector<192x16xf32> -> vector<192x16xf32>
    %99 = vector.broadcast %0 : vector<1x16xf32> to vector<192x16xf32>
    %100 = arith.mulf %98, %99 : vector<192x16xf32>
    %101 = vector.broadcast %1 : vector<1x16xf32> to vector<192x16xf32>
    %102 = arith.addf %100, %101 : vector<192x16xf32>
    %103 = arith.addf %94, %102 : vector<192x16xf32>
    %cst_83 = arith.constant 0.000000e+00 : f32
    %104 = vector.broadcast %cst_83 : f32 to vector<192x16xf32>
    %105 = arith.maximumf %103, %104 : vector<192x16xf32>
    %cst_84 = arith.constant 0.000000e+00 : f32
    %106 = vector.broadcast %cst_84 : f32 to vector<192x16xf32>
    %107 = arith.select %20, %105, %106 : vector<192x16xi1>, vector<192x16xf32>
    %108 = arith.truncf %107 : vector<192x16xf32> to vector<192x16xbf16>
    %c0_85 = arith.constant 0 : index
    %c17_86 = arith.constant 17 : index
    %c0_87 = arith.constant 0 : index
    %109 = vector.load %arg14[%c0_85, %c17_86, %c0_87] : memref<1x226x16xbf16, #tpu.memory_space<vmem>>, vector<1x192x16xbf16>
    %110 = vector.shape_cast %109 : vector<1x192x16xbf16> to vector<192x16xbf16>
    %111 = vector.shape_cast %108 : vector<192x16xbf16> to vector<1x192x16xbf16>
    tpu.vector_store %arg14[%c0_85, %c17_86, %c0_87], %111 {strides = array<i32>} : memref<1x226x16xbf16, #tpu.memory_space<vmem>>, vector<1x192x16xbf16>,
    %c0_88 = arith.constant 0 : index
    %c0_89 = arith.constant 0 : index
    %c0_90 = arith.constant 0 : index
    %112 = vector.load %arg14[%c0_88, %c0_89, %c0_90] : memref<1x226x16xbf16, #tpu.memory_space<vmem>>, vector<1x192x16xbf16>
    %113 = vector.shape_cast %112 : vector<1x192x16xbf16> to vector<192x16xbf16>
    %c0_91 = arith.constant 0 : index
    %c1_92 = arith.constant 1 : index
    %c0_93 = arith.constant 0 : index
    %114 = vector.load %arg14[%c0_91, %c1_92, %c0_93] : memref<1x226x16xbf16, #tpu.memory_space<vmem>>, vector<1x192x16xbf16>
    %115 = vector.shape_cast %114 : vector<1x192x16xbf16> to vector<192x16xbf16>
    %c0_94 = arith.constant 0 : index
    %c2_95 = arith.constant 2 : index
    %c0_96 = arith.constant 0 : index
    %116 = vector.load %arg14[%c0_94, %c2_95, %c0_96] : memref<1x226x16xbf16, #tpu.memory_space<vmem>>, vector<1x192x16xbf16>
    %117 = vector.shape_cast %116 : vector<1x192x16xbf16> to vector<192x16xbf16>
    %c0_97 = arith.constant 0 : index
    %c16_98 = arith.constant 16 : index
    %c0_99 = arith.constant 0 : index
    %118 = vector.load %arg14[%c0_97, %c16_98, %c0_99] : memref<1x226x16xbf16, #tpu.memory_space<vmem>>, vector<1x192x16xbf16>
    %119 = vector.shape_cast %118 : vector<1x192x16xbf16> to vector<192x16xbf16>
    %c0_100 = arith.constant 0 : index
    %c17_101 = arith.constant 17 : index
    %c0_102 = arith.constant 0 : index
    %120 = vector.load %arg14[%c0_100, %c17_101, %c0_102] : memref<1x226x16xbf16, #tpu.memory_space<vmem>>, vector<1x192x16xbf16>
    %121 = vector.shape_cast %120 : vector<1x192x16xbf16> to vector<192x16xbf16>
    %c0_103 = arith.constant 0 : index
    %c18_104 = arith.constant 18 : index
    %c0_105 = arith.constant 0 : index
    %122 = vector.load %arg14[%c0_103, %c18_104, %c0_105] : memref<1x226x16xbf16, #tpu.memory_space<vmem>>, vector<1x192x16xbf16>
    %123 = vector.shape_cast %122 : vector<1x192x16xbf16> to vector<192x16xbf16>
    %c0_106 = arith.constant 0 : index
    %c32_107 = arith.constant 32 : index
    %c0_108 = arith.constant 0 : index
    %124 = vector.load %arg14[%c0_106, %c32_107, %c0_108] : memref<1x226x16xbf16, #tpu.memory_space<vmem>>, vector<1x192x16xbf16>
    %125 = vector.shape_cast %124 : vector<1x192x16xbf16> to vector<192x16xbf16>
    %c0_109 = arith.constant 0 : index
    %c33_110 = arith.constant 33 : index
    %c0_111 = arith.constant 0 : index
    %126 = vector.load %arg14[%c0_109, %c33_110, %c0_111] : memref<1x226x16xbf16, #tpu.memory_space<vmem>>, vector<1x192x16xbf16>
    %127 = vector.shape_cast %126 : vector<1x192x16xbf16> to vector<192x16xbf16>
    %c0_112 = arith.constant 0 : index
    %c34_113 = arith.constant 34 : index
    %c0_114 = arith.constant 0 : index
    %128 = vector.load %arg14[%c0_112, %c34_113, %c0_114] : memref<1x226x16xbf16, #tpu.memory_space<vmem>>, vector<1x192x16xbf16>
    %129 = vector.shape_cast %128 : vector<1x192x16xbf16> to vector<192x16xbf16>
    %130 = tpu.concatenate %113, %115, %117, %119, %121, %123, %125, %127, %129 in 1 : vector<192x16xbf16>, vector<192x16xbf16>, vector<192x16xbf16>, vector<192x16xbf16>, vector<192x16xbf16>, vector<192x16xbf16>, vector<192x16xbf16>, vector<192x16xbf16>, vector<192x16xbf16> -> vector<192x144xbf16>
    %c0_115 = arith.constant 0 : index
    %c0_116 = arith.constant 0 : index
    %131 = vector.load %arg5[%c0_115, %c0_116] : memref<144x16xbf16, #tpu.memory_space<vmem>>, vector<144x16xbf16>
    %cst_117 = arith.constant dense<0.000000e+00> : vector<192x16xf32>
    %132 = tpu.matmul %130, %131, %cst_117 {dimension_numbers = #tpu.dot_dimension_numbers<[1], [0], [0], [1], [0, 0, 1, 1], [], []>} : vector<192x144xbf16>, vector<144x16xbf16>, vector<192x16xf32> -> vector<192x16xf32>
    %133 = vector.broadcast %0 : vector<1x16xf32> to vector<192x16xf32>
    %134 = arith.mulf %132, %133 : vector<192x16xf32>
    %135 = vector.broadcast %1 : vector<1x16xf32> to vector<192x16xf32>
    %136 = arith.addf %134, %135 : vector<192x16xf32>
    %cst_118 = arith.constant 0.000000e+00 : f32
    %137 = vector.broadcast %cst_118 : f32 to vector<192x16xf32>
    %138 = arith.maximumf %136, %137 : vector<192x16xf32>
    %cst_119 = arith.constant 0.000000e+00 : f32
    %139 = vector.broadcast %cst_119 : f32 to vector<192x16xf32>
    %140 = arith.select %20, %138, %139 : vector<192x16xi1>, vector<192x16xf32>
    %141 = arith.truncf %140 : vector<192x16xf32> to vector<192x16xbf16>
    %c0_120 = arith.constant 0 : index
    %c17_121 = arith.constant 17 : index
    %c0_122 = arith.constant 0 : index
    %142 = vector.load %arg13[%c0_120, %c17_121, %c0_122] : memref<1x226x16xbf16, #tpu.memory_space<vmem>>, vector<1x192x16xbf16>
    %143 = vector.shape_cast %142 : vector<1x192x16xbf16> to vector<192x16xbf16>
    %144 = vector.shape_cast %141 : vector<192x16xbf16> to vector<1x192x16xbf16>
    tpu.vector_store %arg13[%c0_120, %c17_121, %c0_122], %144 {strides = array<i32>} : memref<1x226x16xbf16, #tpu.memory_space<vmem>>, vector<1x192x16xbf16>,
    %c0_123 = arith.constant 0 : index
    %c0_124 = arith.constant 0 : index
    %c0_125 = arith.constant 0 : index
    %145 = vector.load %arg13[%c0_123, %c0_124, %c0_125] : memref<1x226x16xbf16, #tpu.memory_space<vmem>>, vector<1x192x16xbf16>
    %146 = vector.shape_cast %145 : vector<1x192x16xbf16> to vector<192x16xbf16>
    %c0_126 = arith.constant 0 : index
    %c1_127 = arith.constant 1 : index
    %c0_128 = arith.constant 0 : index
    %147 = vector.load %arg13[%c0_126, %c1_127, %c0_128] : memref<1x226x16xbf16, #tpu.memory_space<vmem>>, vector<1x192x16xbf16>
    %148 = vector.shape_cast %147 : vector<1x192x16xbf16> to vector<192x16xbf16>
    %c0_129 = arith.constant 0 : index
    %c2_130 = arith.constant 2 : index
    %c0_131 = arith.constant 0 : index
    %149 = vector.load %arg13[%c0_129, %c2_130, %c0_131] : memref<1x226x16xbf16, #tpu.memory_space<vmem>>, vector<1x192x16xbf16>
    %150 = vector.shape_cast %149 : vector<1x192x16xbf16> to vector<192x16xbf16>
    %c0_132 = arith.constant 0 : index
    %c16_133 = arith.constant 16 : index
    %c0_134 = arith.constant 0 : index
    %151 = vector.load %arg13[%c0_132, %c16_133, %c0_134] : memref<1x226x16xbf16, #tpu.memory_space<vmem>>, vector<1x192x16xbf16>
    %152 = vector.shape_cast %151 : vector<1x192x16xbf16> to vector<192x16xbf16>
    %c0_135 = arith.constant 0 : index
    %c17_136 = arith.constant 17 : index
    %c0_137 = arith.constant 0 : index
    %153 = vector.load %arg13[%c0_135, %c17_136, %c0_137] : memref<1x226x16xbf16, #tpu.memory_space<vmem>>, vector<1x192x16xbf16>
    %154 = vector.shape_cast %153 : vector<1x192x16xbf16> to vector<192x16xbf16>
    %c0_138 = arith.constant 0 : index
    %c18_139 = arith.constant 18 : index
    %c0_140 = arith.constant 0 : index
    %155 = vector.load %arg13[%c0_138, %c18_139, %c0_140] : memref<1x226x16xbf16, #tpu.memory_space<vmem>>, vector<1x192x16xbf16>
    %156 = vector.shape_cast %155 : vector<1x192x16xbf16> to vector<192x16xbf16>
    %c0_141 = arith.constant 0 : index
    %c32_142 = arith.constant 32 : index
    %c0_143 = arith.constant 0 : index
    %157 = vector.load %arg13[%c0_141, %c32_142, %c0_143] : memref<1x226x16xbf16, #tpu.memory_space<vmem>>, vector<1x192x16xbf16>
    %158 = vector.shape_cast %157 : vector<1x192x16xbf16> to vector<192x16xbf16>
    %c0_144 = arith.constant 0 : index
    %c33_145 = arith.constant 33 : index
    %c0_146 = arith.constant 0 : index
    %159 = vector.load %arg13[%c0_144, %c33_145, %c0_146] : memref<1x226x16xbf16, #tpu.memory_space<vmem>>, vector<1x192x16xbf16>
    %160 = vector.shape_cast %159 : vector<1x192x16xbf16> to vector<192x16xbf16>
    %c0_147 = arith.constant 0 : index
    %c34_148 = arith.constant 34 : index
    %c0_149 = arith.constant 0 : index
    %161 = vector.load %arg13[%c0_147, %c34_148, %c0_149] : memref<1x226x16xbf16, #tpu.memory_space<vmem>>, vector<1x192x16xbf16>
    %162 = vector.shape_cast %161 : vector<1x192x16xbf16> to vector<192x16xbf16>
    %163 = tpu.concatenate %146, %148, %150, %152, %154, %156, %158, %160, %162 in 1 : vector<192x16xbf16>, vector<192x16xbf16>, vector<192x16xbf16>, vector<192x16xbf16>, vector<192x16xbf16>, vector<192x16xbf16>, vector<192x16xbf16>, vector<192x16xbf16>, vector<192x16xbf16> -> vector<192x144xbf16>
    %c0_150 = arith.constant 0 : index
    %c0_151 = arith.constant 0 : index
    %164 = vector.load %arg6[%c0_150, %c0_151] : memref<144x16xbf16, #tpu.memory_space<vmem>>, vector<144x16xbf16>
    %cst_152 = arith.constant dense<0.000000e+00> : vector<192x16xf32>
    %165 = tpu.matmul %163, %164, %cst_152 {dimension_numbers = #tpu.dot_dimension_numbers<[1], [0], [0], [1], [0, 0, 1, 1], [], []>} : vector<192x144xbf16>, vector<144x16xbf16>, vector<192x16xf32> -> vector<192x16xf32>
    %166 = vector.broadcast %0 : vector<1x16xf32> to vector<192x16xf32>
    %167 = arith.mulf %165, %166 : vector<192x16xf32>
    %168 = vector.broadcast %1 : vector<1x16xf32> to vector<192x16xf32>
    %169 = arith.addf %167, %168 : vector<192x16xf32>
    %170 = arith.addf %169, %105 : vector<192x16xf32>
    %cst_153 = arith.constant 0.000000e+00 : f32
    %171 = vector.broadcast %cst_153 : f32 to vector<192x16xf32>
    %172 = arith.maximumf %170, %171 : vector<192x16xf32>
    %c0_154 = arith.constant 0 : index
    %c0_155 = arith.constant 0 : index
    %c0_156 = arith.constant 0 : index
    %173 = vector.load %arg11[%c0_154, %c0_155, %c0_156] : memref<1x192x16xf32, #tpu.memory_space<vmem>>, vector<1x192x16xf32>
    %174 = vector.shape_cast %173 : vector<1x192x16xf32> to vector<192x16xf32>
    %175 = vector.shape_cast %172 : vector<192x16xf32> to vector<1x192x16xf32>
    tpu.vector_store %arg11[%c0_154, %c0_155, %c0_156], %175 {strides = array<i32>} : memref<1x192x16xf32, #tpu.memory_space<vmem>>, vector<1x192x16xf32>,
    %176 = vector.extract_strided_slice %172 {offsets = [0, 0], sizes = [4, 16], strides = [1, 1]} : vector<192x16xf32> to vector<4x16xf32>
    %177 = vector.extract_strided_slice %172 {offsets = [16, 0], sizes = [4, 16], strides = [1, 1]} : vector<192x16xf32> to vector<4x16xf32>
    %178 = arith.maximumf %176, %177 : vector<4x16xf32>
    %179 = vector.extract_strided_slice %172 {offsets = [32, 0], sizes = [4, 16], strides = [1, 1]} : vector<192x16xf32> to vector<4x16xf32>
    %180 = arith.maximumf %178, %179 : vector<4x16xf32>
    %181 = vector.extract_strided_slice %172 {offsets = [48, 0], sizes = [4, 16], strides = [1, 1]} : vector<192x16xf32> to vector<4x16xf32>
    %182 = arith.maximumf %180, %181 : vector<4x16xf32>
    %cst_157 = arith.constant dense<0xFF800000> : vector<16xf32>
    %183 = vector.multi_reduction <maximumf>, %182, %cst_157 [0] : vector<4x16xf32> to vector<16xf32>
    %184 = vector.shape_cast %183 : vector<16xf32> to vector<1x16xf32>
    %185 = vector.extract_strided_slice %172 {offsets = [4, 0], sizes = [4, 16], strides = [1, 1]} : vector<192x16xf32> to vector<4x16xf32>
    %186 = vector.extract_strided_slice %172 {offsets = [20, 0], sizes = [4, 16], strides = [1, 1]} : vector<192x16xf32> to vector<4x16xf32>
    %187 = arith.maximumf %185, %186 : vector<4x16xf32>
    %188 = vector.extract_strided_slice %172 {offsets = [36, 0], sizes = [4, 16], strides = [1, 1]} : vector<192x16xf32> to vector<4x16xf32>
    %189 = arith.maximumf %187, %188 : vector<4x16xf32>
    %190 = vector.extract_strided_slice %172 {offsets = [52, 0], sizes = [4, 16], strides = [1, 1]} : vector<192x16xf32> to vector<4x16xf32>
    %191 = arith.maximumf %189, %190 : vector<4x16xf32>
    %cst_158 = arith.constant dense<0xFF800000> : vector<16xf32>
    %192 = vector.multi_reduction <maximumf>, %191, %cst_158 [0] : vector<4x16xf32> to vector<16xf32>
    %193 = vector.shape_cast %192 : vector<16xf32> to vector<1x16xf32>
    %194 = vector.extract_strided_slice %172 {offsets = [8, 0], sizes = [4, 16], strides = [1, 1]} : vector<192x16xf32> to vector<4x16xf32>
    %195 = vector.extract_strided_slice %172 {offsets = [24, 0], sizes = [4, 16], strides = [1, 1]} : vector<192x16xf32> to vector<4x16xf32>
    %196 = arith.maximumf %194, %195 : vector<4x16xf32>
    %197 = vector.extract_strided_slice %172 {offsets = [40, 0], sizes = [4, 16], strides = [1, 1]} : vector<192x16xf32> to vector<4x16xf32>
    %198 = arith.maximumf %196, %197 : vector<4x16xf32>
    %199 = vector.extract_strided_slice %172 {offsets = [56, 0], sizes = [4, 16], strides = [1, 1]} : vector<192x16xf32> to vector<4x16xf32>
    %200 = arith.maximumf %198, %199 : vector<4x16xf32>
    %cst_159 = arith.constant dense<0xFF800000> : vector<16xf32>
    %201 = vector.multi_reduction <maximumf>, %200, %cst_159 [0] : vector<4x16xf32> to vector<16xf32>
    %202 = vector.shape_cast %201 : vector<16xf32> to vector<1x16xf32>
    %203 = vector.extract_strided_slice %172 {offsets = [64, 0], sizes = [4, 16], strides = [1, 1]} : vector<192x16xf32> to vector<4x16xf32>
    %204 = vector.extract_strided_slice %172 {offsets = [80, 0], sizes = [4, 16], strides = [1, 1]} : vector<192x16xf32> to vector<4x16xf32>
    %205 = arith.maximumf %203, %204 : vector<4x16xf32>
    %206 = vector.extract_strided_slice %172 {offsets = [96, 0], sizes = [4, 16], strides = [1, 1]} : vector<192x16xf32> to vector<4x16xf32>
    %207 = arith.maximumf %205, %206 : vector<4x16xf32>
    %208 = vector.extract_strided_slice %172 {offsets = [112, 0], sizes = [4, 16], strides = [1, 1]} : vector<192x16xf32> to vector<4x16xf32>
    %209 = arith.maximumf %207, %208 : vector<4x16xf32>
    %cst_160 = arith.constant dense<0xFF800000> : vector<16xf32>
    %210 = vector.multi_reduction <maximumf>, %209, %cst_160 [0] : vector<4x16xf32> to vector<16xf32>
    %211 = vector.shape_cast %210 : vector<16xf32> to vector<1x16xf32>
    %212 = vector.extract_strided_slice %172 {offsets = [68, 0], sizes = [4, 16], strides = [1, 1]} : vector<192x16xf32> to vector<4x16xf32>
    %213 = vector.extract_strided_slice %172 {offsets = [84, 0], sizes = [4, 16], strides = [1, 1]} : vector<192x16xf32> to vector<4x16xf32>
    %214 = arith.maximumf %212, %213 : vector<4x16xf32>
    %215 = vector.extract_strided_slice %172 {offsets = [100, 0], sizes = [4, 16], strides = [1, 1]} : vector<192x16xf32> to vector<4x16xf32>
    %216 = arith.maximumf %214, %215 : vector<4x16xf32>
    %217 = vector.extract_strided_slice %172 {offsets = [116, 0], sizes = [4, 16], strides = [1, 1]} : vector<192x16xf32> to vector<4x16xf32>
    %218 = arith.maximumf %216, %217 : vector<4x16xf32>
    %cst_161 = arith.constant dense<0xFF800000> : vector<16xf32>
    %219 = vector.multi_reduction <maximumf>, %218, %cst_161 [0] : vector<4x16xf32> to vector<16xf32>
    %220 = vector.shape_cast %219 : vector<16xf32> to vector<1x16xf32>
    %221 = vector.extract_strided_slice %172 {offsets = [72, 0], sizes = [4, 16], strides = [1, 1]} : vector<192x16xf32> to vector<4x16xf32>
    %222 = vector.extract_strided_slice %172 {offsets = [88, 0], sizes = [4, 16], strides = [1, 1]} : vector<192x16xf32> to vector<4x16xf32>
    %223 = arith.maximumf %221, %222 : vector<4x16xf32>
    %224 = vector.extract_strided_slice %172 {offsets = [104, 0], sizes = [4, 16], strides = [1, 1]} : vector<192x16xf32> to vector<4x16xf32>
    %225 = arith.maximumf %223, %224 : vector<4x16xf32>
    %226 = vector.extract_strided_slice %172 {offsets = [120, 0], sizes = [4, 16], strides = [1, 1]} : vector<192x16xf32> to vector<4x16xf32>
    %227 = arith.maximumf %225, %226 : vector<4x16xf32>
    %cst_162 = arith.constant dense<0xFF800000> : vector<16xf32>
    %228 = vector.multi_reduction <maximumf>, %227, %cst_162 [0] : vector<4x16xf32> to vector<16xf32>
    %229 = vector.shape_cast %228 : vector<16xf32> to vector<1x16xf32>
    %230 = vector.extract_strided_slice %172 {offsets = [128, 0], sizes = [4, 16], strides = [1, 1]} : vector<192x16xf32> to vector<4x16xf32>
    %231 = vector.extract_strided_slice %172 {offsets = [144, 0], sizes = [4, 16], strides = [1, 1]} : vector<192x16xf32> to vector<4x16xf32>
    %232 = arith.maximumf %230, %231 : vector<4x16xf32>
    %233 = vector.extract_strided_slice %172 {offsets = [160, 0], sizes = [4, 16], strides = [1, 1]} : vector<192x16xf32> to vector<4x16xf32>
    %234 = arith.maximumf %232, %233 : vector<4x16xf32>
    %235 = vector.extract_strided_slice %172 {offsets = [176, 0], sizes = [4, 16], strides = [1, 1]} : vector<192x16xf32> to vector<4x16xf32>
    %236 = arith.maximumf %234, %235 : vector<4x16xf32>
    %cst_163 = arith.constant dense<0xFF800000> : vector<16xf32>
    %237 = vector.multi_reduction <maximumf>, %236, %cst_163 [0] : vector<4x16xf32> to vector<16xf32>
    %238 = vector.shape_cast %237 : vector<16xf32> to vector<1x16xf32>
    %239 = vector.extract_strided_slice %172 {offsets = [132, 0], sizes = [4, 16], strides = [1, 1]} : vector<192x16xf32> to vector<4x16xf32>
    %240 = vector.extract_strided_slice %172 {offsets = [148, 0], sizes = [4, 16], strides = [1, 1]} : vector<192x16xf32> to vector<4x16xf32>
    %241 = arith.maximumf %239, %240 : vector<4x16xf32>
    %242 = vector.extract_strided_slice %172 {offsets = [164, 0], sizes = [4, 16], strides = [1, 1]} : vector<192x16xf32> to vector<4x16xf32>
    %243 = arith.maximumf %241, %242 : vector<4x16xf32>
    %244 = vector.extract_strided_slice %172 {offsets = [180, 0], sizes = [4, 16], strides = [1, 1]} : vector<192x16xf32> to vector<4x16xf32>
    %245 = arith.maximumf %243, %244 : vector<4x16xf32>
    %cst_164 = arith.constant dense<0xFF800000> : vector<16xf32>
    %246 = vector.multi_reduction <maximumf>, %245, %cst_164 [0] : vector<4x16xf32> to vector<16xf32>
    %247 = vector.shape_cast %246 : vector<16xf32> to vector<1x16xf32>
    %248 = vector.extract_strided_slice %172 {offsets = [136, 0], sizes = [4, 16], strides = [1, 1]} : vector<192x16xf32> to vector<4x16xf32>
    %249 = vector.extract_strided_slice %172 {offsets = [152, 0], sizes = [4, 16], strides = [1, 1]} : vector<192x16xf32> to vector<4x16xf32>
    %250 = arith.maximumf %248, %249 : vector<4x16xf32>
    %251 = vector.extract_strided_slice %172 {offsets = [168, 0], sizes = [4, 16], strides = [1, 1]} : vector<192x16xf32> to vector<4x16xf32>
    %252 = arith.maximumf %250, %251 : vector<4x16xf32>
    %253 = vector.extract_strided_slice %172 {offsets = [184, 0], sizes = [4, 16], strides = [1, 1]} : vector<192x16xf32> to vector<4x16xf32>
    %254 = arith.maximumf %252, %253 : vector<4x16xf32>
    %cst_165 = arith.constant dense<0xFF800000> : vector<16xf32>
    %255 = vector.multi_reduction <maximumf>, %254, %cst_165 [0] : vector<4x16xf32> to vector<16xf32>
    %256 = vector.shape_cast %255 : vector<16xf32> to vector<1x16xf32>
    %257 = tpu.concatenate %184, %193, %202, %211, %220, %229, %238, %247, %256 in 1 : vector<1x16xf32>, vector<1x16xf32>, vector<1x16xf32>, vector<1x16xf32>, vector<1x16xf32>, vector<1x16xf32>, vector<1x16xf32>, vector<1x16xf32>, vector<1x16xf32> -> vector<1x144xf32>
    %258 = arith.truncf %257 : vector<1x144xf32> to vector<1x144xbf16>
    %c0_166 = arith.constant 0 : index
    %c0_167 = arith.constant 0 : index
    %259 = vector.load %arg9[%c0_166, %c0_167] : memref<144x3xbf16, #tpu.memory_space<vmem>>, vector<144x3xbf16>
    %cst_168 = arith.constant dense<0.000000e+00> : vector<1x3xf32>
    %260 = tpu.matmul %258, %259, %cst_168 {dimension_numbers = #tpu.dot_dimension_numbers<[1], [0], [0], [1], [0, 0, 1, 1], [], []>} : vector<1x144xbf16>, vector<144x3xbf16>, vector<1x3xf32> -> vector<1x3xf32>
    %c0_169 = arith.constant 0 : index
    %c0_170 = arith.constant 0 : index
    %261 = vector.load %arg10[%c0_169, %c0_170] : memref<1x3xf32, #tpu.memory_space<vmem>>, vector<1x3xf32>
    %262 = arith.addf %260, %261 : vector<1x3xf32>
    %263 = vector.shape_cast %262 : vector<1x3xf32> to vector<1x1x3xf32>
    %c0_171 = arith.constant 0 : index
    %c0_172 = arith.constant 0 : index
    %c0_173 = arith.constant 0 : index
    %264 = vector.load %arg12[%c0_171, %c0_172, %c0_173] : memref<1x1x3xf32, #tpu.memory_space<vmem>>, vector<1x1x3xf32>
    tpu.vector_store %arg12[%c0_171, %c0_172, %c0_173], %263 {strides = array<i32>} : memref<1x1x3xf32, #tpu.memory_space<vmem>>, vector<1x1x3xf32>,
    return
  }
  func.func @transform_0(%arg0: i32) -> (i32, i32, i32) {
    %c0_i32 = arith.constant 0 : i32
    %c0_i32_0 = arith.constant 0 : i32
    %c0_i32_1 = arith.constant 0 : i32
    return %arg0, %c0_i32, %c0_i32_0 : i32, i32, i32
  }
  func.func @transform_1(%arg0: i32) -> (i32, i32) {
    %c0_i32 = arith.constant 0 : i32
    %c0_i32_0 = arith.constant 0 : i32
    %c0_i32_1 = arith.constant 0 : i32
    return %c0_i32, %c0_i32_0 : i32, i32
  }
  func.func @transform_2(%arg0: i32) -> (i32, i32) {
    %c0_i32 = arith.constant 0 : i32
    %c0_i32_0 = arith.constant 0 : i32
    %c0_i32_1 = arith.constant 0 : i32
    return %c0_i32, %c0_i32_0 : i32, i32
  }
  func.func @transform_3(%arg0: i32) -> (i32, i32) {
    %c0_i32 = arith.constant 0 : i32
    %c0_i32_0 = arith.constant 0 : i32
    %c0_i32_1 = arith.constant 0 : i32
    return %c0_i32, %c0_i32_0 : i32, i32
  }
  func.func @transform_4(%arg0: i32) -> (i32, i32) {
    %c0_i32 = arith.constant 0 : i32
    %c0_i32_0 = arith.constant 0 : i32
    %c0_i32_1 = arith.constant 0 : i32
    return %c0_i32, %c0_i32_0 : i32, i32
  }
  func.func @transform_5(%arg0: i32) -> (i32, i32) {
    %c0_i32 = arith.constant 0 : i32
    %c0_i32_0 = arith.constant 0 : i32
    %c0_i32_1 = arith.constant 0 : i32
    return %c0_i32, %c0_i32_0 : i32, i32
  }
  func.func @transform_6(%arg0: i32) -> (i32, i32) {
    %c0_i32 = arith.constant 0 : i32
    %c0_i32_0 = arith.constant 0 : i32
    %c0_i32_1 = arith.constant 0 : i32
    return %c0_i32, %c0_i32_0 : i32, i32
  }
  func.func @transform_7(%arg0: i32) -> (i32, i32) {
    %c0_i32 = arith.constant 0 : i32
    %c0_i32_0 = arith.constant 0 : i32
    %c0_i32_1 = arith.constant 0 : i32
    return %c0_i32, %c0_i32_0 : i32, i32
  }
  func.func @transform_8(%arg0: i32) -> (i32, i32) {
    %c0_i32 = arith.constant 0 : i32
    %c0_i32_0 = arith.constant 0 : i32
    %c0_i32_1 = arith.constant 0 : i32
    return %c0_i32, %c0_i32_0 : i32, i32
  }
  func.func @transform_9(%arg0: i32) -> (i32, i32) {
    %c0_i32 = arith.constant 0 : i32
    %c0_i32_0 = arith.constant 0 : i32
    %c0_i32_1 = arith.constant 0 : i32
    return %c0_i32, %c0_i32_0 : i32, i32
  }
  func.func @transform_10(%arg0: i32) -> (i32, i32, i32) {
    %c0_i32 = arith.constant 0 : i32
    %c0_i32_0 = arith.constant 0 : i32
    %c0_i32_1 = arith.constant 0 : i32
    return %arg0, %c0_i32, %c0_i32_0 : i32, i32, i32
  }
  func.func @transform_11(%arg0: i32) -> (i32, i32, i32) {
    %c0_i32 = arith.constant 0 : i32
    %c0_i32_0 = arith.constant 0 : i32
    %c0_i32_1 = arith.constant 0 : i32
    return %arg0, %c0_i32, %c0_i32_0 : i32, i32, i32
  }
}

</mosaic_0001>

<llo_original>
// kernel: texture_scene_forward.1
$region0: #{texture_scene_forward.1}
  #allocation0 [shape = 'u32[]', space=smem, size = 0x4, offset = 0x4, fixed_abs, tag = 'smem constant byte address 0x4 - core index']
  #allocation1 [shape = 'u32[144,128]{1,0:T(1,128)}', space=vmem, size = 0x12000, scoped, tag = 'internal scratch']
  #allocation2 [shape = 'bf16[1,226,16]{2,1,0:T(8,128)(2,1)}', space=vmem, size = 0xe800, scoped, tag = 'scratch operand']
  #allocation3 [shape = 'bf16[1,226,16]{2,1,0:T(8,128)(2,1)}', space=vmem, size = 0xe800, scoped, tag = 'scratch operand']
  %s0 = inlined_call_operand.vmem [shape: bf16[2,226,32], index: 0, kind: input, shape index: {}]
  %s1 = inlined_call_operand.vmem [shape: bf16[288,16], index: 1, kind: input, shape index: {}]
  %s2 = inlined_call_operand.vmem [shape: bf16[32,16], index: 2, kind: input, shape index: {}]
  %s3 = inlined_call_operand.vmem [shape: bf16[144,16], index: 3, kind: input, shape index: {}]
  %s4 = inlined_call_operand.vmem [shape: bf16[144,16], index: 4, kind: input, shape index: {}]
  %s5 = inlined_call_operand.vmem [shape: bf16[144,16], index: 5, kind: input, shape index: {}]
  %s6 = inlined_call_operand.vmem [shape: f32[1,16], index: 6, kind: input, shape index: {}]
  %s7 = inlined_call_operand.vmem [shape: f32[1,16], index: 7, kind: input, shape index: {}]
  %s8 = inlined_call_operand.vmem [shape: bf16[144,3], index: 8, kind: input, shape index: {}]
  %s9 = inlined_call_operand.vmem [shape: f32[1,3], index: 9, kind: input, shape index: {}]
  %s10 = inlined_call_operand.vmem [shape: f32[2,192,16], index: 10, kind: output, shape index: {0}]
  %s11 = inlined_call_operand.hbm [shape: f32[2,1,3], index: 11, kind: output, shape index: {1}]
  %12 = xla_tuple %s10, %s11
  %s13 = sld [smem:[#allocation0]]
  $region81: #{texture_scene_forward.1} parent=0
    _
  %s15 = ssub.s32 1, %s13
  %s16 = scalar_select 0, %s15, %s13
  $region1: #{texture_scene_forward.1} parent=0
    #allocation4 [shape = 'u8[1024]{0}', space=vmem, size = 0x400, scoped, tag = 'output window, operand 1']
    #allocation5 [shape = 's32[2]{0}', space=sflag, size = 0x8, scoped, tag = 'scoped memory for texture_scene_forward.1']
    %17 = vsyncpa [#allocation5], 0
    %s18 = scalar_lea.sflag [#allocation5], 1
    %19 = vsyncpa %s18, 0
    loop: start=0, step=1, limit=4
    $region2: #{texture_scene_forward.1} parent=1 // loop_pre_header
      _
    $region3: #{texture_scene_forward.1} parent=1 // loop_header
      %s21 = sphi 0, %s25
      %p22 = scmp.ge.s32.totalorder %s21, 4
      %s31 = sphi 0, %s33
      %s34 = sphi 0, %s31
      %s35 = sphi 0, %s34
      %s51 = sphi 0, %s35
      %s55 = sphi 0, %s55
      %s57 = sphi 0, %s55
      %s58 = sphi 0, %s57
      %s72 = sphi 0, %s58
      %s76 = sphi 0, %s76
      %s78 = sphi 0, %s76
      %s79 = sphi 0, %s78
      %s93 = sphi 0, %s79
      %s97 = sphi 0, %s97
      %s99 = sphi 0, %s97
      %s100 = sphi 0, %s99
      %s114 = sphi 0, %s100
      %s118 = sphi 0, %s118
      %s120 = sphi 0, %s118
      %s121 = sphi 0, %s120
      %s135 = sphi 0, %s121
      %s139 = sphi 0, %s139
      %s141 = sphi 0, %s139
      %s142 = sphi 0, %s141
      %s156 = sphi 0, %s142
      %s160 = sphi 0, %s160
      %s162 = sphi 0, %s160
      %s163 = sphi 0, %s162
      %s177 = sphi 0, %s163
      %s181 = sphi 0, %s181
      %s183 = sphi 0, %s181
      %s184 = sphi 0, %s183
      %s198 = sphi 0, %s184
      %s202 = sphi 0, %s202
      %s204 = sphi 0, %s202
      %s205 = sphi 0, %s204
      %s219 = sphi 0, %s205
      %s223 = sphi 0, %s223
      %s225 = sphi 0, %s223
      %s226 = sphi 0, %s225
      %s240 = sphi 0, %s226
      %s246 = sphi 0, %s248
      %s249 = sphi 0, %s246
      %s250 = sphi 0, %s249
      %s266 = sphi 0, %s250
      %s272 = sphi 0, %s274
      %s275 = sphi 0, %s272
      %s276 = sphi 0, %s275
      %s292 = sphi 0, %s276
    $region4: #{texture_scene_forward.1} parent=1 // loop_header_branch
      %24 = sbr.rel (%p22) target = $region8
    $region5: #{texture_scene_forward.1} parent=1 // loop_body
      %s26 = ssub.s32 %s21, 1
      %s27 = ssub.s32 %s21, 2
      %s28 = sadd.s32 %s21, 1
      %s29 = ssub.s32 %s21, %s28
      %p30 = scmp.eq.s32.totalorder %s29, 0
      %s32 = sadd.s32 %s31, 1
      %s33 = scalar_select %p30, %s31, %s32
      %p36 = pneg %p30
      %p37 = scmp.eq.s32.totalorder %s21, 1
      %p38 = por %p36, %p37
      %p39 = scmp.ne.s32.totalorder %s31, %s34
      %p40 = scmp.eq.s32.totalorder %s21, 0
      %p41 = por %p39, %p40
      %p42 = scmp.ne.s32.totalorder %s31, %s34
      %p43 = scmp.eq.s32.totalorder %s26, 1
      %p44 = por %p42, %p43
      %p45 = scmp.ne.s32.totalorder %s34, %s35
      %p46 = scmp.eq.s32.totalorder %s26, 0
      %p47 = por %p45, %p46
      %p48 = scmp.ne.s32.totalorder %s34, %s35
      %p49 = scmp.eq.s32.totalorder %s27, 1
      %p50 = por %p48, %p49
      %p52 = scmp.ne.s32.totalorder %s35, %s51
      %p53 = scmp.eq.s32.totalorder %s27, 0
      %p54 = por %p52, %p53
      %s56 = sadd.s32 %s55, 1
      %p59 = scmp.eq.s32.totalorder %s21, 1
      %p60 = scmp.ne.s32.totalorder %s55, %s57
      %p61 = scmp.eq.s32.totalorder %s21, 0
      %p62 = por %p60, %p61
      %p63 = scmp.ne.s32.totalorder %s55, %s57
      %p64 = scmp.eq.s32.totalorder %s26, 1
      %p65 = por %p63, %p64
      %p66 = scmp.ne.s32.totalorder %s57, %s58
      %p67 = scmp.eq.s32.totalorder %s26, 0
      %p68 = por %p66, %p67
      %p69 = scmp.ne.s32.totalorder %s57, %s58
      %p70 = scmp.eq.s32.totalorder %s27, 1
      %p71 = por %p69, %p70
      %p73 = scmp.ne.s32.totalorder %s58, %s72
      %p74 = scmp.eq.s32.totalorder %s27, 0
      %p75 = por %p73, %p74
      %s77 = sadd.s32 %s76, 1
      %p80 = scmp.eq.s32.totalorder %s21, 1
      %p81 = scmp.ne.s32.totalorder %s76, %s78
      %p82 = scmp.eq.s32.totalorder %s21, 0
      %p83 = por %p81, %p82
      %p84 = scmp.ne.s32.totalorder %s76, %s78
      %p85 = scmp.eq.s32.totalorder %s26, 1
      %p86 = por %p84, %p85
      %p87 = scmp.ne.s32.totalorder %s78, %s79
      %p88 = scmp.eq.s32.totalorder %s26, 0
      %p89 = por %p87, %p88
      %p90 = scmp.ne.s32.totalorder %s78, %s79
      %p91 = scmp.eq.s32.totalorder %s27, 1
      %p92 = por %p90, %p91
      %p94 = scmp.ne.s32.totalorder %s79, %s93
      %p95 = scmp.eq.s32.totalorder %s27, 0
      %p96 = por %p94, %p95
      %s98 = sadd.s32 %s97, 1
      %p101 = scmp.eq.s32.totalorder %s21, 1
      %p102 = scmp.ne.s32.totalorder %s97, %s99
      %p103 = scmp.eq.s32.totalorder %s21, 0
      %p104 = por %p102, %p103
      %p105 = scmp.ne.s32.totalorder %s97, %s99
      %p106 = scmp.eq.s32.totalorder %s26, 1
      %p107 = por %p105, %p106
      %p108 = scmp.ne.s32.totalorder %s99, %s100
      %p109 = scmp.eq.s32.totalorder %s26, 0
      %p110 = por %p108, %p109
      %p111 = scmp.ne.s32.totalorder %s99, %s100
      %p112 = scmp.eq.s32.totalorder %s27, 1
      %p113 = por %p111, %p112
      %p115 = scmp.ne.s32.totalorder %s100, %s114
      %p116 = scmp.eq.s32.totalorder %s27, 0
      %p117 = por %p115, %p116
      %s119 = sadd.s32 %s118, 1
      %p122 = scmp.eq.s32.totalorder %s21, 1
      %p123 = scmp.ne.s32.totalorder %s118, %s120
      %p124 = scmp.eq.s32.totalorder %s21, 0
      %p125 = por %p123, %p124
      %p126 = scmp.ne.s32.totalorder %s118, %s120
      %p127 = scmp.eq.s32.totalorder %s26, 1
      %p128 = por %p126, %p127
      %p129 = scmp.ne.s32.totalorder %s120, %s121
      %p130 = scmp.eq.s32.totalorder %s26, 0
      %p131 = por %p129, %p130
      %p132 = scmp.ne.s32.totalorder %s120, %s121
      %p133 = scmp.eq.s32.totalorder %s27, 1
      %p134 = por %p132, %p133
      %p136 = scmp.ne.s32.totalorder %s121, %s135
      %p137 = scmp.eq.s32.totalorder %s27, 0
      %p138 = por %p136, %p137
      %s140 = sadd.s32 %s139, 1
      %p143 = scmp.eq.s32.totalorder %s21, 1
      %p144 = scmp.ne.s32.totalorder %s139, %s141
      %p145 = scmp.eq.s32.totalorder %s21, 0
      %p146 = por %p144, %p145
      %p147 = scmp.ne.s32.totalorder %s139, %s141
      %p148 = scmp.eq.s32.totalorder %s26, 1
      %p149 = por %p147, %p148
      %p150 = scmp.ne.s32.totalorder %s141, %s142
      %p151 = scmp.eq.s32.totalorder %s26, 0
      %p152 = por %p150, %p151
      %p153 = scmp.ne.s32.totalorder %s141, %s142
      %p154 = scmp.eq.s32.totalorder %s27, 1
      %p155 = por %p153, %p154
      %p157 = scmp.ne.s32.totalorder %s142, %s156
      %p158 = scmp.eq.s32.totalorder %s27, 0
      %p159 = por %p157, %p158
      %s161 = sadd.s32 %s160, 1
      %p164 = scmp.eq.s32.totalorder %s21, 1
      %p165 = scmp.ne.s32.totalorder %s160, %s162
      %p166 = scmp.eq.s32.totalorder %s21, 0
      %p167 = por %p165, %p166
      %p168 = scmp.ne.s32.totalorder %s160, %s162
      %p169 = scmp.eq.s32.totalorder %s26, 1
      %p170 = por %p168, %p169
      %p171 = scmp.ne.s32.totalorder %s162, %s163
      %p172 = scmp.eq.s32.totalorder %s26, 0
      %p173 = por %p171, %p172
      %p174 = scmp.ne.s32.totalorder %s162, %s163
      %p175 = scmp.eq.s32.totalorder %s27, 1
      %p176 = por %p174, %p175
      %p178 = scmp.ne.s32.totalorder %s163, %s177
      %p179 = scmp.eq.s32.totalorder %s27, 0
      %p180 = por %p178, %p179
      %s182 = sadd.s32 %s181, 1
      %p185 = scmp.eq.s32.totalorder %s21, 1
      %p186 = scmp.ne.s32.totalorder %s181, %s183
      %p187 = scmp.eq.s32.totalorder %s21, 0
      %p188 = por %p186, %p187
      %p189 = scmp.ne.s32.totalorder %s181, %s183
      %p190 = scmp.eq.s32.totalorder %s26, 1
      %p191 = por %p189, %p190
      %p192 = scmp.ne.s32.totalorder %s183, %s184
      %p193 = scmp.eq.s32.totalorder %s26, 0
      %p194 = por %p192, %p193
      %p195 = scmp.ne.s32.totalorder %s183, %s184
      %p196 = scmp.eq.s32.totalorder %s27, 1
      %p197 = por %p195, %p196
      %p199 = scmp.ne.s32.totalorder %s184, %s198
      %p200 = scmp.eq.s32.totalorder %s27, 0
      %p201 = por %p199, %p200
      %s203 = sadd.s32 %s202, 1
      %p206 = scmp.eq.s32.totalorder %s21, 1
      %p207 = scmp.ne.s32.totalorder %s202, %s204
      %p208 = scmp.eq.s32.totalorder %s21, 0
      %p209 = por %p207, %p208
      %p210 = scmp.ne.s32.totalorder %s202, %s204
      %p211 = scmp.eq.s32.totalorder %s26, 1
      %p212 = por %p210, %p211
      %p213 = scmp.ne.s32.totalorder %s204, %s205
      %p214 = scmp.eq.s32.totalorder %s26, 0
      %p215 = por %p213, %p214
      %p216 = scmp.ne.s32.totalorder %s204, %s205
      %p217 = scmp.eq.s32.totalorder %s27, 1
      %p218 = por %p216, %p217
      %p220 = scmp.ne.s32.totalorder %s205, %s219
      %p221 = scmp.eq.s32.totalorder %s27, 0
      %p222 = por %p220, %p221
      %s224 = sadd.s32 %s223, 1
      %p227 = scmp.eq.s32.totalorder %s21, 1
      %p228 = scmp.ne.s32.totalorder %s223, %s225
      %p229 = scmp.eq.s32.totalorder %s21, 0
      %p230 = por %p228, %p229
      %p231 = scmp.ne.s32.totalorder %s223, %s225
      %p232 = scmp.eq.s32.totalorder %s26, 1
      %p233 = por %p231, %p232
      %p234 = scmp.ne.s32.totalorder %s225, %s226
      %p235 = scmp.eq.s32.totalorder %s26, 0
      %p236 = por %p234, %p235
      %p237 = scmp.ne.s32.totalorder %s225, %s226
      %p238 = scmp.eq.s32.totalorder %s27, 1
      %p239 = por %p237, %p238
      %p241 = scmp.ne.s32.totalorder %s226, %s240
      %p242 = scmp.eq.s32.totalorder %s27, 0
      %p243 = por %p241, %p242
      %s244 = ssub.s32 %s21, %s28
      %p245 = scmp.eq.s32.totalorder %s244, 0
      %s247 = sadd.s32 %s246, 1
      %s248 = scalar_select %p245, %s246, %s247
      %p251 = pneg %p245
      %p252 = scmp.eq.s32.totalorder %s21, 1
      %p253 = por %p251, %p252
      %p254 = scmp.ne.s32.totalorder %s246, %s249
      %p255 = scmp.eq.s32.totalorder %s21, 0
      %p256 = por %p254, %p255
      %p257 = scmp.ne.s32.totalorder %s246, %s249
      %p258 = scmp.eq.s32.totalorder %s26, 1
      %p259 = por %p257, %p258
      %p260 = scmp.ne.s32.totalorder %s249, %s250
      %p261 = scmp.eq.s32.totalorder %s26, 0
      %p262 = por %p260, %p261
      %p263 = scmp.ne.s32.totalorder %s249, %s250
      %p264 = scmp.eq.s32.totalorder %s27, 1
      %p265 = por %p263, %p264
      %p267 = scmp.ne.s32.totalorder %s250, %s266
      %p268 = scmp.eq.s32.totalorder %s27, 0
      %p269 = por %p267, %p268
      %s270 = ssub.s32 %s21, %s28
      %p271 = scmp.eq.s32.totalorder %s270, 0
      %s273 = sadd.s32 %s272, 1
      %s274 = scalar_select %p271, %s272, %s273
      %p277 = pneg %p271
      %p278 = scmp.eq.s32.totalorder %s21, 1
      %p279 = por %p277, %p278
      %p280 = scmp.ne.s32.totalorder %s272, %s275
      %p281 = scmp.eq.s32.totalorder %s21, 0
      %p282 = por %p280, %p281
      %p283 = scmp.ne.s32.totalorder %s272, %s275
      %p284 = scmp.eq.s32.totalorder %s26, 1
      %p285 = por %p283, %p284
      %p286 = scmp.ne.s32.totalorder %s275, %s276
      %p287 = scmp.eq.s32.totalorder %s26, 0
      %p288 = por %p286, %p287
      %p289 = scmp.ne.s32.totalorder %s275, %s276
      %p290 = scmp.eq.s32.totalorder %s27, 1
      %p291 = por %p289, %p290
      %p293 = scmp.ne.s32.totalorder %s276, %s292
      %p294 = scmp.eq.s32.totalorder %s27, 0
      %p295 = por %p293, %p294
      %p296 = scmp.le.s32.totalorder 1, %s21
      %p297 = scmp.lt.s32.totalorder %s21, 3
      %p298 = pnand %p296, %p297
      %p299 = pneg %p298
      // Predicated region
      $region9: #{texture_scene_forward.1} parent=5 // pred_check
        _
      $region10: #{texture_scene_forward.1} parent=5 // pred_check_branch
        %301 = sbr.rel (%p298) target = $region12
      $region11: #{texture_scene_forward.1} parent=5 // pred_region
        %s302 = ssub.s32 %s21, 1
        // Predicated region
        $region13: #{texture_scene_forward.1} parent=11 // pred_check
          %p303 = pneg %p68
        $region14: #{texture_scene_forward.1} parent=11 // pred_check_branch
          %305 = sbr.rel (%p303) target = $region16
        $region15: #{texture_scene_forward.1} parent=11 // pred_region
          _
        $region16: #{texture_scene_forward.1} parent=11 // pred_fallthru
          _
        // Predicated region
        $region17: #{texture_scene_forward.1} parent=11 // pred_check
          %p306 = pneg %p89
        $region18: #{texture_scene_forward.1} parent=11 // pred_check_branch
          %308 = sbr.rel (%p306) target = $region20
        $region19: #{texture_scene_forward.1} parent=11 // pred_region
          _
        $region20: #{texture_scene_forward.1} parent=11 // pred_fallthru
          _
        // Predicated region
        $region21: #{texture_scene_forward.1} parent=11 // pred_check
          %p309 = pneg %p110
        $region22: #{texture_scene_forward.1} parent=11 // pred_check_branch
          %311 = sbr.rel (%p309) target = $region24
        $region23: #{texture_scene_forward.1} parent=11 // pred_region
          _
        $region24: #{texture_scene_forward.1} parent=11 // pred_fallthru
          _
        // Predicated region
        $region25: #{texture_scene_forward.1} parent=11 // pred_check
          %p312 = pneg %p131
        $region26: #{texture_scene_forward.1} parent=11 // pred_check_branch
          %314 = sbr.rel (%p312) target = $region28
        $region27: #{texture_scene_forward.1} parent=11 // pred_region
          _
        $region28: #{texture_scene_forward.1} parent=11 // pred_fallthru
          _
        // Predicated region
        $region29: #{texture_scene_forward.1} parent=11 // pred_check
          %p315 = pneg %p152
        $region30: #{texture_scene_forward.1} parent=11 // pred_check_branch
          %317 = sbr.rel (%p315) target = $region32
        $region31: #{texture_scene_forward.1} parent=11 // pred_region
          _
        $region32: #{texture_scene_forward.1} parent=11 // pred_fallthru
          _
        // Predicated region
        $region33: #{texture_scene_forward.1} parent=11 // pred_check
          %p318 = pneg %p173
        $region34: #{texture_scene_forward.1} parent=11 // pred_check_branch
          %320 = sbr.rel (%p318) target = $region36
        $region35: #{texture_scene_forward.1} parent=11 // pred_region
          _
        $region36: #{texture_scene_forward.1} parent=11 // pred_fallthru
          _
        // Predicated region
        $region37: #{texture_scene_forward.1} parent=11 // pred_check
          %p321 = pneg %p194
        $region38: #{texture_scene_forward.1} parent=11 // pred_check_branch
          %323 = sbr.rel (%p321) target = $region40
        $region39: #{texture_scene_forward.1} parent=11 // pred_region
          _
        $region40: #{texture_scene_forward.1} parent=11 // pred_fallthru
          _
        // Predicated region
        $region41: #{texture_scene_forward.1} parent=11 // pred_check
          %p324 = pneg %p215
        $region42: #{texture_scene_forward.1} parent=11 // pred_check_branch
          %326 = sbr.rel (%p324) target = $region44
        $region43: #{texture_scene_forward.1} parent=11 // pred_region
          _
        $region44: #{texture_scene_forward.1} parent=11 // pred_fallthru
          _
        // Predicated region
        $region45: #{texture_scene_forward.1} parent=11 // pred_check
          %p327 = pneg %p236
        $region46: #{texture_scene_forward.1} parent=11 // pred_check_branch
          %329 = sbr.rel (%p327) target = $region48
        $region47: #{texture_scene_forward.1} parent=11 // pred_region
          _
        $region48: #{texture_scene_forward.1} parent=11 // pred_fallthru
          _
      $region12: #{texture_scene_forward.1} parent=5 // pred_fallthru
        _
      %p330 = scmp.lt.s32.totalorder %s21, 2
      // Predicated region
      $region49: #{texture_scene_forward.1} parent=5 // pred_check
        %p331 = pneg %p330
      $region50: #{texture_scene_forward.1} parent=5 // pred_check_branch
        %333 = sbr.rel (%p331) target = $region52
      $region51: #{texture_scene_forward.1} parent=5 // pred_region
        // Predicated region
        $region53: #{texture_scene_forward.1} parent=51 // pred_check
          %p334 = pneg %p41
        $region54: #{texture_scene_forward.1} parent=51 // pred_check_branch
          %336 = sbr.rel (%p334) target = $region56
        $region55: #{texture_scene_forward.1} parent=51 // pred_region
          %p337 = scmp.lt.s32.totalorder %s21, 1
          %s338 = scalar_select %p337, %s21, 1
          %s339 = smul.addr %s338, 29
          %s340 = smul.addr %s339, 4
          %s341 = scalar_lea.vmem %s0, %s340
        $region56: #{texture_scene_forward.1} parent=51 // pred_fallthru
          _
      $region52: #{texture_scene_forward.1} parent=5 // pred_fallthru
        _
      %p342 = scmp.le.s32.totalorder 1, %s21
      %p343 = scmp.lt.s32.totalorder %s21, 3
      %p344 = pnand %p342, %p343
      %p345 = pneg %p344
      // Predicated region
      $region57: #{texture_scene_forward.1} parent=5 // pred_check
        _
      $region58: #{texture_scene_forward.1} parent=5 // pred_check_branch
        %347 = sbr.rel (%p344) target = $region60
      $region59: #{texture_scene_forward.1} parent=5 // pred_region
        %s348 = ssub.s32 %s21, 1
        %p349 = scmp.lt.s32.totalorder %s26, 1
        %s350 = scalar_select %p349, %s26, 1
        %s351 = smul.addr %s350, 29
        %s352 = smul.addr %s351, 4
        %s353 = scalar_lea.vmem %s0, %s352
        %p354 = pneg %p47
        %p355 = pneg %p44
        %p356 = pneg %p68
        %p357 = pneg %p65
        %p358 = pneg %p89
        %p359 = pneg %p86
        %p360 = pneg %p110
        %p361 = pneg %p107
        %p362 = pneg %p131
        %p363 = pneg %p128
        %p364 = pneg %p152
        %p365 = pneg %p149
        %p366 = pneg %p173
        %p367 = pneg %p170
        %p368 = pneg %p194
        %p369 = pneg %p191
        %p370 = pneg %p215
        %p371 = pneg %p212
        %p372 = pneg %p236
        %p373 = pneg %p233
        %p374 = pneg %p262
        %p375 = pneg %p259
        %p376 = scmp.lt.s32.totalorder %s26, 1
        %s377 = scalar_select %p376, %s26, 1
        %s378 = smul.addr %s377, 24
        %s379 = smul.addr %s378, 8
        %s380 = scalar_lea.vmem %s10, %s379
        %p381 = pneg %p288
        %p382 = pneg %p285
        %s383 = sand.u32 %s275, 1
        %s384 = scalar_lea.sflag [#allocation5], %s383
        %s385 = sand.u32 %s275, 1
        %s386 = scalar_lea.vmem [#allocation4], %s385
        %p387 = scmp.lt.s32.totalorder %s26, 1
        %s388 = scalar_select %p387, %s26, 1
        %s389 = smul.addr %s388, 29
        %s390 = smul.addr %s389, 4
        %s391 = scalar_lea.vmem %s0, %s390
        %p392 = scmp.lt.s32.totalorder %s26, 1
        %s393 = scalar_select %p392, %s26, 1
        %s394 = smul.addr %s393, 24
        %s395 = smul.addr %s394, 8
        %s396 = scalar_lea.vmem %s10, %s395
        %v398 = vld [vmem:[%s6] sm:$0x1]
        %v399 = vld [vmem:[%s7] sm:$0x1]
        %v400 = vlaneseq
        %v401 = vshrl.u32 %v400, 7
        %v402 = vadd.s32 %v401, 8
        %v403 = vadd.s32 %v401, 16
        %v404 = vadd.s32 %v401, 24
        %v405 = vadd.s32 %v401, 32
        %v406 = vadd.s32 %v401, 40
        %v407 = vadd.s32 %v401, 48
        %v408 = vadd.s32 %v401, 56
        %v409 = vadd.s32 %v401, 64
        %v410 = vadd.s32 %v401, 72
        %v411 = vadd.s32 %v401, 80
        %v412 = vadd.s32 %v401, 88
        %v413 = vadd.s32 %v401, 96
        %v414 = vadd.s32 %v401, 104
        %v415 = vadd.s32 %v401, 112
        %v416 = vadd.s32 %v401, 120
        %v417 = vadd.s32 %v401, 128
        %v418 = vadd.s32 %v401, 136
        %v419 = vadd.s32 %v401, 144
        %v420 = vadd.s32 %v401, 152
        %v421 = vadd.s32 %v401, 160
        %v422 = vadd.s32 %v401, 168
        %v423 = vadd.s32 %v401, 176
        %v424 = vadd.s32 %v401, 184
        %vm425 = vcmp.lt.s32.totalorder %v401, 0
        %v426 = vsub.s32 0, %v401
        %v427 = vsel %vm425, %v426, %v401
        %v428 = vshrl.u32 %v427, 4
        %v429 = vand.u32 %v427, 15
        %v430 = vsub.s32 0, %v429
        %v431 = vsel %vm425, %v430, %v429
        %vm432 = vcmp.lt.s32.totalorder %v402, 0
        %v433 = vsub.s32 0, %v402
        %v434 = vsel %vm432, %v433, %v402
        %v435 = vshrl.u32 %v434, 4
        %v436 = vand.u32 %v434, 15
        %v437 = vsub.s32 0, %v436
        %v438 = vsel %vm432, %v437, %v436
        %vm439 = vcmp.lt.s32.totalorder %v403, 0
        %v440 = vsub.s32 0, %v403
        %v441 = vsel %vm439, %v440, %v403
        %v442 = vshrl.u32 %v441, 4
        %v443 = vand.u32 %v441, 15
        %v444 = vsub.s32 0, %v443
        %v445 = vsel %vm439, %v444, %v443
        %vm446 = vcmp.lt.s32.totalorder %v404, 0
        %v447 = vsub.s32 0, %v404
        %v448 = vsel %vm446, %v447, %v404
        %v449 = vshrl.u32 %v448, 4
        %v450 = vand.u32 %v448, 15
        %v451 = vsub.s32 0, %v450
        %v452 = vsel %vm446, %v451, %v450
        %vm453 = vcmp.lt.s32.totalorder %v405, 0
        %v454 = vsub.s32 0, %v405
        %v455 = vsel %vm453, %v454, %v405
        %v456 = vshrl.u32 %v455, 4
        %v457 = vand.u32 %v455, 15
        %v458 = vsub.s32 0, %v457
        %v459 = vsel %vm453, %v458, %v457
        %vm460 = vcmp.lt.s32.totalorder %v406, 0
        %v461 = vsub.s32 0, %v406
        %v462 = vsel %vm460, %v461, %v406
        %v463 = vshrl.u32 %v462, 4
        %v464 = vand.u32 %v462, 15
        %v465 = vsub.s32 0, %v464
        %v466 = vsel %vm460, %v465, %v464
        %vm467 = vcmp.lt.s32.totalorder %v407, 0
        %v468 = vsub.s32 0, %v407
        %v469 = vsel %vm467, %v468, %v407
        %v470 = vshrl.u32 %v469, 4
        %v471 = vand.u32 %v469, 15
        %v472 = vsub.s32 0, %v471
        %v473 = vsel %vm467, %v472, %v471
        %vm474 = vcmp.lt.s32.totalorder %v408, 0
        %v475 = vsub.s32 0, %v408
        %v476 = vsel %vm474, %v475, %v408
        %v477 = vshrl.u32 %v476, 4
        %v478 = vand.u32 %v476, 15
        %v479 = vsub.s32 0, %v478
        %v480 = vsel %vm474, %v479, %v478
        %vm481 = vcmp.lt.s32.totalorder %v409, 0
        %v482 = vsub.s32 0, %v409
        %v483 = vsel %vm481, %v482, %v409
        %v484 = vshrl.u32 %v483, 4
        %v485 = vand.u32 %v483, 15
        %v486 = vsub.s32 0, %v485
        %v487 = vsel %vm481, %v486, %v485
        %vm488 = vcmp.lt.s32.totalorder %v410, 0
        %v489 = vsub.s32 0, %v410
        %v490 = vsel %vm488, %v489, %v410
        %v491 = vshrl.u32 %v490, 4
        %v492 = vand.u32 %v490, 15
        %v493 = vsub.s32 0, %v492
        %v494 = vsel %vm488, %v493, %v492
        %vm495 = vcmp.lt.s32.totalorder %v411, 0
        %v496 = vsub.s32 0, %v411
        %v497 = vsel %vm495, %v496, %v411
        %v498 = vshrl.u32 %v497, 4
        %v499 = vand.u32 %v497, 15
        %v500 = vsub.s32 0, %v499
        %v501 = vsel %vm495, %v500, %v499
        %vm502 = vcmp.lt.s32.totalorder %v412, 0
        %v503 = vsub.s32 0, %v412
        %v504 = vsel %vm502, %v503, %v412
        %v505 = vshrl.u32 %v504, 4
        %v506 = vand.u32 %v504, 15
        %v507 = vsub.s32 0, %v506
        %v508 = vsel %vm502, %v507, %v506
        %vm509 = vcmp.lt.s32.totalorder %v413, 0
        %v510 = vsub.s32 0, %v413
        %v511 = vsel %vm509, %v510, %v413
        %v512 = vshrl.u32 %v511, 4
        %v513 = vand.u32 %v511, 15
        %v514 = vsub.s32 0, %v513
        %v515 = vsel %vm509, %v514, %v513
        %vm516 = vcmp.lt.s32.totalorder %v414, 0
        %v517 = vsub.s32 0, %v414
        %v518 = vsel %vm516, %v517, %v414
        %v519 = vshrl.u32 %v518, 4
        %v520 = vand.u32 %v518, 15
        %v521 = vsub.s32 0, %v520
        %v522 = vsel %vm516, %v521, %v520
        %vm523 = vcmp.lt.s32.totalorder %v415, 0
        %v524 = vsub.s32 0, %v415
        %v525 = vsel %vm523, %v524, %v415
        %v526 = vshrl.u32 %v525, 4
        %v527 = vand.u32 %v525, 15
        %v528 = vsub.s32 0, %v527
        %v529 = vsel %vm523, %v528, %v527
        %vm530 = vcmp.lt.s32.totalorder %v416, 0
        %v531 = vsub.s32 0, %v416
        %v532 = vsel %vm530, %v531, %v416
        %v533 = vshrl.u32 %v532, 4
        %v534 = vand.u32 %v532, 15
        %v535 = vsub.s32 0, %v534
        %v536 = vsel %vm530, %v535, %v534
        %vm537 = vcmp.lt.s32.totalorder %v417, 0
        %v538 = vsub.s32 0, %v417
        %v539 = vsel %vm537, %v538, %v417
        %v540 = vshrl.u32 %v539, 4
        %v541 = vand.u32 %v539, 15
        %v542 = vsub.s32 0, %v541
        %v543 = vsel %vm537, %v542, %v541
        %vm544 = vcmp.lt.s32.totalorder %v418, 0
        %v545 = vsub.s32 0, %v418
        %v546 = vsel %vm544, %v545, %v418
        %v547 = vshrl.u32 %v546, 4
        %v548 = vand.u32 %v546, 15
        %v549 = vsub.s32 0, %v548
        %v550 = vsel %vm544, %v549, %v548
        %vm551 = vcmp.lt.s32.totalorder %v419, 0
        %v552 = vsub.s32 0, %v419
        %v553 = vsel %vm551, %v552, %v419
        %v554 = vshrl.u32 %v553, 4
        %v555 = vand.u32 %v553, 15
        %v556 = vsub.s32 0, %v555
        %v557 = vsel %vm551, %v556, %v555
        %vm558 = vcmp.lt.s32.totalorder %v420, 0
        %v559 = vsub.s32 0, %v420
        %v560 = vsel %vm558, %v559, %v420
        %v561 = vshrl.u32 %v560, 4
        %v562 = vand.u32 %v560, 15
        %v563 = vsub.s32 0, %v562
        %v564 = vsel %vm558, %v563, %v562
        %vm565 = vcmp.lt.s32.totalorder %v421, 0
        %v566 = vsub.s32 0, %v421
        %v567 = vsel %vm565, %v566, %v421
        %v568 = vshrl.u32 %v567, 4
        %v569 = vand.u32 %v567, 15
        %v570 = vsub.s32 0, %v569
        %v571 = vsel %vm565, %v570, %v569
        %vm572 = vcmp.lt.s32.totalorder %v422, 0
        %v573 = vsub.s32 0, %v422
        %v574 = vsel %vm572, %v573, %v422
        %v575 = vshrl.u32 %v574, 4
        %v576 = vand.u32 %v574, 15
        %v577 = vsub.s32 0, %v576
        %v578 = vsel %vm572, %v577, %v576
        %vm579 = vcmp.lt.s32.totalorder %v423, 0
        %v580 = vsub.s32 0, %v423
        %v581 = vsel %vm579, %v580, %v423
        %v582 = vshrl.u32 %v581, 4
        %v583 = vand.u32 %v581, 15
        %v584 = vsub.s32 0, %v583
        %v585 = vsel %vm579, %v584, %v583
        %vm586 = vcmp.lt.s32.totalorder %v424, 0
        %v587 = vsub.s32 0, %v424
        %v588 = vsel %vm586, %v587, %v424
        %v589 = vshrl.u32 %v588, 4
        %v590 = vand.u32 %v588, 15
        %v591 = vsub.s32 0, %v590
        %v592 = vsel %vm586, %v591, %v590
        %vm593 = vcmp.ne.s32.totalorder %v431, 0
        %vm594 = vcmp.ne.s32.totalorder %v438, 0
        %vm595 = vcmp.ne.s32.totalorder %v445, 0
        %vm596 = vcmp.ne.s32.totalorder %v452, 0
        %vm597 = vcmp.ne.s32.totalorder %v459, 0
        %vm598 = vcmp.ne.s32.totalorder %v466, 0
        %vm599 = vcmp.ne.s32.totalorder %v473, 0
        %vm600 = vcmp.ne.s32.totalorder %v480, 0
        %vm601 = vcmp.ne.s32.totalorder %v487, 0
        %vm602 = vcmp.ne.s32.totalorder %v494, 0
        %vm603 = vcmp.ne.s32.totalorder %v501, 0
        %vm604 = vcmp.ne.s32.totalorder %v508, 0
        %vm605 = vcmp.ne.s32.totalorder %v515, 0
        %vm606 = vcmp.ne.s32.totalorder %v522, 0
        %vm607 = vcmp.ne.s32.totalorder %v529, 0
        %vm608 = vcmp.ne.s32.totalorder %v536, 0
        %vm609 = vcmp.ne.s32.totalorder %v543, 0
        %vm610 = vcmp.ne.s32.totalorder %v550, 0
        %vm611 = vcmp.ne.s32.totalorder %v557, 0
        %vm612 = vcmp.ne.s32.totalorder %v564, 0
        %vm613 = vcmp.ne.s32.totalorder %v571, 0
        %vm614 = vcmp.ne.s32.totalorder %v578, 0
        %vm615 = vcmp.ne.s32.totalorder %v585, 0
        %vm616 = vcmp.ne.s32.totalorder %v592, 0
        %vm617 = vcmp.lt.s32.totalorder %v431, 0
        %vm618 = vcmp.lt.s32.totalorder %v438, 0
        %vm619 = vcmp.lt.s32.totalorder %v445, 0
        %vm620 = vcmp.lt.s32.totalorder %v452, 0
        %vm621 = vcmp.lt.s32.totalorder %v459, 0
        %vm622 = vcmp.lt.s32.totalorder %v466, 0
        %vm623 = vcmp.lt.s32.totalorder %v473, 0
        %vm624 = vcmp.lt.s32.totalorder %v480, 0
        %vm625 = vcmp.lt.s32.totalorder %v487, 0
        %vm626 = vcmp.lt.s32.totalorder %v494, 0
        %vm627 = vcmp.lt.s32.totalorder %v501, 0
        %vm628 = vcmp.lt.s32.totalorder %v508, 0
        %vm629 = vcmp.lt.s32.totalorder %v515, 0
        %vm630 = vcmp.lt.s32.totalorder %v522, 0
        %vm631 = vcmp.lt.s32.totalorder %v529, 0
        %vm632 = vcmp.lt.s32.totalorder %v536, 0
        %vm633 = vcmp.lt.s32.totalorder %v543, 0
        %vm634 = vcmp.lt.s32.totalorder %v550, 0
        %vm635 = vcmp.lt.s32.totalorder %v557, 0
        %vm636 = vcmp.lt.s32.totalorder %v564, 0
        %vm637 = vcmp.lt.s32.totalorder %v571, 0
        %vm638 = vcmp.lt.s32.totalorder %v578, 0
        %vm639 = vcmp.lt.s32.totalorder %v585, 0
        %vm640 = vcmp.lt.s32.totalorder %v592, 0
        %vm641 = vmand %vm617, %vm593
        %vm642 = vmand %vm618, %vm594
        %vm643 = vmand %vm619, %vm595
        %vm644 = vmand %vm620, %vm596
        %vm645 = vmand %vm621, %vm597
        %vm646 = vmand %vm622, %vm598
        %vm647 = vmand %vm623, %vm599
        %vm648 = vmand %vm624, %vm600
        %vm649 = vmand %vm625, %vm601
        %vm650 = vmand %vm626, %vm602
        %vm651 = vmand %vm627, %vm603
        %vm652 = vmand %vm628, %vm604
        %vm653 = vmand %vm629, %vm605
        %vm654 = vmand %vm630, %vm606
        %vm655 = vmand %vm631, %vm607
        %vm656 = vmand %vm632, %vm608
        %vm657 = vmand %vm633, %vm609
        %vm658 = vmand %vm634, %vm610
        %vm659 = vmand %vm635, %vm611
        %vm660 = vmand %vm636, %vm612
        %vm661 = vmand %vm637, %vm613
        %vm662 = vmand %vm638, %vm614
        %vm663 = vmand %vm639, %vm615
        %vm664 = vmand %vm640, %vm616
        %v665 = vadd.s32 %v431, 16
        %v666 = vadd.s32 %v438, 16
        %v667 = vadd.s32 %v445, 16
        %v668 = vadd.s32 %v452, 16
        %v669 = vadd.s32 %v459, 16
        %v670 = vadd.s32 %v466, 16
        %v671 = vadd.s32 %v473, 16
        %v672 = vadd.s32 %v480, 16
        %v673 = vadd.s32 %v487, 16
        %v674 = vadd.s32 %v494, 16
        %v675 = vadd.s32 %v501, 16
        %v676 = vadd.s32 %v508, 16
        %v677 = vadd.s32 %v515, 16
        %v678 = vadd.s32 %v522, 16
        %v679 = vadd.s32 %v529, 16
        %v680 = vadd.s32 %v536, 16
        %v681 = vadd.s32 %v543, 16
        %v682 = vadd.s32 %v550, 16
        %v683 = vadd.s32 %v557, 16
        %v684 = vadd.s32 %v564, 16
        %v685 = vadd.s32 %v571, 16
        %v686 = vadd.s32 %v578, 16
        %v687 = vadd.s32 %v585, 16
        %v688 = vadd.s32 %v592, 16
        %v689 = vsel %vm641, %v665, %v431
        %v690 = vsel %vm642, %v666, %v438
        %v691 = vsel %vm643, %v667, %v445
        %v692 = vsel %vm644, %v668, %v452
        %v693 = vsel %vm645, %v669, %v459
        %v694 = vsel %vm646, %v670, %v466
        %v695 = vsel %vm647, %v671, %v473
        %v696 = vsel %vm648, %v672, %v480
        %v697 = vsel %vm649, %v673, %v487
        %v698 = vsel %vm650, %v674, %v494
        %v699 = vsel %vm651, %v675, %v501
        %v700 = vsel %vm652, %v676, %v508
        %v701 = vsel %vm653, %v677, %v515
        %v702 = vsel %vm654, %v678, %v522
        %v703 = vsel %vm655, %v679, %v529
        %v704 = vsel %vm656, %v680, %v536
        %v705 = vsel %vm657, %v681, %v543
        %v706 = vsel %vm658, %v682, %v550
        %v707 = vsel %vm659, %v683, %v557
        %v708 = vsel %vm660, %v684, %v564
        %v709 = vsel %vm661, %v685, %v571
        %v710 = vsel %vm662, %v686, %v578
        %v711 = vsel %vm663, %v687, %v585
        %v712 = vsel %vm664, %v688, %v592
        %vm713 = vcmp.lt.s32.totalorder %v689, 12
        %vm714 = vcmp.lt.s32.totalorder %v690, 12
        %vm715 = vcmp.lt.s32.totalorder %v691, 12
        %vm716 = vcmp.lt.s32.totalorder %v692, 12
        %vm717 = vcmp.lt.s32.totalorder %v693, 12
        %vm718 = vcmp.lt.s32.totalorder %v694, 12
        %vm719 = vcmp.lt.s32.totalorder %v695, 12
        %vm720 = vcmp.lt.s32.totalorder %v696, 12
        %vm721 = vcmp.lt.s32.totalorder %v697, 12
        %vm722 = vcmp.lt.s32.totalorder %v698, 12
        %vm723 = vcmp.lt.s32.totalorder %v699, 12
        %vm724 = vcmp.lt.s32.totalorder %v700, 12
        %vm725 = vcmp.lt.s32.totalorder %v701, 12
        %vm726 = vcmp.lt.s32.totalorder %v702, 12
        %vm727 = vcmp.lt.s32.totalorder %v703, 12
        %vm728 = vcmp.lt.s32.totalorder %v704, 12
        %vm729 = vcmp.lt.s32.totalorder %v705, 12
        %vm730 = vcmp.lt.s32.totalorder %v706, 12
        %vm731 = vcmp.lt.s32.totalorder %v707, 12
        %vm732 = vcmp.lt.s32.totalorder %v708, 12
        %vm733 = vcmp.lt.s32.totalorder %v709, 12
        %vm734 = vcmp.lt.s32.totalorder %v710, 12
        %vm735 = vcmp.lt.s32.totalorder %v711, 12
        %vm736 = vcmp.lt.s32.totalorder %v712, 12
        %vm737 = vcmask 125952
        %738 = vst.msk [vmem:[#allocation2] sm:$0xf] %vm737, 0
        %739 = vst.msk [vmem:[#allocation2 + $0x4] sm:$0xf] %vm737, 0
        %vm740 = vcmask 122880
        %vm741 = vsmask.f32 256
        %vm742 = vmand %vm740, %vm741
        %v743 = vld [vmem:[#allocation2 + $0x8] sm:$0x1]
        %v744 = vsel %vm742, 0, %v743
        %745 = vst [vmem:[#allocation2 + $0x8] sm:$0x1] %v744
        %vm746 = vcmask 125952
        %vm747 = vsmask.f32 7938
        %vm748 = vmand %vm746, %vm747
        %v749 = vld [vmem:[#allocation2 + $0x68] sm:$0xf]
        %v750 = vsel %vm748, 0, %v749
        %751 = vst [vmem:[#allocation2 + $0x68] sm:$0xf] %v750
        %752 = vst.msk [vmem:[#allocation2 + $0x6c] sm:$0xf] %vm737, 0
        %vm753 = vcmask 122880
        %754 = vst.msk [vmem:[#allocation2 + $0x70] sm:$0x1] %vm753, 0
        %755 = vst.msk [vmem:[#allocation3] sm:$0xf] %vm737, 0
        %756 = vst.msk [vmem:[#allocation3 + $0x4] sm:$0xf] %vm737, 0
        %v757 = vld [vmem:[#allocation3 + $0x8] sm:$0x1]
        %v758 = vsel %vm742, 0, %v757
        %759 = vst [vmem:[#allocation3 + $0x8] sm:$0x1] %v758
        %v760 = vld [vmem:[#allocation3 + $0x68] sm:$0xf]
        %v761 = vsel %vm748, 0, %v760
        %762 = vst [vmem:[#allocation3 + $0x68] sm:$0xf] %v761
        %763 = vst.msk [vmem:[#allocation3 + $0x6c] sm:$0xf] %vm737, 0
        %764 = vst.msk [vmem:[#allocation3 + $0x70] sm:$0x1] %vm753, 0
        %v765 = vld [vmem:[%s391] sm:$0xf]
        %v766 = vld [vmem:[%s391 + $0x4] sm:$0xf]
        %v767 = vld [vmem:[%s391 + $0x8] sm:$0xf]
        %v768 = vld [vmem:[%s391 + $0xc] sm:$0xf]
        %v769 = vld [vmem:[%s391 + $0x10] sm:$0xf]
        %v770 = vld [vmem:[%s391 + $0x14] sm:$0xf]
        %v771 = vld [vmem:[%s391 + $0x18] sm:$0xf]
        %v772 = vld [vmem:[%s391 + $0x1c] sm:$0xf]
        %v773 = vld [vmem:[%s391 + $0x20] sm:$0xf]
        %v774 = vld [vmem:[%s391 + $0x24] sm:$0xf]
        %v775 = vld [vmem:[%s391 + $0x28] sm:$0xf]
        %v776 = vld [vmem:[%s391 + $0x2c] sm:$0xf]
        %v777 = vld [vmem:[%s391 + $0x30] sm:$0xf]
        %v778 = vld [vmem:[%s391 + $0x34] sm:$0xf]
        %v779 = vld [vmem:[%s391 + $0x38] sm:$0xf]
        %v780 = vld [vmem:[%s391 + $0x3c] sm:$0xf]
        %v781 = vld [vmem:[%s391 + $0x40] sm:$0xf]
        %v782 = vld [vmem:[%s391 + $0x44] sm:$0xf]
        %v783 = vld [vmem:[%s391 + $0x48] sm:$0xf]
        %v784 = vld [vmem:[%s391 + $0x4c] sm:$0xf]
        %v785 = vld [vmem:[%s391 + $0x50] sm:$0xf]
        %v786 = vld [vmem:[%s391 + $0x54] sm:$0xf]
        %v787 = vld [vmem:[%s391 + $0x58] sm:$0xf]
        %v788 = vld [vmem:[%s391 + $0x5c] sm:$0xf]
        %v789 = vld [vmem:[%s391 + $0x60] sm:$0x1]
        %v790 = vld [vmem:[%s391] sm:$0xe]
        %v791 = vld [vmem:[%s391 + $0x60] sm:$0xf]
        %v792 = vld [vmem:[%s391 + $0x64] sm:$0xf]
        %v793 = vld [vmem:[%s391 + $0x68] sm:$0x1]
        %v794 = vld [vmem:[%s391 + $0x8] sm:$0xe]
        %v795 = vld [vmem:[%s391 + $0x68] sm:$0xf]
        %v796 = vld [vmem:[%s391 + $0x6c] sm:$0xf]
        %v797 = vld [vmem:[%s391 + $0x70] sm:$0x1]
        %v798 = vld [vmem:[%s391 + $0x10] sm:$0xe]
        %v823 = vunpack.c.l.b16 %v765
        %v824 = vunpack.c.l.b16 %v766
        %v825 = vunpack.c.l.b16 %v767
        %v826 = vunpack.c.l.b16 %v768
        %v827 = vunpack.c.l.b16 %v769
        %v828 = vunpack.c.l.b16 %v770
        %v829 = vunpack.c.l.b16 %v771
        %v830 = vunpack.c.l.b16 %v772
        %v831 = vunpack.c.l.b16 %v773
        %v832 = vunpack.c.l.b16 %v774
        %v833 = vunpack.c.l.b16 %v775
        %v834 = vunpack.c.l.b16 %v776
        %v835 = vunpack.c.l.b16 %v777
        %v836 = vunpack.c.l.b16 %v778
        %v837 = vunpack.c.l.b16 %v779
        %v838 = vunpack.c.l.b16 %v780
        %v839 = vunpack.c.l.b16 %v781
        %v840 = vunpack.c.l.b16 %v782
        %v841 = vunpack.c.l.b16 %v783
        %v842 = vunpack.c.l.b16 %v784
        %v843 = vunpack.c.l.b16 %v785
        %v844 = vunpack.c.l.b16 %v786
        %v845 = vunpack.c.l.b16 %v787
        %v846 = vunpack.c.l.b16 %v788
        %v847 = vpack.c.b16 %v824, %v823
        %v848 = vpack.c.b16 %v826, %v825
        %v849 = vpack.c.b16 %v828, %v827
        %v850 = vpack.c.b16 %v830, %v829
        %v851 = vpack.c.b16 %v832, %v831
        %v852 = vpack.c.b16 %v834, %v833
        %v853 = vpack.c.b16 %v836, %v835
        %v854 = vpack.c.b16 %v838, %v837
        %v855 = vpack.c.b16 %v840, %v839
        %v856 = vpack.c.b16 %v842, %v841
        %v857 = vpack.c.b16 %v844, %v843
        %v858 = vpack.c.b16 %v846, %v845
        %v860 = vunpack.c.l.b16 %v789
        %v861 = vpack.c.b16 %v860, %v860
        %vm862 = vsmask.f32 7424
        %v864 = vshrl.u32 %v847, 16
        %v866 = vshll.u32 %v847, 16
        %v868 = vrot.slane %v866, 1
        %v869 = vor.u32 %v864, %v868
        %v871 = vshll.u32 %v848, 16
        %v873 = vrot.slane %v871, 1
        %v874 = vsel %vm862, %v869, %v873
        %v875 = vshrl.u32 %v848, 16
        %v877 = vor.u32 %v875, %v873
        %v879 = vshll.u32 %v849, 16
        %v881 = vrot.slane %v879, 1
        %v882 = vsel %vm862, %v877, %v881
        %v883 = vshrl.u32 %v849, 16
        %v885 = vor.u32 %v883, %v881
        %v887 = vshll.u32 %v850, 16
        %v889 = vrot.slane %v887, 1
        %v890 = vsel %vm862, %v885, %v889
        %v891 = vshrl.u32 %v850, 16
        %v893 = vor.u32 %v891, %v889
        %v895 = vshll.u32 %v851, 16
        %v897 = vrot.slane %v895, 1
        %v898 = vsel %vm862, %v893, %v897
        %v899 = vshrl.u32 %v851, 16
        %v901 = vor.u32 %v899, %v897
        %v903 = vshll.u32 %v852, 16
        %v905 = vrot.slane %v903, 1
        %v906 = vsel %vm862, %v901, %v905
        %v907 = vshrl.u32 %v852, 16
        %v909 = vor.u32 %v907, %v905
        %v911 = vshll.u32 %v853, 16
        %v913 = vrot.slane %v911, 1
        %v914 = vsel %vm862, %v909, %v913
        %v915 = vshrl.u32 %v853, 16
        %v917 = vor.u32 %v915, %v913
        %v919 = vshll.u32 %v854, 16
        %v921 = vrot.slane %v919, 1
        %v922 = vsel %vm862, %v917, %v921
        %v923 = vshrl.u32 %v854, 16
        %v925 = vor.u32 %v923, %v921
        %v927 = vshll.u32 %v855, 16
        %v929 = vrot.slane %v927, 1
        %v930 = vsel %vm862, %v925, %v929
        %v931 = vshrl.u32 %v855, 16
        %v933 = vor.u32 %v931, %v929
        %v935 = vshll.u32 %v856, 16
        %v937 = vrot.slane %v935, 1
        %v938 = vsel %vm862, %v933, %v937
        %v939 = vshrl.u32 %v856, 16
        %v941 = vor.u32 %v939, %v937
        %v943 = vshll.u32 %v857, 16
        %v945 = vrot.slane %v943, 1
        %v946 = vsel %vm862, %v941, %v945
        %v947 = vshrl.u32 %v857, 16
        %v949 = vor.u32 %v947, %v945
        %v951 = vshll.u32 %v858, 16
        %v953 = vrot.slane %v951, 1
        %v954 = vsel %vm862, %v949, %v953
        %v955 = vshrl.u32 %v858, 16
        %v957 = vor.u32 %v955, %v953
        %v959 = vshll.u32 %v861, 16
        %v961 = vrot.slane %v959, 1
        %v962 = vsel %vm862, %v957, %v961
        %963 = vrot.lane.b32.xlu0 %v874, 32
        %v964 = vpop.permute.xlu0 %963
        %965 = vrot.lane.b32.xlu0 %v882, 32
        %v966 = vpop.permute.xlu0 %965
        %967 = vrot.lane.b32.xlu0 %v890, 32
        %v968 = vpop.permute.xlu0 %967
        %969 = vrot.lane.b32.xlu0 %v898, 32
        %v970 = vpop.permute.xlu0 %969
        %971 = vrot.lane.b32.xlu0 %v906, 32
        %v972 = vpop.permute.xlu0 %971
        %973 = vrot.lane.b32.xlu0 %v914, 32
        %v974 = vpop.permute.xlu0 %973
        %975 = vrot.lane.b32.xlu0 %v922, 32
        %v976 = vpop.permute.xlu0 %975
        %977 = vrot.lane.b32.xlu0 %v930, 32
        %v978 = vpop.permute.xlu0 %977
        %979 = vrot.lane.b32.xlu0 %v938, 32
        %v980 = vpop.permute.xlu0 %979
        %981 = vrot.lane.b32.xlu0 %v946, 32
        %v982 = vpop.permute.xlu0 %981
        %983 = vrot.lane.b32.xlu0 %v954, 32
        %v984 = vpop.permute.xlu0 %983
        %985 = vrot.lane.b32.xlu0 %v962, 32
        %v986 = vpop.permute.xlu0 %985
        %v988 = vunpack.c.l.b16 %v790
        %v989 = vpack.c.b16 %v824, %v988
        %vm990 = vcmask 1046528
        %v991 = vrot.slane %v989, 1
        %v992 = vrot.slane %v848, 1
        %v993 = vsel %vm990, %v991, %v992
        %v994 = vrot.slane %v849, 1
        %v995 = vsel %vm990, %v992, %v994
        %v996 = vrot.slane %v850, 1
        %v997 = vsel %vm990, %v994, %v996
        %v998 = vrot.slane %v851, 1
        %v999 = vsel %vm990, %v996, %v998
        %v1000 = vrot.slane %v852, 1
        %v1001 = vsel %vm990, %v998, %v1000
        %v1002 = vrot.slane %v853, 1
        %v1003 = vsel %vm990, %v1000, %v1002
        %v1004 = vrot.slane %v854, 1
        %v1005 = vsel %vm990, %v1002, %v1004
        %v1006 = vrot.slane %v855, 1
        %v1007 = vsel %vm990, %v1004, %v1006
        %v1008 = vrot.slane %v856, 1
        %v1009 = vsel %vm990, %v1006, %v1008
        %v1010 = vrot.slane %v857, 1
        %v1011 = vsel %vm990, %v1008, %v1010
        %v1012 = vrot.slane %v858, 1
        %v1013 = vsel %vm990, %v1010, %v1012
        %v1014 = vrot.slane %v861, 1
        %v1015 = vsel %vm990, %v1012, %v1014
        %1016 = vrot.lane.b32.xlu0 %v993, 64
        %v1017 = vpop.permute.xlu0 %1016
        %1018 = vrot.lane.b32.xlu0 %v995, 64
        %v1019 = vpop.permute.xlu0 %1018
        %1020 = vrot.lane.b32.xlu0 %v997, 64
        %v1021 = vpop.permute.xlu0 %1020
        %1022 = vrot.lane.b32.xlu0 %v999, 64
        %v1023 = vpop.permute.xlu0 %1022
        %1024 = vrot.lane.b32.xlu0 %v1001, 64
        %v1025 = vpop.permute.xlu0 %1024
        %1026 = vrot.lane.b32.xlu0 %v1003, 64
        %v1027 = vpop.permute.xlu0 %1026
        %1028 = vrot.lane.b32.xlu0 %v1005, 64
        %v1029 = vpop.permute.xlu0 %1028
        %1030 = vrot.lane.b32.xlu0 %v1007, 64
        %v1031 = vpop.permute.xlu0 %1030
        %1032 = vrot.lane.b32.xlu0 %v1009, 64
        %v1033 = vpop.permute.xlu0 %1032
        %1034 = vrot.lane.b32.xlu0 %v1011, 64
        %v1035 = vpop.permute.xlu0 %1034
        %1036 = vrot.lane.b32.xlu0 %v1013, 64
        %v1037 = vpop.permute.xlu0 %1036
        %1038 = vrot.lane.b32.xlu0 %v1015, 64
        %v1039 = vpop.permute.xlu0 %1038
        %v1042 = vunpack.c.l.b16 %v791
        %v1043 = vunpack.c.l.b16 %v792
        %v1044 = vpack.c.b16 %v1043, %v1042
        %1045 = vrot.lane.b32.xlu0 %v848, 96
        %v1046 = vpop.permute.xlu0 %1045
        %1047 = vrot.lane.b32.xlu0 %v849, 96
        %v1048 = vpop.permute.xlu0 %1047
        %1049 = vrot.lane.b32.xlu0 %v850, 96
        %v1050 = vpop.permute.xlu0 %1049
        %1051 = vrot.lane.b32.xlu0 %v851, 96
        %v1052 = vpop.permute.xlu0 %1051
        %1053 = vrot.lane.b32.xlu0 %v852, 96
        %v1054 = vpop.permute.xlu0 %1053
        %1055 = vrot.lane.b32.xlu0 %v853, 96
        %v1056 = vpop.permute.xlu0 %1055
        %1057 = vrot.lane.b32.xlu0 %v854, 96
        %v1058 = vpop.permute.xlu0 %1057
        %1059 = vrot.lane.b32.xlu0 %v855, 96
        %v1060 = vpop.permute.xlu0 %1059
        %1061 = vrot.lane.b32.xlu0 %v856, 96
        %v1062 = vpop.permute.xlu0 %1061
        %1063 = vrot.lane.b32.xlu0 %v857, 96
        %v1064 = vpop.permute.xlu0 %1063
        %1065 = vrot.lane.b32.xlu0 %v858, 96
        %v1066 = vpop.permute.xlu0 %1065
        %1067 = vrot.lane.b32.xlu0 %v1044, 96
        %v1068 = vpop.permute.xlu0 %1067
        %v1070 = vunpack.c.l.b16 %v793
        %v1071 = vpack.c.b16 %v1070, %v1070
        %v1073 = vshll.u32 %v1044, 16
        %v1075 = vrot.slane %v1073, 1
        %v1076 = vsel %vm862, %v957, %v1075
        %v1077 = vshrl.u32 %v1044, 16
        %v1079 = vor.u32 %v1077, %v1075
        %v1081 = vshll.u32 %v1071, 16
        %v1083 = vrot.slane %v1081, 1
        %v1084 = vsel %vm862, %v1079, %v1083
        %v1086 = vunpack.c.l.b16 %v794
        %v1087 = vpack.c.b16 %v826, %v1086
        %v1088 = vrot.slane %v1087, 1
        %v1089 = vsel %vm990, %v1088, %v994
        %v1090 = vrot.slane %v1044, 1
        %v1091 = vsel %vm990, %v1012, %v1090
        %v1092 = vrot.slane %v1071, 1
        %v1093 = vsel %vm990, %v1090, %v1092
        %1094 = vrot.lane.b32.xlu0 %v1089, 32
        %v1095 = vpop.permute.xlu0 %1094
        %1096 = vrot.lane.b32.xlu0 %v997, 32
        %v1097 = vpop.permute.xlu0 %1096
        %1098 = vrot.lane.b32.xlu0 %v999, 32
        %v1099 = vpop.permute.xlu0 %1098
        %1100 = vrot.lane.b32.xlu0 %v1001, 32
        %v1101 = vpop.permute.xlu0 %1100
        %1102 = vrot.lane.b32.xlu0 %v1003, 32
        %v1103 = vpop.permute.xlu0 %1102
        %1104 = vrot.lane.b32.xlu0 %v1005, 32
        %v1105 = vpop.permute.xlu0 %1104
        %1106 = vrot.lane.b32.xlu0 %v1007, 32
        %v1107 = vpop.permute.xlu0 %1106
        %1108 = vrot.lane.b32.xlu0 %v1009, 32
        %v1109 = vpop.permute.xlu0 %1108
        %1110 = vrot.lane.b32.xlu0 %v1011, 32
        %v1111 = vpop.permute.xlu0 %1110
        %1112 = vrot.lane.b32.xlu0 %v1013, 32
        %v1113 = vpop.permute.xlu0 %1112
        %1114 = vrot.lane.b32.xlu0 %v1091, 32
        %v1115 = vpop.permute.xlu0 %1114
        %1116 = vrot.lane.b32.xlu0 %v1093, 32
        %v1117 = vpop.permute.xlu0 %1116
        %v1120 = vunpack.c.l.b16 %v795
        %v1121 = vunpack.c.l.b16 %v796
        %v1122 = vpack.c.b16 %v1121, %v1120
        %1123 = vrot.lane.b32.xlu0 %v849, 64
        %v1124 = vpop.permute.xlu0 %1123
        %1125 = vrot.lane.b32.xlu0 %v850, 64
        %v1126 = vpop.permute.xlu0 %1125
        %1127 = vrot.lane.b32.xlu0 %v851, 64
        %v1128 = vpop.permute.xlu0 %1127
        %1129 = vrot.lane.b32.xlu0 %v852, 64
        %v1130 = vpop.permute.xlu0 %1129
        %1131 = vrot.lane.b32.xlu0 %v853, 64
        %v1132 = vpop.permute.xlu0 %1131
        %1133 = vrot.lane.b32.xlu0 %v854, 64
        %v1134 = vpop.permute.xlu0 %1133
        %1135 = vrot.lane.b32.xlu0 %v855, 64
        %v1136 = vpop.permute.xlu0 %1135
        %1137 = vrot.lane.b32.xlu0 %v856, 64
        %v1138 = vpop.permute.xlu0 %1137
        %1139 = vrot.lane.b32.xlu0 %v857, 64
        %v1140 = vpop.permute.xlu0 %1139
        %1141 = vrot.lane.b32.xlu0 %v858, 64
        %v1142 = vpop.permute.xlu0 %1141
        %1143 = vrot.lane.b32.xlu0 %v1044, 64
        %v1144 = vpop.permute.xlu0 %1143
        %1145 = vrot.lane.b32.xlu0 %v1122, 64
        %v1146 = vpop.permute.xlu0 %1145
        %v1148 = vunpack.c.l.b16 %v797
        %v1149 = vpack.c.b16 %v1148, %v1148
        %v1151 = vshll.u32 %v1122, 16
        %v1153 = vrot.slane %v1151, 1
        %v1154 = vsel %vm862, %v1079, %v1153
        %v1155 = vshrl.u32 %v1122, 16
        %v1157 = vor.u32 %v1155, %v1153
        %v1159 = vshll.u32 %v1149, 16
        %v1161 = vrot.slane %v1159, 1
        %v1162 = vsel %vm862, %v1157, %v1161
        %1163 = vrot.lane.b32.xlu0 %v890, 96
        %v1164 = vpop.permute.xlu0 %1163
        %1165 = vrot.lane.b32.xlu0 %v898, 96
        %v1166 = vpop.permute.xlu0 %1165
        %1167 = vrot.lane.b32.xlu0 %v906, 96
        %v1168 = vpop.permute.xlu0 %1167
        %1169 = vrot.lane.b32.xlu0 %v914, 96
        %v1170 = vpop.permute.xlu0 %1169
        %1171 = vrot.lane.b32.xlu0 %v922, 96
        %v1172 = vpop.permute.xlu0 %1171
        %1173 = vrot.lane.b32.xlu0 %v930, 96
        %v1174 = vpop.permute.xlu0 %1173
        %1175 = vrot.lane.b32.xlu0 %v938, 96
        %v1176 = vpop.permute.xlu0 %1175
        %1177 = vrot.lane.b32.xlu0 %v946, 96
        %v1178 = vpop.permute.xlu0 %1177
        %1179 = vrot.lane.b32.xlu0 %v954, 96
        %v1180 = vpop.permute.xlu0 %1179
        %1181 = vrot.lane.b32.xlu0 %v1076, 96
        %v1182 = vpop.permute.xlu0 %1181
        %1183 = vrot.lane.b32.xlu0 %v1154, 96
        %v1184 = vpop.permute.xlu0 %1183
        %1185 = vrot.lane.b32.xlu0 %v1162, 96
        %v1186 = vpop.permute.xlu0 %1185
        %v1188 = vunpack.c.l.b16 %v798
        %v1189 = vpack.c.b16 %v828, %v1188
        %v1190 = vrot.slane %v1189, 1
        %v1191 = vsel %vm990, %v1190, %v996
        %v1192 = vrot.slane %v1122, 1
        %v1193 = vsel %vm990, %v1090, %v1192
        %v1194 = vrot.slane %v1149, 1
        %v1195 = vsel %vm990, %v1192, %v1194
        %vm1196 = vcmask 261120
        %v1198 = vsel %vm1196, %v847, %v964
        %v1200 = vsel %vm1196, %v848, %v966
        %v1202 = vsel %vm1196, %v849, %v968
        %v1204 = vsel %vm1196, %v850, %v970
        %v1206 = vsel %vm1196, %v851, %v972
        %v1208 = vsel %vm1196, %v852, %v974
        %v1210 = vsel %vm1196, %v853, %v976
        %v1212 = vsel %vm1196, %v854, %v978
        %v1214 = vsel %vm1196, %v855, %v980
        %v1216 = vsel %vm1196, %v856, %v982
        %v1218 = vsel %vm1196, %v857, %v984
        %v1220 = vsel %vm1196, %v858, %v986
        %vm1221 = vcmask 523264
        %v1223 = vsel %vm1221, %v1198, %v1017
        %v1225 = vsel %vm1221, %v1200, %v1019
        %v1227 = vsel %vm1221, %v1202, %v1021
        %v1229 = vsel %vm1221, %v1204, %v1023
        %v1231 = vsel %vm1221, %v1206, %v1025
        %v1233 = vsel %vm1221, %v1208, %v1027
        %v1235 = vsel %vm1221, %v1210, %v1029
        %v1237 = vsel %vm1221, %v1212, %v1031
        %v1239 = vsel %vm1221, %v1214, %v1033
        %v1241 = vsel %vm1221, %v1216, %v1035
        %v1243 = vsel %vm1221, %v1218, %v1037
        %v1245 = vsel %vm1221, %v1220, %v1039
        %vm1246 = vcmask 785408
        %v1248 = vsel %vm1246, %v1223, %v1046
        %v1251 = vsel %vm1246, %v1225, %v1048
        %v1254 = vsel %vm1246, %v1227, %v1050
        %v1257 = vsel %vm1246, %v1229, %v1052
        %v1260 = vsel %vm1246, %v1231, %v1054
        %v1263 = vsel %vm1246, %v1233, %v1056
        %v1266 = vsel %vm1246, %v1235, %v1058
        %v1269 = vsel %vm1246, %v1237, %v1060
        %v1272 = vsel %vm1246, %v1239, %v1062
        %v1275 = vsel %vm1246, %v1241, %v1064
        %v1278 = vsel %vm1246, %v1243, %v1066
        %v1281 = vsel %vm1246, %v1245, %v1068
        %v1285 = vsel %vm1196, %v882, %v1095
        %v1288 = vsel %vm1196, %v890, %v1097
        %v1291 = vsel %vm1196, %v898, %v1099
        %v1294 = vsel %vm1196, %v906, %v1101
        %v1297 = vsel %vm1196, %v914, %v1103
        %v1300 = vsel %vm1196, %v922, %v1105
        %v1303 = vsel %vm1196, %v930, %v1107
        %v1306 = vsel %vm1196, %v938, %v1109
        %v1309 = vsel %vm1196, %v946, %v1111
        %v1312 = vsel %vm1196, %v954, %v1113
        %v1315 = vsel %vm1196, %v1076, %v1115
        %v1318 = vsel %vm1196, %v1084, %v1117
        %v1320 = vsel %vm1221, %v1285, %v1124
        %v1322 = vsel %vm1221, %v1288, %v1126
        %v1324 = vsel %vm1221, %v1291, %v1128
        %v1326 = vsel %vm1221, %v1294, %v1130
        %v1328 = vsel %vm1221, %v1297, %v1132
        %v1330 = vsel %vm1221, %v1300, %v1134
        %v1332 = vsel %vm1221, %v1303, %v1136
        %v1334 = vsel %vm1221, %v1306, %v1138
        %v1336 = vsel %vm1221, %v1309, %v1140
        %v1338 = vsel %vm1221, %v1312, %v1142
        %v1340 = vsel %vm1221, %v1315, %v1144
        %v1342 = vsel %vm1221, %v1318, %v1146
        %v1344 = vsel %vm1246, %v1320, %v1164
        %v1347 = vsel %vm1246, %v1322, %v1166
        %v1350 = vsel %vm1246, %v1324, %v1168
        %v1353 = vsel %vm1246, %v1326, %v1170
        %v1356 = vsel %vm1246, %v1328, %v1172
        %v1359 = vsel %vm1246, %v1330, %v1174
        %v1362 = vsel %vm1246, %v1332, %v1176
        %v1365 = vsel %vm1246, %v1334, %v1178
        %v1368 = vsel %vm1246, %v1336, %v1180
        %v1371 = vsel %vm1246, %v1338, %v1182
        %v1374 = vsel %vm1246, %v1340, %v1184
        %v1377 = vsel %vm1246, %v1342, %v1186
        %v1379 = vld [vmem:[%s1] sm:$0xf]
        %v1380 = vld [vmem:[%s1 + $0x4] sm:$0xf]
        %v1381 = vld [vmem:[%s1 + $0x8] sm:$0xf]
        %v1382 = vld [vmem:[%s1 + $0xc] sm:$0xf]
        %v1383 = vld [vmem:[%s1 + $0x10] sm:$0xf]
        %v1384 = vld [vmem:[%s1 + $0x14] sm:$0xf]
        %v1385 = vld [vmem:[%s1 + $0x18] sm:$0xf]
        %v1386 = vld [vmem:[%s1 + $0x1c] sm:$0xf]
        %v1387 = vld [vmem:[%s1 + $0x20] sm:$0xf]
        %v1388 = vld [vmem:[%s1 + $0x24] sm:$0xf]
        %v1389 = vld [vmem:[%s1 + $0x28] sm:$0xf]
        %v1390 = vld [vmem:[%s1 + $0x2c] sm:$0xf]
        %v1391 = vld [vmem:[%s1 + $0x30] sm:$0xf]
        %v1392 = vld [vmem:[%s1 + $0x34] sm:$0xf]
        %v1393 = vld [vmem:[%s1 + $0x38] sm:$0xf]
        %v1394 = vld [vmem:[%s1 + $0x3c] sm:$0xf]
        %v1395 = vld [vmem:[%s1 + $0x40] sm:$0xf]
        %v1396 = vld [vmem:[%s1 + $0x44] sm:$0xf]
        %v1397 = vld [vmem:[%s1 + $0x48] sm:$0xf]
        %v1398 = vld [vmem:[%s1 + $0x4c] sm:$0xf]
        %v1399 = vld [vmem:[%s1 + $0x50] sm:$0xf]
        %v1400 = vld [vmem:[%s1 + $0x54] sm:$0xf]
        %v1401 = vld [vmem:[%s1 + $0x58] sm:$0xf]
        %v1402 = vld [vmem:[%s1 + $0x5c] sm:$0xf]
        %v1403 = vld [vmem:[%s1 + $0x60] sm:$0xf]
        %v1404 = vld [vmem:[%s1 + $0x64] sm:$0xf]
        %v1405 = vld [vmem:[%s1 + $0x68] sm:$0xf]
        %v1406 = vld [vmem:[%s1 + $0x6c] sm:$0xf]
        %v1407 = vld [vmem:[%s1 + $0x70] sm:$0xf]
        %v1408 = vld [vmem:[%s1 + $0x74] sm:$0xf]
        %v1409 = vld [vmem:[%s1 + $0x78] sm:$0xf]
        %v1410 = vld [vmem:[%s1 + $0x7c] sm:$0xf]
        %v1411 = vld [vmem:[%s1 + $0x80] sm:$0xf]
        %v1412 = vld [vmem:[%s1 + $0x84] sm:$0xf]
        %v1413 = vld [vmem:[%s1 + $0x88] sm:$0xf]
        %v1414 = vld [vmem:[%s1 + $0x8c] sm:$0xf]
        %v1451 = vunpack.c.l.b16 %v1379
        %v1452 = vunpack.c.l.b16 %v1380
        %v1453 = vunpack.c.l.b16 %v1381
        %v1454 = vunpack.c.l.b16 %v1382
        %v1455 = vunpack.c.l.b16 %v1383
        %v1456 = vunpack.c.l.b16 %v1384
        %v1457 = vunpack.c.l.b16 %v1385
        %v1458 = vunpack.c.l.b16 %v1386
        %v1459 = vunpack.c.l.b16 %v1387
        %v1460 = vunpack.c.l.b16 %v1388
        %v1461 = vunpack.c.l.b16 %v1389
        %v1462 = vunpack.c.l.b16 %v1390
        %v1463 = vunpack.c.l.b16 %v1391
        %v1464 = vunpack.c.l.b16 %v1392
        %v1465 = vunpack.c.l.b16 %v1393
        %v1466 = vunpack.c.l.b16 %v1394
        %v1467 = vunpack.c.l.b16 %v1395
        %v1468 = vunpack.c.l.b16 %v1396
        %v1469 = vunpack.c.l.b16 %v1397
        %v1470 = vunpack.c.l.b16 %v1398
        %v1471 = vunpack.c.l.b16 %v1399
        %v1472 = vunpack.c.l.b16 %v1400
        %v1473 = vunpack.c.l.b16 %v1401
        %v1474 = vunpack.c.l.b16 %v1402
        %v1475 = vunpack.c.l.b16 %v1403
        %v1476 = vunpack.c.l.b16 %v1404
        %v1477 = vunpack.c.l.b16 %v1405
        %v1478 = vunpack.c.l.b16 %v1406
        %v1479 = vunpack.c.l.b16 %v1407
        %v1480 = vunpack.c.l.b16 %v1408
        %v1481 = vunpack.c.l.b16 %v1409
        %v1482 = vunpack.c.l.b16 %v1410
        %v1483 = vunpack.c.l.b16 %v1411
        %v1484 = vunpack.c.l.b16 %v1412
        %v1485 = vunpack.c.l.b16 %v1413
        %v1486 = vunpack.c.l.b16 %v1414
        %v1487 = vpack.c.b16 %v1452, %v1451
        %v1488 = vpack.c.b16 %v1454, %v1453
        %v1489 = vpack.c.b16 %v1456, %v1455
        %v1490 = vpack.c.b16 %v1458, %v1457
        %v1491 = vpack.c.b16 %v1460, %v1459
        %v1492 = vpack.c.b16 %v1462, %v1461
        %v1493 = vpack.c.b16 %v1464, %v1463
        %v1494 = vpack.c.b16 %v1466, %v1465
        %v1495 = vpack.c.b16 %v1468, %v1467
        %v1496 = vpack.c.b16 %v1470, %v1469
        %v1497 = vpack.c.b16 %v1472, %v1471
        %v1498 = vpack.c.b16 %v1474, %v1473
        %v1499 = vpack.c.b16 %v1476, %v1475
        %v1500 = vpack.c.b16 %v1478, %v1477
        %v1501 = vpack.c.b16 %v1480, %v1479
        %v1502 = vpack.c.b16 %v1482, %v1481
        %v1503 = vpack.c.b16 %v1484, %v1483
        %v1504 = vpack.c.b16 %v1486, %v1485
        %v1524 = vsel %vm1196, %v1191, 0
        %v1527 = vsel %vm1196, %v999, 0
        %v1530 = vsel %vm1196, %v1001, 0
        %v1533 = vsel %vm1196, %v1003, 0
        %v1536 = vsel %vm1196, %v1005, 0
        %v1539 = vsel %vm1196, %v1007, 0
        %v1542 = vsel %vm1196, %v1009, 0
        %v1545 = vsel %vm1196, %v1011, 0
        %v1548 = vsel %vm1196, %v1013, 0
        %v1551 = vsel %vm1196, %v1091, 0
        %v1554 = vsel %vm1196, %v1193, 0
        %v1557 = vsel %vm1196, %v1195, 0
        %1559 = vmatprep.subr.bf16.mxu0 0
        %1560 = vmatpush1.bf16.msra.mxu0 %v1487
        %1561 = vmatprep.subr.bf16.mxu0 0
        %1562 = vmatpush1.bf16.msra.mxu0 %v1488
        %1563 = vmatprep.subr.bf16.mxu0 0
        %1564 = vmatpush1.bf16.msra.mxu0 %v1489
        %1565 = vmatprep.subr.bf16.mxu0 0
        %1566 = vmatpush1.bf16.msra.mxu0 %v1490
        %1567 = vmatprep.subr.bf16.mxu0 0
        %1568 = vmatpush1.bf16.msra.mxu0 %v1491
        %1569 = vmatprep.subr.bf16.mxu0 0
        %1570 = vmatpush1.bf16.msra.mxu0 %v1492
        %1571 = vmatprep.subr.bf16.mxu0 0
        %1572 = vmatpush1.bf16.msra.mxu0 %v1493
        %1573 = vmatprep.subr.bf16.mxu0 0
        %1574 = vmatpush1.bf16.msra.mxu0 %v1494
        %1575 = vmatprep.subr.bf16.mxu0 0
        %1576 = vmatpush1.bf16.msra.mxu0 %v1495
        %1577 = vmatprep.subr.bf16.mxu0 0
        %1578 = vmatpush1.bf16.msra.mxu0 %v1496
        %1579 = vmatprep.subr.bf16.mxu0 0
        %1580 = vmatpush1.bf16.msra.mxu0 %v1497
        %1581 = vmatprep.subr.bf16.mxu0 0
        %1582 = vmatpush1.bf16.msra.mxu0 %v1498
        %1583 = vmatprep.subr.bf16.mxu0 0
        %1584 = vmatpush1.bf16.msra.mxu0 %v1499
        %1585 = vmatprep.subr.bf16.mxu0 0
        %1586 = vmatpush1.bf16.msra.mxu0 %v1500
        %1587 = vmatprep.subr.bf16.mxu0 0
        %1588 = vmatpush1.bf16.msra.mxu0 %v1501
        %1589 = vmatprep.subr.bf16.mxu0 0
        %1590 = vmatpush1.bf16.msra.mxu0 %v1502
        %1591 = vmatprep.mubr.bf16.mxu0 %v1344
        %1592 = vmatmul.mubr.bf16.gmra.mrb[0].mxu0 %v1248
        %v1593 = vpop.f32.mrb[0].mxu0
        %v1594 = vadd.f32 0.0, %v1593
        %v1595 = vpop.f32.mrb[0].mxu0
        %v1596 = vpop.f32.mrb[0].mxu0
        %v1597 = vadd.f32 0.0, %v1596
        %v1598 = vpop.f32.mrb[0].mxu0
        %1599 = vmatprep.mubr.bf16.mxu0 %v1347
        %1600 = vmatmul.mubr.bf16.gmra.mrb[0].mxu0 %v1251
        %v1601 = vpop.f32.mrb[0].mxu0
        %v1602 = vadd.f32 0.0, %v1601
        %v1603 = vpop.f32.mrb[0].mxu0
        %v1604 = vpop.f32.mrb[0].mxu0
        %v1605 = vadd.f32 0.0, %v1604
        %v1606 = vpop.f32.mrb[0].mxu0
        %1607 = vmatprep.mubr.bf16.mxu0 %v1350
        %1608 = vmatmul.mubr.bf16.gmra.mrb[0].mxu0 %v1254
        %v1609 = vpop.f32.mrb[0].mxu0
        %v1610 = vadd.f32 0.0, %v1609
        %v1611 = vpop.f32.mrb[0].mxu0
        %v1612 = vpop.f32.mrb[0].mxu0
        %v1613 = vadd.f32 0.0, %v1612
        %v1614 = vpop.f32.mrb[0].mxu0
        %1615 = vmatprep.mubr.bf16.mxu0 %v1353
        %1616 = vmatmul.mubr.bf16.gmra.mrb[0].mxu0 %v1257
        %v1617 = vpop.f32.mrb[0].mxu0
        %v1618 = vadd.f32 0.0, %v1617
        %v1619 = vpop.f32.mrb[0].mxu0
        %v1620 = vpop.f32.mrb[0].mxu0
        %v1621 = vadd.f32 0.0, %v1620
        %v1622 = vpop.f32.mrb[0].mxu0
        %1623 = vmatprep.mubr.bf16.mxu0 %v1356
        %1624 = vmatmul.mubr.bf16.gmra.mrb[0].mxu0 %v1260
        %v1625 = vpop.f32.mrb[0].mxu0
        %v1626 = vadd.f32 0.0, %v1625
        %v1627 = vpop.f32.mrb[0].mxu0
        %v1628 = vpop.f32.mrb[0].mxu0
        %v1629 = vadd.f32 0.0, %v1628
        %v1630 = vpop.f32.mrb[0].mxu0
        %1631 = vmatprep.mubr.bf16.mxu0 %v1359
        %1632 = vmatmul.mubr.bf16.gmra.mrb[0].mxu0 %v1263
        %v1633 = vpop.f32.mrb[0].mxu0
        %v1634 = vadd.f32 0.0, %v1633
        %v1635 = vpop.f32.mrb[0].mxu0
        %v1636 = vpop.f32.mrb[0].mxu0
        %v1637 = vadd.f32 0.0, %v1636
        %v1638 = vpop.f32.mrb[0].mxu0
        %1639 = vmatprep.mubr.bf16.mxu0 %v1362
        %1640 = vmatmul.mubr.bf16.gmra.mrb[0].mxu0 %v1266
        %v1641 = vpop.f32.mrb[0].mxu0
        %v1642 = vadd.f32 0.0, %v1641
        %v1643 = vpop.f32.mrb[0].mxu0
        %v1644 = vpop.f32.mrb[0].mxu0
        %v1645 = vadd.f32 0.0, %v1644
        %v1646 = vpop.f32.mrb[0].mxu0
        %1647 = vmatprep.mubr.bf16.mxu0 %v1365
        %1648 = vmatmul.mubr.bf16.gmra.mrb[0].mxu0 %v1269
        %v1649 = vpop.f32.mrb[0].mxu0
        %v1650 = vadd.f32 0.0, %v1649
        %v1651 = vpop.f32.mrb[0].mxu0
        %v1652 = vpop.f32.mrb[0].mxu0
        %v1653 = vadd.f32 0.0, %v1652
        %v1654 = vpop.f32.mrb[0].mxu0
        %1655 = vmatprep.mubr.bf16.mxu0 %v1368
        %1656 = vmatmul.mubr.bf16.gmra.mrb[0].mxu0 %v1272
        %v1657 = vpop.f32.mrb[0].mxu0
        %v1658 = vadd.f32 0.0, %v1657
        %v1659 = vpop.f32.mrb[0].mxu0
        %v1660 = vpop.f32.mrb[0].mxu0
        %v1661 = vadd.f32 0.0, %v1660
        %v1662 = vpop.f32.mrb[0].mxu0
        %1663 = vmatprep.mubr.bf16.mxu0 %v1371
        %1664 = vmatmul.mubr.bf16.gmra.mrb[0].mxu0 %v1275
        %v1665 = vpop.f32.mrb[0].mxu0
        %v1666 = vadd.f32 0.0, %v1665
        %v1667 = vpop.f32.mrb[0].mxu0
        %v1668 = vpop.f32.mrb[0].mxu0
        %v1669 = vadd.f32 0.0, %v1668
        %v1670 = vpop.f32.mrb[0].mxu0
        %1671 = vmatprep.mubr.bf16.mxu0 %v1374
        %1672 = vmatmul.mubr.bf16.gmra.mrb[0].mxu0 %v1278
        %v1673 = vpop.f32.mrb[0].mxu0
        %v1674 = vadd.f32 0.0, %v1673
        %v1675 = vpop.f32.mrb[0].mxu0
        %v1676 = vpop.f32.mrb[0].mxu0
        %v1677 = vadd.f32 0.0, %v1676
        %v1678 = vpop.f32.mrb[0].mxu0
        %1679 = vmatprep.mubr.bf16.mxu0 %v1377
        %1680 = vmatmul.mubr.bf16.gmra.mrb[0].mxu0 %v1281
        %v1681 = vpop.f32.mrb[0].mxu0
        %v1682 = vadd.f32 0.0, %v1681
        %v1683 = vpop.f32.mrb[0].mxu0
        %v1684 = vpop.f32.mrb[0].mxu0
        %v1685 = vadd.f32 0.0, %v1684
        %v1686 = vpop.f32.mrb[0].mxu0
        %1687 = vdwg.mxu0
        %1688 = vmatprep.subr.bf16.mxu0 0
        %1689 = vmatpush1.bf16.msra.mxu0 %v1503
        %1690 = vmatprep.subr.bf16.mxu0 0
        %1691 = vmatpush1.bf16.msra.mxu0 %v1504
        %1692 = vmatprep.subr.bf16.mxu0 0
        %1693 = vmatpush1.bf16.msra.mxu0 0
        %1694 = vmatprep.subr.bf16.mxu0 0
        %1695 = vmatpush1.bf16.msra.mxu0 0
        %1696 = vmatprep.subr.bf16.mxu0 0
        %1697 = vmatpush1.bf16.msra.mxu0 0
        %1698 = vmatprep.subr.bf16.mxu0 0
        %1699 = vmatpush1.bf16.msra.mxu0 0
        %1700 = vmatprep.subr.bf16.mxu0 0
        %1701 = vmatpush1.bf16.msra.mxu0 0
        %1702 = vmatprep.subr.bf16.mxu0 0
        %1703 = vmatpush1.bf16.msra.mxu0 0
        %1704 = vmatprep.subr.bf16.mxu0 0
        %1705 = vmatpush1.bf16.msra.mxu0 0
        %1706 = vmatprep.subr.bf16.mxu0 0
        %1707 = vmatpush1.bf16.msra.mxu0 0
        %1708 = vmatprep.subr.bf16.mxu0 0
        %1709 = vmatpush1.bf16.msra.mxu0 0
        %1710 = vmatprep.subr.bf16.mxu0 0
        %1711 = vmatpush1.bf16.msra.mxu0 0
        %1712 = vmatprep.subr.bf16.mxu0 0
        %1713 = vmatpush1.bf16.msra.mxu0 0
        %1714 = vmatprep.subr.bf16.mxu0 0
        %1715 = vmatpush1.bf16.msra.mxu0 0
        %1716 = vmatprep.subr.bf16.mxu0 0
        %1717 = vmatpush1.bf16.msra.mxu0 0
        %1718 = vmatprep.subr.bf16.mxu0 0
        %1719 = vmatpush1.bf16.msra.mxu0 0
        %1720 = vmatprep.mubr.bf16.mxu0 0
        %1721 = vmatmul.mubr.bf16.gmra.mrb[0].mxu0 %v1524
        %v1722 = vpop.f32.mrb[0].mxu0
        %v1723 = vadd.f32 %v1594, %v1722
        %v1724 = vpop.f32.mrb[0].mxu0
        %v1725 = vpop.f32.mrb[0].mxu0
        %v1726 = vadd.f32 %v1597, %v1725
        %v1727 = vpop.f32.mrb[0].mxu0
        %1728 = vmatprep.mubr.bf16.mxu0 0
        %1729 = vmatmul.mubr.bf16.gmra.mrb[0].mxu0 %v1527
        %v1730 = vpop.f32.mrb[0].mxu0
        %v1731 = vadd.f32 %v1602, %v1730
        %v1732 = vpop.f32.mrb[0].mxu0
        %v1733 = vpop.f32.mrb[0].mxu0
        %v1734 = vadd.f32 %v1605, %v1733
        %v1735 = vpop.f32.mrb[0].mxu0
        %1736 = vmatprep.mubr.bf16.mxu0 0
        %1737 = vmatmul.mubr.bf16.gmra.mrb[0].mxu0 %v1530
        %v1738 = vpop.f32.mrb[0].mxu0
        %v1739 = vadd.f32 %v1610, %v1738
        %v1740 = vpop.f32.mrb[0].mxu0
        %v1741 = vpop.f32.mrb[0].mxu0
        %v1742 = vadd.f32 %v1613, %v1741
        %v1743 = vpop.f32.mrb[0].mxu0
        %1744 = vmatprep.mubr.bf16.mxu0 0
        %1745 = vmatmul.mubr.bf16.gmra.mrb[0].mxu0 %v1533
        %v1746 = vpop.f32.mrb[0].mxu0
        %v1747 = vadd.f32 %v1618, %v1746
        %v1748 = vpop.f32.mrb[0].mxu0
        %v1749 = vpop.f32.mrb[0].mxu0
        %v1750 = vadd.f32 %v1621, %v1749
        %v1751 = vpop.f32.mrb[0].mxu0
        %1752 = vmatprep.mubr.bf16.mxu0 0
        %1753 = vmatmul.mubr.bf16.gmra.mrb[0].mxu0 %v1536
        %v1754 = vpop.f32.mrb[0].mxu0
        %v1755 = vadd.f32 %v1626, %v1754
        %v1756 = vpop.f32.mrb[0].mxu0
        %v1757 = vpop.f32.mrb[0].mxu0
        %v1758 = vadd.f32 %v1629, %v1757
        %v1759 = vpop.f32.mrb[0].mxu0
        %1760 = vmatprep.mubr.bf16.mxu0 0
        %1761 = vmatmul.mubr.bf16.gmra.mrb[0].mxu0 %v1539
        %v1762 = vpop.f32.mrb[0].mxu0
        %v1763 = vadd.f32 %v1634, %v1762
        %v1764 = vpop.f32.mrb[0].mxu0
        %v1765 = vpop.f32.mrb[0].mxu0
        %v1766 = vadd.f32 %v1637, %v1765
        %v1767 = vpop.f32.mrb[0].mxu0
        %1768 = vmatprep.mubr.bf16.mxu0 0
        %1769 = vmatmul.mubr.bf16.gmra.mrb[0].mxu0 %v1542
        %v1770 = vpop.f32.mrb[0].mxu0
        %v1771 = vadd.f32 %v1642, %v1770
        %v1772 = vpop.f32.mrb[0].mxu0
        %v1773 = vpop.f32.mrb[0].mxu0
        %v1774 = vadd.f32 %v1645, %v1773
        %v1775 = vpop.f32.mrb[0].mxu0
        %1776 = vmatprep.mubr.bf16.mxu0 0
        %1777 = vmatmul.mubr.bf16.gmra.mrb[0].mxu0 %v1545
        %v1778 = vpop.f32.mrb[0].mxu0
        %v1779 = vadd.f32 %v1650, %v1778
        %v1780 = vpop.f32.mrb[0].mxu0
        %v1781 = vpop.f32.mrb[0].mxu0
        %v1782 = vadd.f32 %v1653, %v1781
        %v1783 = vpop.f32.mrb[0].mxu0
        %1784 = vmatprep.mubr.bf16.mxu0 0
        %1785 = vmatmul.mubr.bf16.gmra.mrb[0].mxu0 %v1548
        %v1786 = vpop.f32.mrb[0].mxu0
        %v1787 = vadd.f32 %v1658, %v1786
        %v1788 = vpop.f32.mrb[0].mxu0
        %v1789 = vpop.f32.mrb[0].mxu0
        %v1790 = vadd.f32 %v1661, %v1789
        %v1791 = vpop.f32.mrb[0].mxu0
        %1792 = vmatprep.mubr.bf16.mxu0 0
        %1793 = vmatmul.mubr.bf16.gmra.mrb[0].mxu0 %v1551
        %v1794 = vpop.f32.mrb[0].mxu0
        %v1795 = vadd.f32 %v1666, %v1794
        %v1796 = vpop.f32.mrb[0].mxu0
        %v1797 = vpop.f32.mrb[0].mxu0
        %v1798 = vadd.f32 %v1669, %v1797
        %v1799 = vpop.f32.mrb[0].mxu0
        %1800 = vmatprep.mubr.bf16.mxu0 0
        %1801 = vmatmul.mubr.bf16.gmra.mrb[0].mxu0 %v1554
        %v1802 = vpop.f32.mrb[0].mxu0
        %v1803 = vadd.f32 %v1674, %v1802
        %v1804 = vpop.f32.mrb[0].mxu0
        %v1805 = vpop.f32.mrb[0].mxu0
        %v1806 = vadd.f32 %v1677, %v1805
        %v1807 = vpop.f32.mrb[0].mxu0
        %1808 = vmatprep.mubr.bf16.mxu0 0
        %1809 = vmatmul.mubr.bf16.gmra.mrb[0].mxu0 %v1557
        %v1810 = vpop.f32.mrb[0].mxu0
        %v1811 = vadd.f32 %v1682, %v1810
        %v1812 = vpop.f32.mrb[0].mxu0
        %v1813 = vpop.f32.mrb[0].mxu0
        %v1814 = vadd.f32 %v1685, %v1813
        %v1815 = vpop.f32.mrb[0].mxu0
        %1816 = vdwg.mxu0
        %v1818 = vlaneseq
        %v1819 = vshrl.u32 %v1818, 7
        %v1820 = vsub.s32 0, %v1819
        %v1821 = vrot.slane %v398, %v1820
        %v1823 = vmul.f32 %v1723, %v1821
        %v1824 = vmul.f32 %v1726, %v1821
        %v1825 = vmul.f32 %v1731, %v1821
        %v1826 = vmul.f32 %v1734, %v1821
        %v1827 = vmul.f32 %v1739, %v1821
        %v1828 = vmul.f32 %v1742, %v1821
        %v1829 = vmul.f32 %v1747, %v1821
        %v1830 = vmul.f32 %v1750, %v1821
        %v1831 = vmul.f32 %v1755, %v1821
        %v1832 = vmul.f32 %v1758, %v1821
        %v1833 = vmul.f32 %v1763, %v1821
        %v1834 = vmul.f32 %v1766, %v1821
        %v1835 = vmul.f32 %v1771, %v1821
        %v1836 = vmul.f32 %v1774, %v1821
        %v1837 = vmul.f32 %v1779, %v1821
        %v1838 = vmul.f32 %v1782, %v1821
        %v1839 = vmul.f32 %v1787, %v1821
        %v1840 = vmul.f32 %v1790, %v1821
        %v1841 = vmul.f32 %v1795, %v1821
        %v1842 = vmul.f32 %v1798, %v1821
        %v1843 = vmul.f32 %v1803, %v1821
        %v1844 = vmul.f32 %v1806, %v1821
        %v1845 = vmul.f32 %v1811, %v1821
        %v1846 = vmul.f32 %v1814, %v1821
        %v1848 = vlaneseq
        %v1849 = vshrl.u32 %v1848, 7
        %v1850 = vsub.s32 0, %v1849
        %v1851 = vrot.slane %v399, %v1850
        %v1853 = vadd.f32 %v1823, %v1851
        %v1854 = vadd.f32 %v1824, %v1851
        %v1855 = vadd.f32 %v1825, %v1851
        %v1856 = vadd.f32 %v1826, %v1851
        %v1857 = vadd.f32 %v1827, %v1851
        %v1858 = vadd.f32 %v1828, %v1851
        %v1859 = vadd.f32 %v1829, %v1851
        %v1860 = vadd.f32 %v1830, %v1851
        %v1861 = vadd.f32 %v1831, %v1851
        %v1862 = vadd.f32 %v1832, %v1851
        %v1863 = vadd.f32 %v1833, %v1851
        %v1864 = vadd.f32 %v1834, %v1851
        %v1865 = vadd.f32 %v1835, %v1851
        %v1866 = vadd.f32 %v1836, %v1851
        %v1867 = vadd.f32 %v1837, %v1851
        %v1868 = vadd.f32 %v1838, %v1851
        %v1869 = vadd.f32 %v1839, %v1851
        %v1870 = vadd.f32 %v1840, %v1851
        %v1871 = vadd.f32 %v1841, %v1851
        %v1872 = vadd.f32 %v1842, %v1851
        %v1873 = vadd.f32 %v1843, %v1851
        %v1874 = vadd.f32 %v1844, %v1851
        %v1875 = vadd.f32 %v1845, %v1851
        %v1876 = vadd.f32 %v1846, %v1851
        %v1877 = vmax.f32 %v1853, 0.0
        %v1878 = vmax.f32 %v1854, 0.0
        %v1879 = vmax.f32 %v1855, 0.0
        %v1880 = vmax.f32 %v1856, 0.0
        %v1881 = vmax.f32 %v1857, 0.0
        %v1882 = vmax.f32 %v1858, 0.0
        %v1883 = vmax.f32 %v1859, 0.0
        %v1884 = vmax.f32 %v1860, 0.0
        %v1885 = vmax.f32 %v1861, 0.0
        %v1886 = vmax.f32 %v1862, 0.0
        %v1887 = vmax.f32 %v1863, 0.0
        %v1888 = vmax.f32 %v1864, 0.0
        %v1889 = vmax.f32 %v1865, 0.0
        %v1890 = vmax.f32 %v1866, 0.0
        %v1891 = vmax.f32 %v1867, 0.0
        %v1892 = vmax.f32 %v1868, 0.0
        %v1893 = vmax.f32 %v1869, 0.0
        %v1894 = vmax.f32 %v1870, 0.0
        %v1895 = vmax.f32 %v1871, 0.0
        %v1896 = vmax.f32 %v1872, 0.0
        %v1897 = vmax.f32 %v1873, 0.0
        %v1898 = vmax.f32 %v1874, 0.0
        %v1899 = vmax.f32 %v1875, 0.0
        %v1900 = vmax.f32 %v1876, 0.0
        %v1901 = vsel %vm713, %v1877, 0.0
        %v1902 = vsel %vm714, %v1878, 0.0
        %v1903 = vsel %vm715, %v1879, 0.0
        %v1904 = vsel %vm716, %v1880, 0.0
        %v1905 = vsel %vm717, %v1881, 0.0
        %v1906 = vsel %vm718, %v1882, 0.0
        %v1907 = vsel %vm719, %v1883, 0.0
        %v1908 = vsel %vm720, %v1884, 0.0
        %v1909 = vsel %vm721, %v1885, 0.0
        %v1910 = vsel %vm722, %v1886, 0.0
        %v1911 = vsel %vm723, %v1887, 0.0
        %v1912 = vsel %vm724, %v1888, 0.0
        %v1913 = vsel %vm725, %v1889, 0.0
        %v1914 = vsel %vm726, %v1890, 0.0
        %v1915 = vsel %vm727, %v1891, 0.0
        %v1916 = vsel %vm728, %v1892, 0.0
        %v1917 = vsel %vm729, %v1893, 0.0
        %v1918 = vsel %vm730, %v1894, 0.0
        %v1919 = vsel %vm731, %v1895, 0.0
        %v1920 = vsel %vm732, %v1896, 0.0
        %v1921 = vsel %vm733, %v1897, 0.0
        %v1922 = vsel %vm734, %v1898, 0.0
        %v1923 = vsel %vm735, %v1899, 0.0
        %v1924 = vsel %vm736, %v1900, 0.0
        %v1925 = vpack.c.bf16 %v1902, %v1901
        %v1926 = vpack.c.bf16 %v1904, %v1903
        %v1927 = vpack.c.bf16 %v1906, %v1905
        %v1928 = vpack.c.bf16 %v1908, %v1907
        %v1929 = vpack.c.bf16 %v1910, %v1909
        %v1930 = vpack.c.bf16 %v1912, %v1911
        %v1931 = vpack.c.bf16 %v1914, %v1913
        %v1932 = vpack.c.bf16 %v1916, %v1915
        %v1933 = vpack.c.bf16 %v1918, %v1917
        %v1934 = vpack.c.bf16 %v1920, %v1919
        %v1935 = vpack.c.bf16 %v1922, %v1921
        %v1936 = vpack.c.bf16 %v1924, %v1923
        %v1949 = vunpack.c.l.b16 %v1925
        %v1950 = vunpack.c.h.b16 %v1925
        %v1951 = vunpack.c.l.b16 %v1926
        %v1952 = vunpack.c.h.b16 %v1926
        %v1953 = vunpack.c.l.b16 %v1927
        %v1954 = vunpack.c.h.b16 %v1927
        %v1955 = vunpack.c.l.b16 %v1928
        %v1956 = vunpack.c.h.b16 %v1928
        %v1957 = vunpack.c.l.b16 %v1929
        %v1958 = vunpack.c.h.b16 %v1929
        %v1959 = vunpack.c.l.b16 %v1930
        %v1960 = vunpack.c.h.b16 %v1930
        %v1961 = vunpack.c.l.b16 %v1931
        %v1962 = vunpack.c.h.b16 %v1931
        %v1963 = vunpack.c.l.b16 %v1932
        %v1964 = vunpack.c.h.b16 %v1932
        %v1965 = vunpack.c.l.b16 %v1933
        %v1966 = vunpack.c.h.b16 %v1933
        %v1967 = vunpack.c.l.b16 %v1934
        %v1968 = vunpack.c.h.b16 %v1934
        %v1969 = vunpack.c.l.b16 %v1935
        %v1970 = vunpack.c.h.b16 %v1935
        %v1971 = vunpack.c.l.b16 %v1936
        %v1972 = vunpack.c.h.b16 %v1936
        %v1973 = vpack.c.b16 %v1949, %v1949
        %v1974 = vpack.c.b16 %v1950, %v1950
        %v1975 = vpack.c.b16 %v1951, %v1951
        %v1976 = vpack.c.b16 %v1952, %v1952
        %v1977 = vpack.c.b16 %v1953, %v1953
        %v1978 = vpack.c.b16 %v1954, %v1954
        %v1979 = vpack.c.b16 %v1955, %v1955
        %v1980 = vpack.c.b16 %v1956, %v1956
        %v1981 = vpack.c.b16 %v1957, %v1957
        %v1982 = vpack.c.b16 %v1958, %v1958
        %v1983 = vpack.c.b16 %v1959, %v1959
        %v1984 = vpack.c.b16 %v1960, %v1960
        %v1985 = vpack.c.b16 %v1961, %v1961
        %v1986 = vpack.c.b16 %v1962, %v1962
        %v1987 = vpack.c.b16 %v1963, %v1963
        %v1988 = vpack.c.b16 %v1964, %v1964
        %v1989 = vpack.c.b16 %v1965, %v1965
        %v1990 = vpack.c.b16 %v1966, %v1966
        %v1991 = vpack.c.b16 %v1967, %v1967
        %v1992 = vpack.c.b16 %v1968, %v1968
        %v1993 = vpack.c.b16 %v1969, %v1969
        %v1994 = vpack.c.b16 %v1970, %v1970
        %v1995 = vpack.c.b16 %v1971, %v1971
        %v1996 = vpack.c.b16 %v1972, %v1972
        %vm1997 = vsmask.f32 4368
        %vm1998 = vmor %vm741, %vm1997
        %v2000 = vshrl.u32 %v1973, 16
        %v2002 = vrot.slane %v2000, 7
        %v2003 = vshll.u32 %v1973, 16
        %v2005 = vor.u32 %v2002, %v2003
        %v2006 = vrot.slane %v2002, 4
        %v2008 = vshrl.u32 %v1974, 16
        %v2010 = vrot.slane %v2008, 7
        %v2011 = vshll.u32 %v1974, 16
        %v2013 = vor.u32 %v2010, %v2011
        %v2014 = vsel %vm1998, %v2006, %v2013
        %v2015 = vrot.slane %v2010, 4
        %v2017 = vshrl.u32 %v1975, 16
        %v2019 = vrot.slane %v2017, 7
        %v2020 = vshll.u32 %v1975, 16
        %v2022 = vor.u32 %v2019, %v2020
        %v2023 = vsel %vm1998, %v2015, %v2022
        %v2024 = vrot.slane %v2019, 4
        %v2026 = vshrl.u32 %v1976, 16
        %v2028 = vrot.slane %v2026, 7
        %v2029 = vshll.u32 %v1976, 16
        %v2031 = vor.u32 %v2028, %v2029
        %v2032 = vsel %vm1998, %v2024, %v2031
        %v2033 = vrot.slane %v2028, 4
        %v2035 = vshrl.u32 %v1977, 16
        %v2037 = vrot.slane %v2035, 7
        %v2038 = vshll.u32 %v1977, 16
        %v2040 = vor.u32 %v2037, %v2038
        %v2041 = vsel %vm1998, %v2033, %v2040
        %v2042 = vrot.slane %v2037, 4
        %v2044 = vshrl.u32 %v1978, 16
        %v2046 = vrot.slane %v2044, 7
        %v2047 = vshll.u32 %v1978, 16
        %v2049 = vor.u32 %v2046, %v2047
        %v2050 = vsel %vm1998, %v2042, %v2049
        %v2051 = vrot.slane %v2046, 4
        %v2053 = vshrl.u32 %v1979, 16
        %v2055 = vrot.slane %v2053, 7
        %v2056 = vshll.u32 %v1979, 16
        %v2058 = vor.u32 %v2055, %v2056
        %v2059 = vsel %vm1998, %v2051, %v2058
        %v2060 = vrot.slane %v2055, 4
        %v2062 = vshrl.u32 %v1980, 16
        %v2064 = vrot.slane %v2062, 7
        %v2065 = vshll.u32 %v1980, 16
        %v2067 = vor.u32 %v2064, %v2065
        %v2068 = vsel %vm1998, %v2060, %v2067
        %v2069 = vrot.slane %v2064, 4
        %v2071 = vshrl.u32 %v1981, 16
        %v2073 = vrot.slane %v2071, 7
        %v2074 = vshll.u32 %v1981, 16
        %v2076 = vor.u32 %v2073, %v2074
        %v2077 = vsel %vm1998, %v2069, %v2076
        %v2078 = vrot.slane %v2073, 4
        %v2080 = vshrl.u32 %v1982, 16
        %v2082 = vrot.slane %v2080, 7
        %v2083 = vshll.u32 %v1982, 16
        %v2085 = vor.u32 %v2082, %v2083
        %v2086 = vsel %vm1998, %v2078, %v2085
        %v2087 = vrot.slane %v2082, 4
        %v2089 = vshrl.u32 %v1983, 16
        %v2091 = vrot.slane %v2089, 7
        %v2092 = vshll.u32 %v1983, 16
        %v2094 = vor.u32 %v2091, %v2092
        %v2095 = vsel %vm1998, %v2087, %v2094
        %v2096 = vrot.slane %v2091, 4
        %v2098 = vshrl.u32 %v1984, 16
        %v2100 = vrot.slane %v2098, 7
        %v2101 = vshll.u32 %v1984, 16
        %v2103 = vor.u32 %v2100, %v2101
        %v2104 = vsel %vm1998, %v2096, %v2103
        %v2105 = vrot.slane %v2100, 4
        %v2107 = vshrl.u32 %v1985, 16
        %v2109 = vrot.slane %v2107, 7
        %v2110 = vshll.u32 %v1985, 16
        %v2112 = vor.u32 %v2109, %v2110
        %v2113 = vsel %vm1998, %v2105, %v2112
        %v2114 = vrot.slane %v2109, 4
        %v2116 = vshrl.u32 %v1986, 16
        %v2118 = vrot.slane %v2116, 7
        %v2119 = vshll.u32 %v1986, 16
        %v2121 = vor.u32 %v2118, %v2119
        %v2122 = vsel %vm1998, %v2114, %v2121
        %v2123 = vrot.slane %v2118, 4
        %v2125 = vshrl.u32 %v1987, 16
        %v2127 = vrot.slane %v2125, 7
        %v2128 = vshll.u32 %v1987, 16
        %v2130 = vor.u32 %v2127, %v2128
        %v2131 = vsel %vm1998, %v2123, %v2130
        %v2132 = vrot.slane %v2127, 4
        %v2134 = vshrl.u32 %v1988, 16
        %v2136 = vrot.slane %v2134, 7
        %v2137 = vshll.u32 %v1988, 16
        %v2139 = vor.u32 %v2136, %v2137
        %v2140 = vsel %vm1998, %v2132, %v2139
        %v2141 = vrot.slane %v2136, 4
        %v2143 = vshrl.u32 %v1989, 16
        %v2145 = vrot.slane %v2143, 7
        %v2146 = vshll.u32 %v1989, 16
        %v2148 = vor.u32 %v2145, %v2146
        %v2149 = vsel %vm1998, %v2141, %v2148
        %v2150 = vrot.slane %v2145, 4
        %v2152 = vshrl.u32 %v1990, 16
        %v2154 = vrot.slane %v2152, 7
        %v2155 = vshll.u32 %v1990, 16
        %v2157 = vor.u32 %v2154, %v2155
        %v2158 = vsel %vm1998, %v2150, %v2157
        %v2159 = vrot.slane %v2154, 4
        %v2161 = vshrl.u32 %v1991, 16
        %v2163 = vrot.slane %v2161, 7
        %v2164 = vshll.u32 %v1991, 16
        %v2166 = vor.u32 %v2163, %v2164
        %v2167 = vsel %vm1998, %v2159, %v2166
        %v2168 = vrot.slane %v2163, 4
        %v2170 = vshrl.u32 %v1992, 16
        %v2172 = vrot.slane %v2170, 7
        %v2173 = vshll.u32 %v1992, 16
        %v2175 = vor.u32 %v2172, %v2173
        %v2176 = vsel %vm1998, %v2168, %v2175
        %v2177 = vrot.slane %v2172, 4
        %v2179 = vshrl.u32 %v1993, 16
        %v2181 = vrot.slane %v2179, 7
        %v2182 = vshll.u32 %v1993, 16
        %v2184 = vor.u32 %v2181, %v2182
        %v2185 = vsel %vm1998, %v2177, %v2184
        %v2186 = vrot.slane %v2181, 4
        %v2188 = vshrl.u32 %v1994, 16
        %v2190 = vrot.slane %v2188, 7
        %v2191 = vshll.u32 %v1994, 16
        %v2193 = vor.u32 %v2190, %v2191
        %v2194 = vsel %vm1998, %v2186, %v2193
        %v2195 = vrot.slane %v2190, 4
        %v2197 = vshrl.u32 %v1995, 16
        %v2199 = vrot.slane %v2197, 7
        %v2200 = vshll.u32 %v1995, 16
        %v2202 = vor.u32 %v2199, %v2200
        %v2203 = vsel %vm1998, %v2195, %v2202
        %v2204 = vrot.slane %v2199, 4
        %v2206 = vshrl.u32 %v1996, 16
        %v2208 = vrot.slane %v2206, 7
        %v2209 = vshll.u32 %v1996, 16
        %v2211 = vor.u32 %v2208, %v2209
        %v2212 = vsel %vm1998, %v2204, %v2211
        %v2213 = vrot.slane %v2208, 4
        %v2239 = vld [vmem:[#allocation2 + $0x8] sm:$0xf]
        %v2240 = vsel %vm748, %v2005, %v2239
        %2241 = vst [vmem:[#allocation2 + $0x8] sm:$0xf] %v2240
        %2242 = vst.msk [vmem:[#allocation2 + $0xc] sm:$0xf] %vm737, %v2014
        %2243 = vst.msk [vmem:[#allocation2 + $0x10] sm:$0xf] %vm737, %v2023
        %2244 = vst.msk [vmem:[#allocation2 + $0x14] sm:$0xf] %vm737, %v2032
        %2245 = vst.msk [vmem:[#allocation2 + $0x18] sm:$0xf] %vm737, %v2041
        %2246 = vst.msk [vmem:[#allocation2 + $0x1c] sm:$0xf] %vm737, %v2050
        %2247 = vst.msk [vmem:[#allocation2 + $0x20] sm:$0xf] %vm737, %v2059
        %2248 = vst.msk [vmem:[#allocation2 + $0x24] sm:$0xf] %vm737, %v2068
        %2249 = vst.msk [vmem:[#allocation2 + $0x28] sm:$0xf] %vm737, %v2077
        %2250 = vst.msk [vmem:[#allocation2 + $0x2c] sm:$0xf] %vm737, %v2086
        %2251 = vst.msk [vmem:[#allocation2 + $0x30] sm:$0xf] %vm737, %v2095
        %2252 = vst.msk [vmem:[#allocation2 + $0x34] sm:$0xf] %vm737, %v2104
        %2253 = vst.msk [vmem:[#allocation2 + $0x38] sm:$0xf] %vm737, %v2113
        %2254 = vst.msk [vmem:[#allocation2 + $0x3c] sm:$0xf] %vm737, %v2122
        %2255 = vst.msk [vmem:[#allocation2 + $0x40] sm:$0xf] %vm737, %v2131
        %2256 = vst.msk [vmem:[#allocation2 + $0x44] sm:$0xf] %vm737, %v2140
        %2257 = vst.msk [vmem:[#allocation2 + $0x48] sm:$0xf] %vm737, %v2149
        %2258 = vst.msk [vmem:[#allocation2 + $0x4c] sm:$0xf] %vm737, %v2158
        %2259 = vst.msk [vmem:[#allocation2 + $0x50] sm:$0xf] %vm737, %v2167
        %2260 = vst.msk [vmem:[#allocation2 + $0x54] sm:$0xf] %vm737, %v2176
        %2261 = vst.msk [vmem:[#allocation2 + $0x58] sm:$0xf] %vm737, %v2185
        %2262 = vst.msk [vmem:[#allocation2 + $0x5c] sm:$0xf] %vm737, %v2194
        %2263 = vst.msk [vmem:[#allocation2 + $0x60] sm:$0xf] %vm737, %v2203
        %2264 = vst.msk [vmem:[#allocation2 + $0x64] sm:$0xf] %vm737, %v2212
        %v2265 = vld [vmem:[#allocation2 + $0x68] sm:$0x1]
        %v2266 = vsel %vm742, %v2213, %v2265
        %2267 = vst [vmem:[#allocation2 + $0x68] sm:$0x1] %v2266
        %v2268 = vld [vmem:[#allocation2] sm:$0xf]
        %v2269 = vld [vmem:[#allocation2 + $0x4] sm:$0xf]
        %v2270 = vld [vmem:[#allocation2 + $0x8] sm:$0xf]
        %v2271 = vld [vmem:[#allocation2 + $0xc] sm:$0xf]
        %v2272 = vld [vmem:[#allocation2 + $0x10] sm:$0xf]
        %v2273 = vld [vmem:[#allocation2 + $0x14] sm:$0xf]
        %v2274 = vld [vmem:[#allocation2 + $0x18] sm:$0xf]
        %v2275 = vld [vmem:[#allocation2 + $0x1c] sm:$0xf]
        %v2276 = vld [vmem:[#allocation2 + $0x20] sm:$0xf]
        %v2277 = vld [vmem:[#allocation2 + $0x24] sm:$0xf]
        %v2278 = vld [vmem:[#allocation2 + $0x28] sm:$0xf]
        %v2279 = vld [vmem:[#allocation2 + $0x2c] sm:$0xf]
        %v2280 = vld [vmem:[#allocation2 + $0x30] sm:$0xf]
        %v2281 = vld [vmem:[#allocation2 + $0x34] sm:$0xf]
        %v2282 = vld [vmem:[#allocation2 + $0x38] sm:$0xf]
        %v2283 = vld [vmem:[#allocation2 + $0x3c] sm:$0xf]
        %v2284 = vld [vmem:[#allocation2 + $0x40] sm:$0xf]
        %v2285 = vld [vmem:[#allocation2 + $0x44] sm:$0xf]
        %v2286 = vld [vmem:[#allocation2 + $0x48] sm:$0xf]
        %v2287 = vld [vmem:[#allocation2 + $0x4c] sm:$0xf]
        %v2288 = vld [vmem:[#allocation2 + $0x50] sm:$0xf]
        %v2289 = vld [vmem:[#allocation2 + $0x54] sm:$0xf]
        %v2290 = vld [vmem:[#allocation2 + $0x58] sm:$0xf]
        %v2291 = vld [vmem:[#allocation2 + $0x5c] sm:$0xf]
        %v2292 = vld [vmem:[#allocation2 + $0x60] sm:$0x1]
        %v2293 = vld [vmem:[#allocation2] sm:$0xe]
        %v2294 = vld [vmem:[#allocation2 + $0x60] sm:$0xf]
        %v2295 = vld [vmem:[#allocation2 + $0x64] sm:$0xf]
        %v2296 = vld [vmem:[#allocation2 + $0x68] sm:$0x1]
        %v2297 = vld [vmem:[#allocation2 + $0x8] sm:$0xe]
        %v2298 = vld [vmem:[#allocation2 + $0x68] sm:$0xf]
        %v2299 = vld [vmem:[#allocation2 + $0x6c] sm:$0xf]
        %v2300 = vld [vmem:[#allocation2 + $0x70] sm:$0x1]
        %v2301 = vld [vmem:[#allocation2 + $0x10] sm:$0xe]
        %v2326 = vunpack.c.l.b16 %v2268
        %v2327 = vunpack.c.l.b16 %v2269
        %v2328 = vunpack.c.l.b16 %v2270
        %v2329 = vunpack.c.l.b16 %v2271
        %v2330 = vunpack.c.l.b16 %v2272
        %v2331 = vunpack.c.l.b16 %v2273
        %v2332 = vunpack.c.l.b16 %v2274
        %v2333 = vunpack.c.l.b16 %v2275
        %v2334 = vunpack.c.l.b16 %v2276
        %v2335 = vunpack.c.l.b16 %v2277
        %v2336 = vunpack.c.l.b16 %v2278
        %v2337 = vunpack.c.l.b16 %v2279
        %v2338 = vunpack.c.l.b16 %v2280
        %v2339 = vunpack.c.l.b16 %v2281
        %v2340 = vunpack.c.l.b16 %v2282
        %v2341 = vunpack.c.l.b16 %v2283
        %v2342 = vunpack.c.l.b16 %v2284
        %v2343 = vunpack.c.l.b16 %v2285
        %v2344 = vunpack.c.l.b16 %v2286
        %v2345 = vunpack.c.l.b16 %v2287
        %v2346 = vunpack.c.l.b16 %v2288
        %v2347 = vunpack.c.l.b16 %v2289
        %v2348 = vunpack.c.l.b16 %v2290
        %v2349 = vunpack.c.l.b16 %v2291
        %v2350 = vpack.c.b16 %v2327, %v2326
        %v2351 = vpack.c.b16 %v2329, %v2328
        %v2352 = vpack.c.b16 %v2331, %v2330
        %v2353 = vpack.c.b16 %v2333, %v2332
        %v2354 = vpack.c.b16 %v2335, %v2334
        %v2355 = vpack.c.b16 %v2337, %v2336
        %v2356 = vpack.c.b16 %v2339, %v2338
        %v2357 = vpack.c.b16 %v2341, %v2340
        %v2358 = vpack.c.b16 %v2343, %v2342
        %v2359 = vpack.c.b16 %v2345, %v2344
        %v2360 = vpack.c.b16 %v2347, %v2346
        %v2361 = vpack.c.b16 %v2349, %v2348
        %v2363 = vunpack.c.l.b16 %v2292
        %v2364 = vpack.c.b16 %v2363, %v2363
        %v2366 = vshrl.u32 %v2350, 16
        %v2368 = vshll.u32 %v2350, 16
        %v2370 = vrot.slane %v2368, 1
        %v2371 = vor.u32 %v2366, %v2370
        %v2373 = vshll.u32 %v2351, 16
        %v2375 = vrot.slane %v2373, 1
        %v2376 = vsel %vm862, %v2371, %v2375
        %v2377 = vshrl.u32 %v2351, 16
        %v2379 = vor.u32 %v2377, %v2375
        %v2381 = vshll.u32 %v2352, 16
        %v2383 = vrot.slane %v2381, 1
        %v2384 = vsel %vm862, %v2379, %v2383
        %v2385 = vshrl.u32 %v2352, 16
        %v2387 = vor.u32 %v2385, %v2383
        %v2389 = vshll.u32 %v2353, 16
        %v2391 = vrot.slane %v2389, 1
        %v2392 = vsel %vm862, %v2387, %v2391
        %v2393 = vshrl.u32 %v2353, 16
        %v2395 = vor.u32 %v2393, %v2391
        %v2397 = vshll.u32 %v2354, 16
        %v2399 = vrot.slane %v2397, 1
        %v2400 = vsel %vm862, %v2395, %v2399
        %v2401 = vshrl.u32 %v2354, 16
        %v2403 = vor.u32 %v2401, %v2399
        %v2405 = vshll.u32 %v2355, 16
        %v2407 = vrot.slane %v2405, 1
        %v2408 = vsel %vm862, %v2403, %v2407
        %v2409 = vshrl.u32 %v2355, 16
        %v2411 = vor.u32 %v2409, %v2407
        %v2413 = vshll.u32 %v2356, 16
        %v2415 = vrot.slane %v2413, 1
        %v2416 = vsel %vm862, %v2411, %v2415
        %v2417 = vshrl.u32 %v2356, 16
        %v2419 = vor.u32 %v2417, %v2415
        %v2421 = vshll.u32 %v2357, 16
        %v2423 = vrot.slane %v2421, 1
        %v2424 = vsel %vm862, %v2419, %v2423
        %v2425 = vshrl.u32 %v2357, 16
        %v2427 = vor.u32 %v2425, %v2423
        %v2429 = vshll.u32 %v2358, 16
        %v2431 = vrot.slane %v2429, 1
        %v2432 = vsel %vm862, %v2427, %v2431
        %v2433 = vshrl.u32 %v2358, 16
        %v2435 = vor.u32 %v2433, %v2431
        %v2437 = vshll.u32 %v2359, 16
        %v2439 = vrot.slane %v2437, 1
        %v2440 = vsel %vm862, %v2435, %v2439
        %v2441 = vshrl.u32 %v2359, 16
        %v2443 = vor.u32 %v2441, %v2439
        %v2445 = vshll.u32 %v2360, 16
        %v2447 = vrot.slane %v2445, 1
        %v2448 = vsel %vm862, %v2443, %v2447
        %v2449 = vshrl.u32 %v2360, 16
        %v2451 = vor.u32 %v2449, %v2447
        %v2453 = vshll.u32 %v2361, 16
        %v2455 = vrot.slane %v2453, 1
        %v2456 = vsel %vm862, %v2451, %v2455
        %v2457 = vshrl.u32 %v2361, 16
        %v2459 = vor.u32 %v2457, %v2455
        %v2461 = vshll.u32 %v2364, 16
        %v2463 = vrot.slane %v2461, 1
        %v2464 = vsel %vm862, %v2459, %v2463
        %2465 = vrot.lane.b32.xlu0 %v2376, 16
        %v2466 = vpop.permute.xlu0 %2465
        %2467 = vrot.lane.b32.xlu0 %v2384, 16
        %v2468 = vpop.permute.xlu0 %2467
        %2469 = vrot.lane.b32.xlu0 %v2392, 16
        %v2470 = vpop.permute.xlu0 %2469
        %2471 = vrot.lane.b32.xlu0 %v2400, 16
        %v2472 = vpop.permute.xlu0 %2471
        %2473 = vrot.lane.b32.xlu0 %v2408, 16
        %v2474 = vpop.permute.xlu0 %2473
        %2475 = vrot.lane.b32.xlu0 %v2416, 16
        %v2476 = vpop.permute.xlu0 %2475
        %2477 = vrot.lane.b32.xlu0 %v2424, 16
        %v2478 = vpop.permute.xlu0 %2477
        %2479 = vrot.lane.b32.xlu0 %v2432, 16
        %v2480 = vpop.permute.xlu0 %2479
        %2481 = vrot.lane.b32.xlu0 %v2440, 16
        %v2482 = vpop.permute.xlu0 %2481
        %2483 = vrot.lane.b32.xlu0 %v2448, 16
        %v2484 = vpop.permute.xlu0 %2483
        %2485 = vrot.lane.b32.xlu0 %v2456, 16
        %v2486 = vpop.permute.xlu0 %2485
        %2487 = vrot.lane.b32.xlu0 %v2464, 16
        %v2488 = vpop.permute.xlu0 %2487
        %v2490 = vunpack.c.l.b16 %v2293
        %v2491 = vpack.c.b16 %v2327, %v2490
        %v2492 = vrot.slane %v2491, 1
        %v2493 = vrot.slane %v2351, 1
        %v2494 = vsel %vm990, %v2492, %v2493
        %v2495 = vrot.slane %v2352, 1
        %v2496 = vsel %vm990, %v2493, %v2495
        %v2497 = vrot.slane %v2353, 1
        %v2498 = vsel %vm990, %v2495, %v2497
        %v2499 = vrot.slane %v2354, 1
        %v2500 = vsel %vm990, %v2497, %v2499
        %v2501 = vrot.slane %v2355, 1
        %v2502 = vsel %vm990, %v2499, %v2501
        %v2503 = vrot.slane %v2356, 1
        %v2504 = vsel %vm990, %v2501, %v2503
        %v2505 = vrot.slane %v2357, 1
        %v2506 = vsel %vm990, %v2503, %v2505
        %v2507 = vrot.slane %v2358, 1
        %v2508 = vsel %vm990, %v2505, %v2507
        %v2509 = vrot.slane %v2359, 1
        %v2510 = vsel %vm990, %v2507, %v2509
        %v2511 = vrot.slane %v2360, 1
        %v2512 = vsel %vm990, %v2509, %v2511
        %v2513 = vrot.slane %v2361, 1
        %v2514 = vsel %vm990, %v2511, %v2513
        %v2515 = vrot.slane %v2364, 1
        %v2516 = vsel %vm990, %v2513, %v2515
        %2517 = vrot.lane.b32.xlu0 %v2494, 32
        %v2518 = vpop.permute.xlu0 %2517
        %2519 = vrot.lane.b32.xlu0 %v2496, 32
        %v2520 = vpop.permute.xlu0 %2519
        %2521 = vrot.lane.b32.xlu0 %v2498, 32
        %v2522 = vpop.permute.xlu0 %2521
        %2523 = vrot.lane.b32.xlu0 %v2500, 32
        %v2524 = vpop.permute.xlu0 %2523
        %2525 = vrot.lane.b32.xlu0 %v2502, 32
        %v2526 = vpop.permute.xlu0 %2525
        %2527 = vrot.lane.b32.xlu0 %v2504, 32
        %v2528 = vpop.permute.xlu0 %2527
        %2529 = vrot.lane.b32.xlu0 %v2506, 32
        %v2530 = vpop.permute.xlu0 %2529
        %2531 = vrot.lane.b32.xlu0 %v2508, 32
        %v2532 = vpop.permute.xlu0 %2531
        %2533 = vrot.lane.b32.xlu0 %v2510, 32
        %v2534 = vpop.permute.xlu0 %2533
        %2535 = vrot.lane.b32.xlu0 %v2512, 32
        %v2536 = vpop.permute.xlu0 %2535
        %2537 = vrot.lane.b32.xlu0 %v2514, 32
        %v2538 = vpop.permute.xlu0 %2537
        %2539 = vrot.lane.b32.xlu0 %v2516, 32
        %v2540 = vpop.permute.xlu0 %2539
        %v2543 = vunpack.c.l.b16 %v2294
        %v2544 = vunpack.c.l.b16 %v2295
        %v2545 = vpack.c.b16 %v2544, %v2543
        %2546 = vrot.lane.b32.xlu0 %v2351, 48
        %v2547 = vpop.permute.xlu0 %2546
        %2548 = vrot.lane.b32.xlu0 %v2352, 48
        %v2549 = vpop.permute.xlu0 %2548
        %2550 = vrot.lane.b32.xlu0 %v2353, 48
        %v2551 = vpop.permute.xlu0 %2550
        %2552 = vrot.lane.b32.xlu0 %v2354, 48
        %v2553 = vpop.permute.xlu0 %2552
        %2554 = vrot.lane.b32.xlu0 %v2355, 48
        %v2555 = vpop.permute.xlu0 %2554
        %2556 = vrot.lane.b32.xlu0 %v2356, 48
        %v2557 = vpop.permute.xlu0 %2556
        %2558 = vrot.lane.b32.xlu0 %v2357, 48
        %v2559 = vpop.permute.xlu0 %2558
        %2560 = vrot.lane.b32.xlu0 %v2358, 48
        %v2561 = vpop.permute.xlu0 %2560
        %2562 = vrot.lane.b32.xlu0 %v2359, 48
        %v2563 = vpop.permute.xlu0 %2562
        %2564 = vrot.lane.b32.xlu0 %v2360, 48
        %v2565 = vpop.permute.xlu0 %2564
        %2566 = vrot.lane.b32.xlu0 %v2361, 48
        %v2567 = vpop.permute.xlu0 %2566
        %2568 = vrot.lane.b32.xlu0 %v2545, 48
        %v2569 = vpop.permute.xlu0 %2568
        %v2571 = vunpack.c.l.b16 %v2296
        %v2572 = vpack.c.b16 %v2571, %v2571
        %v2574 = vshll.u32 %v2545, 16
        %v2576 = vrot.slane %v2574, 1
        %v2577 = vsel %vm862, %v2459, %v2576
        %v2578 = vshrl.u32 %v2545, 16
        %v2580 = vor.u32 %v2578, %v2576
        %v2582 = vshll.u32 %v2572, 16
        %v2584 = vrot.slane %v2582, 1
        %v2585 = vsel %vm862, %v2580, %v2584
        %2586 = vrot.lane.b32.xlu0 %v2384, 64
        %v2587 = vpop.permute.xlu0 %2586
        %2588 = vrot.lane.b32.xlu0 %v2392, 64
        %v2589 = vpop.permute.xlu0 %2588
        %2590 = vrot.lane.b32.xlu0 %v2400, 64
        %v2591 = vpop.permute.xlu0 %2590
        %2592 = vrot.lane.b32.xlu0 %v2408, 64
        %v2593 = vpop.permute.xlu0 %2592
        %2594 = vrot.lane.b32.xlu0 %v2416, 64
        %v2595 = vpop.permute.xlu0 %2594
        %2596 = vrot.lane.b32.xlu0 %v2424, 64
        %v2597 = vpop.permute.xlu0 %2596
        %2598 = vrot.lane.b32.xlu0 %v2432, 64
        %v2599 = vpop.permute.xlu0 %2598
        %2600 = vrot.lane.b32.xlu0 %v2440, 64
        %v2601 = vpop.permute.xlu0 %2600
        %2602 = vrot.lane.b32.xlu0 %v2448, 64
        %v2603 = vpop.permute.xlu0 %2602
        %2604 = vrot.lane.b32.xlu0 %v2456, 64
        %v2605 = vpop.permute.xlu0 %2604
        %2606 = vrot.lane.b32.xlu0 %v2577, 64
        %v2607 = vpop.permute.xlu0 %2606
        %2608 = vrot.lane.b32.xlu0 %v2585, 64
        %v2609 = vpop.permute.xlu0 %2608
        %v2611 = vunpack.c.l.b16 %v2297
        %v2612 = vpack.c.b16 %v2329, %v2611
        %v2613 = vrot.slane %v2612, 1
        %v2614 = vsel %vm990, %v2613, %v2495
        %v2615 = vrot.slane %v2545, 1
        %v2616 = vsel %vm990, %v2513, %v2615
        %v2617 = vrot.slane %v2572, 1
        %v2618 = vsel %vm990, %v2615, %v2617
        %2619 = vrot.lane.b32.xlu0 %v2614, 80
        %v2620 = vpop.permute.xlu0 %2619
        %2621 = vrot.lane.b32.xlu0 %v2498, 80
        %v2622 = vpop.permute.xlu0 %2621
        %2623 = vrot.lane.b32.xlu0 %v2500, 80
        %v2624 = vpop.permute.xlu0 %2623
        %2625 = vrot.lane.b32.xlu0 %v2502, 80
        %v2626 = vpop.permute.xlu0 %2625
        %2627 = vrot.lane.b32.xlu0 %v2504, 80
        %v2628 = vpop.permute.xlu0 %2627
        %2629 = vrot.lane.b32.xlu0 %v2506, 80
        %v2630 = vpop.permute.xlu0 %2629
        %2631 = vrot.lane.b32.xlu0 %v2508, 80
        %v2632 = vpop.permute.xlu0 %2631
        %2633 = vrot.lane.b32.xlu0 %v2510, 80
        %v2634 = vpop.permute.xlu0 %2633
        %2635 = vrot.lane.b32.xlu0 %v2512, 80
        %v2636 = vpop.permute.xlu0 %2635
        %2637 = vrot.lane.b32.xlu0 %v2514, 80
        %v2638 = vpop.permute.xlu0 %2637
        %2639 = vrot.lane.b32.xlu0 %v2616, 80
        %v2640 = vpop.permute.xlu0 %2639
        %2641 = vrot.lane.b32.xlu0 %v2618, 80
        %v2642 = vpop.permute.xlu0 %2641
        %v2645 = vunpack.c.l.b16 %v2298
        %v2646 = vunpack.c.l.b16 %v2299
        %v2647 = vpack.c.b16 %v2646, %v2645
        %2648 = vrot.lane.b32.xlu0 %v2352, 96
        %v2649 = vpop.permute.xlu0 %2648
        %2650 = vrot.lane.b32.xlu0 %v2353, 96
        %v2651 = vpop.permute.xlu0 %2650
        %2652 = vrot.lane.b32.xlu0 %v2354, 96
        %v2653 = vpop.permute.xlu0 %2652
        %2654 = vrot.lane.b32.xlu0 %v2355, 96
        %v2655 = vpop.permute.xlu0 %2654
        %2656 = vrot.lane.b32.xlu0 %v2356, 96
        %v2657 = vpop.permute.xlu0 %2656
        %2658 = vrot.lane.b32.xlu0 %v2357, 96
        %v2659 = vpop.permute.xlu0 %2658
        %2660 = vrot.lane.b32.xlu0 %v2358, 96
        %v2661 = vpop.permute.xlu0 %2660
        %2662 = vrot.lane.b32.xlu0 %v2359, 96
        %v2663 = vpop.permute.xlu0 %2662
        %2664 = vrot.lane.b32.xlu0 %v2360, 96
        %v2665 = vpop.permute.xlu0 %2664
        %2666 = vrot.lane.b32.xlu0 %v2361, 96
        %v2667 = vpop.permute.xlu0 %2666
        %2668 = vrot.lane.b32.xlu0 %v2545, 96
        %v2669 = vpop.permute.xlu0 %2668
        %2670 = vrot.lane.b32.xlu0 %v2647, 96
        %v2671 = vpop.permute.xlu0 %2670
        %v2673 = vunpack.c.l.b16 %v2300
        %v2674 = vpack.c.b16 %v2673, %v2673
        %v2676 = vshll.u32 %v2647, 16
        %v2678 = vrot.slane %v2676, 1
        %v2679 = vsel %vm862, %v2580, %v2678
        %v2680 = vshrl.u32 %v2647, 16
        %v2682 = vor.u32 %v2680, %v2678
        %v2684 = vshll.u32 %v2674, 16
        %v2686 = vrot.slane %v2684, 1
        %v2687 = vsel %vm862, %v2682, %v2686
        %2688 = vrot.lane.b32.xlu0 %v2392, 112
        %v2689 = vpop.permute.xlu0 %2688
        %2690 = vrot.lane.b32.xlu0 %v2400, 112
        %v2691 = vpop.permute.xlu0 %2690
        %2692 = vrot.lane.b32.xlu0 %v2408, 112
        %v2693 = vpop.permute.xlu0 %2692
        %2694 = vrot.lane.b32.xlu0 %v2416, 112
        %v2695 = vpop.permute.xlu0 %2694
        %2696 = vrot.lane.b32.xlu0 %v2424, 112
        %v2697 = vpop.permute.xlu0 %2696
        %2698 = vrot.lane.b32.xlu0 %v2432, 112
        %v2699 = vpop.permute.xlu0 %2698
        %2700 = vrot.lane.b32.xlu0 %v2440, 112
        %v2701 = vpop.permute.xlu0 %2700
        %2702 = vrot.lane.b32.xlu0 %v2448, 112
        %v2703 = vpop.permute.xlu0 %2702
        %2704 = vrot.lane.b32.xlu0 %v2456, 112
        %v2705 = vpop.permute.xlu0 %2704
        %2706 = vrot.lane.b32.xlu0 %v2577, 112
        %v2707 = vpop.permute.xlu0 %2706
        %2708 = vrot.lane.b32.xlu0 %v2679, 112
        %v2709 = vpop.permute.xlu0 %2708
        %2710 = vrot.lane.b32.xlu0 %v2687, 112
        %v2711 = vpop.permute.xlu0 %2710
        %v2713 = vunpack.c.l.b16 %v2301
        %v2714 = vpack.c.b16 %v2331, %v2713
        %v2715 = vrot.slane %v2714, 1
        %v2716 = vsel %vm990, %v2715, %v2497
        %v2717 = vrot.slane %v2647, 1
        %v2718 = vsel %vm990, %v2615, %v2717
        %v2719 = vrot.slane %v2674, 1
        %v2720 = vsel %vm990, %v2717, %v2719
        %vm2721 = vcmask 130048
        %v2723 = vsel %vm2721, %v2350, %v2466
        %v2725 = vsel %vm2721, %v2351, %v2468
        %v2727 = vsel %vm2721, %v2352, %v2470
        %v2729 = vsel %vm2721, %v2353, %v2472
        %v2731 = vsel %vm2721, %v2354, %v2474
        %v2733 = vsel %vm2721, %v2355, %v2476
        %v2735 = vsel %vm2721, %v2356, %v2478
        %v2737 = vsel %vm2721, %v2357, %v2480
        %v2739 = vsel %vm2721, %v2358, %v2482
        %v2741 = vsel %vm2721, %v2359, %v2484
        %v2743 = vsel %vm2721, %v2360, %v2486
        %v2745 = vsel %vm2721, %v2361, %v2488
        %v2747 = vsel %vm1196, %v2723, %v2518
        %v2749 = vsel %vm1196, %v2725, %v2520
        %v2751 = vsel %vm1196, %v2727, %v2522
        %v2753 = vsel %vm1196, %v2729, %v2524
        %v2755 = vsel %vm1196, %v2731, %v2526
        %v2757 = vsel %vm1196, %v2733, %v2528
        %v2759 = vsel %vm1196, %v2735, %v2530
        %v2761 = vsel %vm1196, %v2737, %v2532
        %v2763 = vsel %vm1196, %v2739, %v2534
        %v2765 = vsel %vm1196, %v2741, %v2536
        %v2767 = vsel %vm1196, %v2743, %v2538
        %v2769 = vsel %vm1196, %v2745, %v2540
        %vm2770 = vcmask 392192
        %v2772 = vsel %vm2770, %v2747, %v2547
        %v2774 = vsel %vm2770, %v2749, %v2549
        %v2776 = vsel %vm2770, %v2751, %v2551
        %v2778 = vsel %vm2770, %v2753, %v2553
        %v2780 = vsel %vm2770, %v2755, %v2555
        %v2782 = vsel %vm2770, %v2757, %v2557
        %v2784 = vsel %vm2770, %v2759, %v2559
        %v2786 = vsel %vm2770, %v2761, %v2561
        %v2788 = vsel %vm2770, %v2763, %v2563
        %v2790 = vsel %vm2770, %v2765, %v2565
        %v2792 = vsel %vm2770, %v2767, %v2567
        %v2794 = vsel %vm2770, %v2769, %v2569
        %v2796 = vsel %vm1221, %v2772, %v2587
        %v2798 = vsel %vm1221, %v2774, %v2589
        %v2800 = vsel %vm1221, %v2776, %v2591
        %v2802 = vsel %vm1221, %v2778, %v2593
        %v2804 = vsel %vm1221, %v2780, %v2595
        %v2806 = vsel %vm1221, %v2782, %v2597
        %v2808 = vsel %vm1221, %v2784, %v2599
        %v2810 = vsel %vm1221, %v2786, %v2601
        %v2812 = vsel %vm1221, %v2788, %v2603
        %v2814 = vsel %vm1221, %v2790, %v2605
        %v2816 = vsel %vm1221, %v2792, %v2607
        %v2818 = vsel %vm1221, %v2794, %v2609
        %vm2819 = vcmask 654336
        %v2821 = vsel %vm2819, %v2796, %v2620
        %v2823 = vsel %vm2819, %v2798, %v2622
        %v2825 = vsel %vm2819, %v2800, %v2624
        %v2827 = vsel %vm2819, %v2802, %v2626
        %v2829 = vsel %vm2819, %v2804, %v2628
        %v2831 = vsel %vm2819, %v2806, %v2630
        %v2833 = vsel %vm2819, %v2808, %v2632
        %v2835 = vsel %vm2819, %v2810, %v2634
        %v2837 = vsel %vm2819, %v2812, %v2636
        %v2839 = vsel %vm2819, %v2814, %v2638
        %v2841 = vsel %vm2819, %v2816, %v2640
        %v2843 = vsel %vm2819, %v2818, %v2642
        %v2845 = vsel %vm1246, %v2821, %v2649
        %v2847 = vsel %vm1246, %v2823, %v2651
        %v2849 = vsel %vm1246, %v2825, %v2653
        %v2851 = vsel %vm1246, %v2827, %v2655
        %v2853 = vsel %vm1246, %v2829, %v2657
        %v2855 = vsel %vm1246, %v2831, %v2659
        %v2857 = vsel %vm1246, %v2833, %v2661
        %v2859 = vsel %vm1246, %v2835, %v2663
        %v2861 = vsel %vm1246, %v2837, %v2665
        %v2863 = vsel %vm1246, %v2839, %v2667
        %v2865 = vsel %vm1246, %v2841, %v2669
        %v2867 = vsel %vm1246, %v2843, %v2671
        %vm2868 = vcmask 916480
        %v2870 = vsel %vm2868, %v2845, %v2689
        %v2873 = vsel %vm2868, %v2847, %v2691
        %v2876 = vsel %vm2868, %v2849, %v2693
        %v2879 = vsel %vm2868, %v2851, %v2695
        %v2882 = vsel %vm2868, %v2853, %v2697
        %v2885 = vsel %vm2868, %v2855, %v2699
        %v2888 = vsel %vm2868, %v2857, %v2701
        %v2891 = vsel %vm2868, %v2859, %v2703
        %v2894 = vsel %vm2868, %v2861, %v2705
        %v2897 = vsel %vm2868, %v2863, %v2707
        %v2900 = vsel %vm2868, %v2865, %v2709
        %v2903 = vsel %vm2868, %v2867, %v2711
        %v2905 = vld [vmem:[%s3] sm:$0xf]
        %v2906 = vld [vmem:[%s3 + $0x4] sm:$0xf]
        %v2907 = vld [vmem:[%s3 + $0x8] sm:$0xf]
        %v2908 = vld [vmem:[%s3 + $0xc] sm:$0xf]
        %v2909 = vld [vmem:[%s3 + $0x10] sm:$0xf]
        %v2910 = vld [vmem:[%s3 + $0x14] sm:$0xf]
        %v2911 = vld [vmem:[%s3 + $0x18] sm:$0xf]
        %v2912 = vld [vmem:[%s3 + $0x1c] sm:$0xf]
        %v2913 = vld [vmem:[%s3 + $0x20] sm:$0xf]
        %v2914 = vld [vmem:[%s3 + $0x24] sm:$0xf]
        %v2915 = vld [vmem:[%s3 + $0x28] sm:$0xf]
        %v2916 = vld [vmem:[%s3 + $0x2c] sm:$0xf]
        %v2917 = vld [vmem:[%s3 + $0x30] sm:$0xf]
        %v2918 = vld [vmem:[%s3 + $0x34] sm:$0xf]
        %v2919 = vld [vmem:[%s3 + $0x38] sm:$0xf]
        %v2920 = vld [vmem:[%s3 + $0x3c] sm:$0xf]
        %v2921 = vld [vmem:[%s3 + $0x40] sm:$0xf]
        %v2922 = vld [vmem:[%s3 + $0x44] sm:$0xf]
        %v2941 = vunpack.c.l.b16 %v2905
        %v2942 = vunpack.c.l.b16 %v2906
        %v2943 = vunpack.c.l.b16 %v2907
        %v2944 = vunpack.c.l.b16 %v2908
        %v2945 = vunpack.c.l.b16 %v2909
        %v2946 = vunpack.c.l.b16 %v2910
        %v2947 = vunpack.c.l.b16 %v2911
        %v2948 = vunpack.c.l.b16 %v2912
        %v2949 = vunpack.c.l.b16 %v2913
        %v2950 = vunpack.c.l.b16 %v2914
        %v2951 = vunpack.c.l.b16 %v2915
        %v2952 = vunpack.c.l.b16 %v2916
        %v2953 = vunpack.c.l.b16 %v2917
        %v2954 = vunpack.c.l.b16 %v2918
        %v2955 = vunpack.c.l.b16 %v2919
        %v2956 = vunpack.c.l.b16 %v2920
        %v2957 = vunpack.c.l.b16 %v2921
        %v2958 = vunpack.c.l.b16 %v2922
        %v2959 = vpack.c.b16 %v2942, %v2941
        %v2960 = vpack.c.b16 %v2944, %v2943
        %v2961 = vpack.c.b16 %v2946, %v2945
        %v2962 = vpack.c.b16 %v2948, %v2947
        %v2963 = vpack.c.b16 %v2950, %v2949
        %v2964 = vpack.c.b16 %v2952, %v2951
        %v2965 = vpack.c.b16 %v2954, %v2953
        %v2966 = vpack.c.b16 %v2956, %v2955
        %v2967 = vpack.c.b16 %v2958, %v2957
        %v2978 = vsel %vm2721, %v2716, 0
        %v2981 = vsel %vm2721, %v2500, 0
        %v2984 = vsel %vm2721, %v2502, 0
        %v2987 = vsel %vm2721, %v2504, 0
        %v2990 = vsel %vm2721, %v2506, 0
        %v2993 = vsel %vm2721, %v2508, 0
        %v2996 = vsel %vm2721, %v2510, 0
        %v2999 = vsel %vm2721, %v2512, 0
        %v3002 = vsel %vm2721, %v2514, 0
        %v3005 = vsel %vm2721, %v2616, 0
        %v3008 = vsel %vm2721, %v2718, 0
        %v3011 = vsel %vm2721, %v2720, 0
        %3013 = vmatprep.subr.bf16.mxu0 0
        %3014 = vmatpush1.bf16.msra.mxu0 %v2959
        %3015 = vmatprep.subr.bf16.mxu0 0
        %3016 = vmatpush1.bf16.msra.mxu0 %v2960
        %3017 = vmatprep.subr.bf16.mxu0 0
        %3018 = vmatpush1.bf16.msra.mxu0 %v2961
        %3019 = vmatprep.subr.bf16.mxu0 0
        %3020 = vmatpush1.bf16.msra.mxu0 %v2962
        %3021 = vmatprep.subr.bf16.mxu0 0
        %3022 = vmatpush1.bf16.msra.mxu0 %v2963
        %3023 = vmatprep.subr.bf16.mxu0 0
        %3024 = vmatpush1.bf16.msra.mxu0 %v2964
        %3025 = vmatprep.subr.bf16.mxu0 0
        %3026 = vmatpush1.bf16.msra.mxu0 %v2965
        %3027 = vmatprep.subr.bf16.mxu0 0
        %3028 = vmatpush1.bf16.msra.mxu0 %v2966
        %3029 = vmatprep.subr.bf16.mxu0 0
        %3030 = vmatpush1.bf16.msra.mxu0 %v2967
        %3031 = vmatprep.subr.bf16.mxu0 0
        %3032 = vmatpush1.bf16.msra.mxu0 0
        %3033 = vmatprep.subr.bf16.mxu0 0
        %3034 = vmatpush1.bf16.msra.mxu0 0
        %3035 = vmatprep.subr.bf16.mxu0 0
        %3036 = vmatpush1.bf16.msra.mxu0 0
        %3037 = vmatprep.subr.bf16.mxu0 0
        %3038 = vmatpush1.bf16.msra.mxu0 0
        %3039 = vmatprep.subr.bf16.mxu0 0
        %3040 = vmatpush1.bf16.msra.mxu0 0
        %3041 = vmatprep.subr.bf16.mxu0 0
        %3042 = vmatpush1.bf16.msra.mxu0 0
        %3043 = vmatprep.subr.bf16.mxu0 0
        %3044 = vmatpush1.bf16.msra.mxu0 0
        %3045 = vmatprep.mubr.bf16.mxu0 %v2978
        %3046 = vmatmul.mubr.bf16.gmra.mrb[0].mxu0 %v2870
        %v3047 = vpop.f32.mrb[0].mxu0
        %v3048 = vadd.f32 0.0, %v3047
        %v3049 = vpop.f32.mrb[0].mxu0
        %v3050 = vpop.f32.mrb[0].mxu0
        %v3051 = vadd.f32 0.0, %v3050
        %v3052 = vpop.f32.mrb[0].mxu0
        %3053 = vmatprep.mubr.bf16.mxu0 %v2981
        %3054 = vmatmul.mubr.bf16.gmra.mrb[0].mxu0 %v2873
        %v3055 = vpop.f32.mrb[0].mxu0
        %v3056 = vadd.f32 0.0, %v3055
        %v3057 = vpop.f32.mrb[0].mxu0
        %v3058 = vpop.f32.mrb[0].mxu0
        %v3059 = vadd.f32 0.0, %v3058
        %v3060 = vpop.f32.mrb[0].mxu0
        %3061 = vmatprep.mubr.bf16.mxu0 %v2984
        %3062 = vmatmul.mubr.bf16.gmra.mrb[0].mxu0 %v2876
        %v3063 = vpop.f32.mrb[0].mxu0
        %v3064 = vadd.f32 0.0, %v3063
        %v3065 = vpop.f32.mrb[0].mxu0
        %v3066 = vpop.f32.mrb[0].mxu0
        %v3067 = vadd.f32 0.0, %v3066
        %v3068 = vpop.f32.mrb[0].mxu0
        %3069 = vmatprep.mubr.bf16.mxu0 %v2987
        %3070 = vmatmul.mubr.bf16.gmra.mrb[0].mxu0 %v2879
        %v3071 = vpop.f32.mrb[0].mxu0
        %v3072 = vadd.f32 0.0, %v3071
        %v3073 = vpop.f32.mrb[0].mxu0
        %v3074 = vpop.f32.mrb[0].mxu0
        %v3075 = vadd.f32 0.0, %v3074
        %v3076 = vpop.f32.mrb[0].mxu0
        %3077 = vmatprep.mubr.bf16.mxu0 %v2990
        %3078 = vmatmul.mubr.bf16.gmra.mrb[0].mxu0 %v2882
        %v3079 = vpop.f32.mrb[0].mxu0
        %v3080 = vadd.f32 0.0, %v3079
        %v3081 = vpop.f32.mrb[0].mxu0
        %v3082 = vpop.f32.mrb[0].mxu0
        %v3083 = vadd.f32 0.0, %v3082
        %v3084 = vpop.f32.mrb[0].mxu0
        %3085 = vmatprep.mubr.bf16.mxu0 %v2993
        %3086 = vmatmul.mubr.bf16.gmra.mrb[0].mxu0 %v2885
        %v3087 = vpop.f32.mrb[0].mxu0
        %v3088 = vadd.f32 0.0, %v3087
        %v3089 = vpop.f32.mrb[0].mxu0
        %v3090 = vpop.f32.mrb[0].mxu0
        %v3091 = vadd.f32 0.0, %v3090
        %v3092 = vpop.f32.mrb[0].mxu0
        %3093 = vmatprep.mubr.bf16.mxu0 %v2996
        %3094 = vmatmul.mubr.bf16.gmra.mrb[0].mxu0 %v2888
        %v3095 = vpop.f32.mrb[0].mxu0
        %v3096 = vadd.f32 0.0, %v3095
        %v3097 = vpop.f32.mrb[0].mxu0
        %v3098 = vpop.f32.mrb[0].mxu0
        %v3099 = vadd.f32 0.0, %v3098
        %v3100 = vpop.f32.mrb[0].mxu0
        %3101 = vmatprep.mubr.bf16.mxu0 %v2999
        %3102 = vmatmul.mubr.bf16.gmra.mrb[0].mxu0 %v2891
        %v3103 = vpop.f32.mrb[0].mxu0
        %v3104 = vadd.f32 0.0, %v3103
        %v3105 = vpop.f32.mrb[0].mxu0
        %v3106 = vpop.f32.mrb[0].mxu0
        %v3107 = vadd.f32 0.0, %v3106
        %v3108 = vpop.f32.mrb[0].mxu0
        %3109 = vmatprep.mubr.bf16.mxu0 %v3002
        %3110 = vmatmul.mubr.bf16.gmra.mrb[0].mxu0 %v2894
        %v3111 = vpop.f32.mrb[0].mxu0
        %v3112 = vadd.f32 0.0, %v3111
        %v3113 = vpop.f32.mrb[0].mxu0
        %v3114 = vpop.f32.mrb[0].mxu0
        %v3115 = vadd.f32 0.0, %v3114
        %v3116 = vpop.f32.mrb[0].mxu0
        %3117 = vmatprep.mubr.bf16.mxu0 %v3005
        %3118 = vmatmul.mubr.bf16.gmra.mrb[0].mxu0 %v2897
        %v3119 = vpop.f32.mrb[0].mxu0
        %v3120 = vadd.f32 0.0, %v3119
        %v3121 = vpop.f32.mrb[0].mxu0
        %v3122 = vpop.f32.mrb[0].mxu0
        %v3123 = vadd.f32 0.0, %v3122
        %v3124 = vpop.f32.mrb[0].mxu0
        %3125 = vmatprep.mubr.bf16.mxu0 %v3008
        %3126 = vmatmul.mubr.bf16.gmra.mrb[0].mxu0 %v2900
        %v3127 = vpop.f32.mrb[0].mxu0
        %v3128 = vadd.f32 0.0, %v3127
        %v3129 = vpop.f32.mrb[0].mxu0
        %v3130 = vpop.f32.mrb[0].mxu0
        %v3131 = vadd.f32 0.0, %v3130
        %v3132 = vpop.f32.mrb[0].mxu0
        %3133 = vmatprep.mubr.bf16.mxu0 %v3011
        %3134 = vmatmul.mubr.bf16.gmra.mrb[0].mxu0 %v2903
        %v3135 = vpop.f32.mrb[0].mxu0
        %v3136 = vadd.f32 0.0, %v3135
        %v3137 = vpop.f32.mrb[0].mxu0
        %v3138 = vpop.f32.mrb[0].mxu0
        %v3139 = vadd.f32 0.0, %v3138
        %v3140 = vpop.f32.mrb[0].mxu0
        %3141 = vdwg.mxu0
        %v3142 = vmul.f32 %v3048, %v1821
        %v3143 = vmul.f32 %v3051, %v1821
        %v3144 = vmul.f32 %v3056, %v1821
        %v3145 = vmul.f32 %v3059, %v1821
        %v3146 = vmul.f32 %v3064, %v1821
        %v3147 = vmul.f32 %v3067, %v1821
        %v3148 = vmul.f32 %v3072, %v1821
        %v3149 = vmul.f32 %v3075, %v1821
        %v3150 = vmul.f32 %v3080, %v1821
        %v3151 = vmul.f32 %v3083, %v1821
        %v3152 = vmul.f32 %v3088, %v1821
        %v3153 = vmul.f32 %v3091, %v1821
        %v3154 = vmul.f32 %v3096, %v1821
        %v3155 = vmul.f32 %v3099, %v1821
        %v3156 = vmul.f32 %v3104, %v1821
        %v3157 = vmul.f32 %v3107, %v1821
        %v3158 = vmul.f32 %v3112, %v1821
        %v3159 = vmul.f32 %v3115, %v1821
        %v3160 = vmul.f32 %v3120, %v1821
        %v3161 = vmul.f32 %v3123, %v1821
        %v3162 = vmul.f32 %v3128, %v1821
        %v3163 = vmul.f32 %v3131, %v1821
        %v3164 = vmul.f32 %v3136, %v1821
        %v3165 = vmul.f32 %v3139, %v1821
        %v3166 = vadd.f32 %v3142, %v1851
        %v3167 = vadd.f32 %v3143, %v1851
        %v3168 = vadd.f32 %v3144, %v1851
        %v3169 = vadd.f32 %v3145, %v1851
        %v3170 = vadd.f32 %v3146, %v1851
        %v3171 = vadd.f32 %v3147, %v1851
        %v3172 = vadd.f32 %v3148, %v1851
        %v3173 = vadd.f32 %v3149, %v1851
        %v3174 = vadd.f32 %v3150, %v1851
        %v3175 = vadd.f32 %v3151, %v1851
        %v3176 = vadd.f32 %v3152, %v1851
        %v3177 = vadd.f32 %v3153, %v1851
        %v3178 = vadd.f32 %v3154, %v1851
        %v3179 = vadd.f32 %v3155, %v1851
        %v3180 = vadd.f32 %v3156, %v1851
        %v3181 = vadd.f32 %v3157, %v1851
        %v3182 = vadd.f32 %v3158, %v1851
        %v3183 = vadd.f32 %v3159, %v1851
        %v3184 = vadd.f32 %v3160, %v1851
        %v3185 = vadd.f32 %v3161, %v1851
        %v3186 = vadd.f32 %v3162, %v1851
        %v3187 = vadd.f32 %v3163, %v1851
        %v3188 = vadd.f32 %v3164, %v1851
        %v3189 = vadd.f32 %v3165, %v1851
        %v3190 = vld [vmem:[%s391 + $0x8] sm:$0xf]
        %v3191 = vld [vmem:[%s391 + $0xc] sm:$0xf]
        %v3192 = vld [vmem:[%s391 + $0x10] sm:$0xf]
        %v3193 = vld [vmem:[%s391 + $0x14] sm:$0xf]
        %v3194 = vld [vmem:[%s391 + $0x18] sm:$0xf]
        %v3195 = vld [vmem:[%s391 + $0x1c] sm:$0xf]
        %v3196 = vld [vmem:[%s391 + $0x20] sm:$0xf]
        %v3197 = vld [vmem:[%s391 + $0x24] sm:$0xf]
        %v3198 = vld [vmem:[%s391 + $0x28] sm:$0xf]
        %v3199 = vld [vmem:[%s391 + $0x2c] sm:$0xf]
        %v3200 = vld [vmem:[%s391 + $0x30] sm:$0xf]
        %v3201 = vld [vmem:[%s391 + $0x34] sm:$0xf]
        %v3202 = vld [vmem:[%s391 + $0x38] sm:$0xf]
        %v3203 = vld [vmem:[%s391 + $0x3c] sm:$0xf]
        %v3204 = vld [vmem:[%s391 + $0x40] sm:$0xf]
        %v3205 = vld [vmem:[%s391 + $0x44] sm:$0xf]
        %v3206 = vld [vmem:[%s391 + $0x48] sm:$0xf]
        %v3207 = vld [vmem:[%s391 + $0x4c] sm:$0xf]
        %v3208 = vld [vmem:[%s391 + $0x50] sm:$0xf]
        %v3209 = vld [vmem:[%s391 + $0x54] sm:$0xf]
        %v3210 = vld [vmem:[%s391 + $0x58] sm:$0xf]
        %v3211 = vld [vmem:[%s391 + $0x5c] sm:$0xf]
        %v3212 = vld [vmem:[%s391 + $0x60] sm:$0xf]
        %v3213 = vld [vmem:[%s391 + $0x64] sm:$0xf]
        %v3214 = vld [vmem:[%s391 + $0x68] sm:$0x1]
        %v3215 = vld [vmem:[%s2] sm:$0xf]
        %v3216 = vld [vmem:[%s2 + $0x4] sm:$0xf]
        %v3217 = vld [vmem:[%s2 + $0x8] sm:$0xf]
        %v3218 = vld [vmem:[%s2 + $0xc] sm:$0xf]
        %v3244 = vunpack.c.l.b16 %v3190
        %v3245 = vunpack.c.l.b16 %v3191
        %v3246 = vunpack.c.l.b16 %v3192
        %v3247 = vunpack.c.l.b16 %v3193
        %v3248 = vunpack.c.l.b16 %v3194
        %v3249 = vunpack.c.l.b16 %v3195
        %v3250 = vunpack.c.l.b16 %v3196
        %v3251 = vunpack.c.l.b16 %v3197
        %v3252 = vunpack.c.l.b16 %v3198
        %v3253 = vunpack.c.l.b16 %v3199
        %v3254 = vunpack.c.l.b16 %v3200
        %v3255 = vunpack.c.l.b16 %v3201
        %v3256 = vunpack.c.l.b16 %v3202
        %v3257 = vunpack.c.l.b16 %v3203
        %v3258 = vunpack.c.l.b16 %v3204
        %v3259 = vunpack.c.l.b16 %v3205
        %v3260 = vunpack.c.l.b16 %v3206
        %v3261 = vunpack.c.l.b16 %v3207
        %v3262 = vunpack.c.l.b16 %v3208
        %v3263 = vunpack.c.l.b16 %v3209
        %v3264 = vunpack.c.l.b16 %v3210
        %v3265 = vunpack.c.l.b16 %v3211
        %v3266 = vunpack.c.l.b16 %v3212
        %v3267 = vunpack.c.l.b16 %v3213
        %v3268 = vunpack.c.l.b16 %v3214
        %v3269 = vpack.c.b16 %v3245, %v3244
        %v3270 = vpack.c.b16 %v3247, %v3246
        %v3271 = vpack.c.b16 %v3249, %v3248
        %v3272 = vpack.c.b16 %v3251, %v3250
        %v3273 = vpack.c.b16 %v3253, %v3252
        %v3274 = vpack.c.b16 %v3255, %v3254
        %v3275 = vpack.c.b16 %v3257, %v3256
        %v3276 = vpack.c.b16 %v3259, %v3258
        %v3277 = vpack.c.b16 %v3261, %v3260
        %v3278 = vpack.c.b16 %v3263, %v3262
        %v3279 = vpack.c.b16 %v3265, %v3264
        %v3280 = vpack.c.b16 %v3267, %v3266
        %v3281 = vpack.c.b16 %v3268, %v3268
        %v3283 = vshrl.u32 %v3269, 16
        %v3285 = vshll.u32 %v3269, 16
        %v3287 = vrot.slane %v3285, 1
        %v3288 = vor.u32 %v3283, %v3287
        %v3290 = vshll.u32 %v3270, 16
        %v3292 = vrot.slane %v3290, 1
        %v3293 = vsel %vm862, %v3288, %v3292
        %v3294 = vshrl.u32 %v3270, 16
        %v3296 = vor.u32 %v3294, %v3292
        %v3298 = vshll.u32 %v3271, 16
        %v3300 = vrot.slane %v3298, 1
        %v3301 = vsel %vm862, %v3296, %v3300
        %v3302 = vshrl.u32 %v3271, 16
        %v3304 = vor.u32 %v3302, %v3300
        %v3306 = vshll.u32 %v3272, 16
        %v3308 = vrot.slane %v3306, 1
        %v3309 = vsel %vm862, %v3304, %v3308
        %v3310 = vshrl.u32 %v3272, 16
        %v3312 = vor.u32 %v3310, %v3308
        %v3314 = vshll.u32 %v3273, 16
        %v3316 = vrot.slane %v3314, 1
        %v3317 = vsel %vm862, %v3312, %v3316
        %v3318 = vshrl.u32 %v3273, 16
        %v3320 = vor.u32 %v3318, %v3316
        %v3322 = vshll.u32 %v3274, 16
        %v3324 = vrot.slane %v3322, 1
        %v3325 = vsel %vm862, %v3320, %v3324
        %v3326 = vshrl.u32 %v3274, 16
        %v3328 = vor.u32 %v3326, %v3324
        %v3330 = vshll.u32 %v3275, 16
        %v3332 = vrot.slane %v3330, 1
        %v3333 = vsel %vm862, %v3328, %v3332
        %v3334 = vshrl.u32 %v3275, 16
        %v3336 = vor.u32 %v3334, %v3332
        %v3338 = vshll.u32 %v3276, 16
        %v3340 = vrot.slane %v3338, 1
        %v3341 = vsel %vm862, %v3336, %v3340
        %v3342 = vshrl.u32 %v3276, 16
        %v3344 = vor.u32 %v3342, %v3340
        %v3346 = vshll.u32 %v3277, 16
        %v3348 = vrot.slane %v3346, 1
        %v3349 = vsel %vm862, %v3344, %v3348
        %v3350 = vshrl.u32 %v3277, 16
        %v3352 = vor.u32 %v3350, %v3348
        %v3354 = vshll.u32 %v3278, 16
        %v3356 = vrot.slane %v3354, 1
        %v3357 = vsel %vm862, %v3352, %v3356
        %v3358 = vshrl.u32 %v3278, 16
        %v3360 = vor.u32 %v3358, %v3356
        %v3362 = vshll.u32 %v3279, 16
        %v3364 = vrot.slane %v3362, 1
        %v3365 = vsel %vm862, %v3360, %v3364
        %v3366 = vshrl.u32 %v3279, 16
        %v3368 = vor.u32 %v3366, %v3364
        %v3370 = vshll.u32 %v3280, 16
        %v3372 = vrot.slane %v3370, 1
        %v3373 = vsel %vm862, %v3368, %v3372
        %v3374 = vshrl.u32 %v3280, 16
        %v3376 = vor.u32 %v3374, %v3372
        %v3378 = vshll.u32 %v3281, 16
        %v3380 = vrot.slane %v3378, 1
        %v3381 = vsel %vm862, %v3376, %v3380
        %v3386 = vunpack.c.l.b16 %v3215
        %v3387 = vunpack.c.l.b16 %v3216
        %v3388 = vunpack.c.l.b16 %v3217
        %v3389 = vunpack.c.l.b16 %v3218
        %v3390 = vpack.c.b16 %v3387, %v3386
        %v3391 = vpack.c.b16 %v3389, %v3388
        %v3395 = vsel %vm1196, %v3293, 0
        %v3398 = vsel %vm1196, %v3301, 0
        %v3401 = vsel %vm1196, %v3309, 0
        %v3404 = vsel %vm1196, %v3317, 0
        %v3407 = vsel %vm1196, %v3325, 0
        %v3410 = vsel %vm1196, %v3333, 0
        %v3413 = vsel %vm1196, %v3341, 0
        %v3416 = vsel %vm1196, %v3349, 0
        %v3419 = vsel %vm1196, %v3357, 0
        %v3422 = vsel %vm1196, %v3365, 0
        %v3425 = vsel %vm1196, %v3373, 0
        %v3428 = vsel %vm1196, %v3381, 0
        %3430 = vmatprep.subr.bf16.mxu0 0
        %3431 = vmatpush1.bf16.msra.mxu0 %v3390
        %3432 = vmatprep.subr.bf16.mxu0 0
        %3433 = vmatpush1.bf16.msra.mxu0 %v3391
        %3434 = vmatprep.subr.bf16.mxu0 0
        %3435 = vmatpush1.bf16.msra.mxu0 0
        %3436 = vmatprep.subr.bf16.mxu0 0
        %3437 = vmatpush1.bf16.msra.mxu0 0
        %3438 = vmatprep.subr.bf16.mxu0 0
        %3439 = vmatpush1.bf16.msra.mxu0 0
        %3440 = vmatprep.subr.bf16.mxu0 0
        %3441 = vmatpush1.bf16.msra.mxu0 0
        %3442 = vmatprep.subr.bf16.mxu0 0
        %3443 = vmatpush1.bf16.msra.mxu0 0
        %3444 = vmatprep.subr.bf16.mxu0 0
        %3445 = vmatpush1.bf16.msra.mxu0 0
        %3446 = vmatprep.subr.bf16.mxu0 0
        %3447 = vmatpush1.bf16.msra.mxu0 0
        %3448 = vmatprep.subr.bf16.mxu0 0
        %3449 = vmatpush1.bf16.msra.mxu0 0
        %3450 = vmatprep.subr.bf16.mxu0 0
        %3451 = vmatpush1.bf16.msra.mxu0 0
        %3452 = vmatprep.subr.bf16.mxu0 0
        %3453 = vmatpush1.bf16.msra.mxu0 0
        %3454 = vmatprep.subr.bf16.mxu0 0
        %3455 = vmatpush1.bf16.msra.mxu0 0
        %3456 = vmatprep.subr.bf16.mxu0 0
        %3457 = vmatpush1.bf16.msra.mxu0 0
        %3458 = vmatprep.subr.bf16.mxu0 0
        %3459 = vmatpush1.bf16.msra.mxu0 0
        %3460 = vmatprep.subr.bf16.mxu0 0
        %3461 = vmatpush1.bf16.msra.mxu0 0
        %3462 = vmatprep.mubr.bf16.mxu0 0
        %3463 = vmatmul.mubr.bf16.gmra.mrb[0].mxu0 %v3395
        %v3464 = vpop.f32.mrb[0].mxu0
        %v3465 = vadd.f32 0.0, %v3464
        %v3466 = vpop.f32.mrb[0].mxu0
        %v3467 = vpop.f32.mrb[0].mxu0
        %v3468 = vadd.f32 0.0, %v3467
        %v3469 = vpop.f32.mrb[0].mxu0
        %3470 = vmatprep.mubr.bf16.mxu0 0
        %3471 = vmatmul.mubr.bf16.gmra.mrb[0].mxu0 %v3398
        %v3472 = vpop.f32.mrb[0].mxu0
        %v3473 = vadd.f32 0.0, %v3472
        %v3474 = vpop.f32.mrb[0].mxu0
        %v3475 = vpop.f32.mrb[0].mxu0
        %v3476 = vadd.f32 0.0, %v3475
        %v3477 = vpop.f32.mrb[0].mxu0
        %3478 = vmatprep.mubr.bf16.mxu0 0
        %3479 = vmatmul.mubr.bf16.gmra.mrb[0].mxu0 %v3401
        %v3480 = vpop.f32.mrb[0].mxu0
        %v3481 = vadd.f32 0.0, %v3480
        %v3482 = vpop.f32.mrb[0].mxu0
        %v3483 = vpop.f32.mrb[0].mxu0
        %v3484 = vadd.f32 0.0, %v3483
        %v3485 = vpop.f32.mrb[0].mxu0
        %3486 = vmatprep.mubr.bf16.mxu0 0
        %3487 = vmatmul.mubr.bf16.gmra.mrb[0].mxu0 %v3404
        %v3488 = vpop.f32.mrb[0].mxu0
        %v3489 = vadd.f32 0.0, %v3488
        %v3490 = vpop.f32.mrb[0].mxu0
        %v3491 = vpop.f32.mrb[0].mxu0
        %v3492 = vadd.f32 0.0, %v3491
        %v3493 = vpop.f32.mrb[0].mxu0
        %3494 = vmatprep.mubr.bf16.mxu0 0
        %3495 = vmatmul.mubr.bf16.gmra.mrb[0].mxu0 %v3407
        %v3496 = vpop.f32.mrb[0].mxu0
        %v3497 = vadd.f32 0.0, %v3496
        %v3498 = vpop.f32.mrb[0].mxu0
        %v3499 = vpop.f32.mrb[0].mxu0
        %v3500 = vadd.f32 0.0, %v3499
        %v3501 = vpop.f32.mrb[0].mxu0
        %3502 = vmatprep.mubr.bf16.mxu0 0
        %3503 = vmatmul.mubr.bf16.gmra.mrb[0].mxu0 %v3410
        %v3504 = vpop.f32.mrb[0].mxu0
        %v3505 = vadd.f32 0.0, %v3504
        %v3506 = vpop.f32.mrb[0].mxu0
        %v3507 = vpop.f32.mrb[0].mxu0
        %v3508 = vadd.f32 0.0, %v3507
        %v3509 = vpop.f32.mrb[0].mxu0
        %3510 = vmatprep.mubr.bf16.mxu0 0
        %3511 = vmatmul.mubr.bf16.gmra.mrb[0].mxu0 %v3413
        %v3512 = vpop.f32.mrb[0].mxu0
        %v3513 = vadd.f32 0.0, %v3512
        %v3514 = vpop.f32.mrb[0].mxu0
        %v3515 = vpop.f32.mrb[0].mxu0
        %v3516 = vadd.f32 0.0, %v3515
        %v3517 = vpop.f32.mrb[0].mxu0
        %3518 = vmatprep.mubr.bf16.mxu0 0
        %3519 = vmatmul.mubr.bf16.gmra.mrb[0].mxu0 %v3416
        %v3520 = vpop.f32.mrb[0].mxu0
        %v3521 = vadd.f32 0.0, %v3520
        %v3522 = vpop.f32.mrb[0].mxu0
        %v3523 = vpop.f32.mrb[0].mxu0
        %v3524 = vadd.f32 0.0, %v3523
        %v3525 = vpop.f32.mrb[0].mxu0
        %3526 = vmatprep.mubr.bf16.mxu0 0
        %3527 = vmatmul.mubr.bf16.gmra.mrb[0].mxu0 %v3419
        %v3528 = vpop.f32.mrb[0].mxu0
        %v3529 = vadd.f32 0.0, %v3528
        %v3530 = vpop.f32.mrb[0].mxu0
        %v3531 = vpop.f32.mrb[0].mxu0
        %v3532 = vadd.f32 0.0, %v3531
        %v3533 = vpop.f32.mrb[0].mxu0
        %3534 = vmatprep.mubr.bf16.mxu0 0
        %3535 = vmatmul.mubr.bf16.gmra.mrb[0].mxu0 %v3422
        %v3536 = vpop.f32.mrb[0].mxu0
        %v3537 = vadd.f32 0.0, %v3536
        %v3538 = vpop.f32.mrb[0].mxu0
        %v3539 = vpop.f32.mrb[0].mxu0
        %v3540 = vadd.f32 0.0, %v3539
        %v3541 = vpop.f32.mrb[0].mxu0
        %3542 = vmatprep.mubr.bf16.mxu0 0
        %3543 = vmatmul.mubr.bf16.gmra.mrb[0].mxu0 %v3425
        %v3544 = vpop.f32.mrb[0].mxu0
        %v3545 = vadd.f32 0.0, %v3544
        %v3546 = vpop.f32.mrb[0].mxu0
        %v3547 = vpop.f32.mrb[0].mxu0
        %v3548 = vadd.f32 0.0, %v3547
        %v3549 = vpop.f32.mrb[0].mxu0
        %3550 = vmatprep.mubr.bf16.mxu0 0
        %3551 = vmatmul.mubr.bf16.gmra.mrb[0].mxu0 %v3428
        %v3552 = vpop.f32.mrb[0].mxu0
        %v3553 = vadd.f32 0.0, %v3552
        %v3554 = vpop.f32.mrb[0].mxu0
        %v3555 = vpop.f32.mrb[0].mxu0
        %v3556 = vadd.f32 0.0, %v3555
        %v3557 = vpop.f32.mrb[0].mxu0
        %3558 = vdwg.mxu0
        %v3559 = vmul.f32 %v3465, %v1821
        %v3560 = vmul.f32 %v3468, %v1821
        %v3561 = vmul.f32 %v3473, %v1821
        %v3562 = vmul.f32 %v3476, %v1821
        %v3563 = vmul.f32 %v3481, %v1821
        %v3564 = vmul.f32 %v3484, %v1821
        %v3565 = vmul.f32 %v3489, %v1821
        %v3566 = vmul.f32 %v3492, %v1821
        %v3567 = vmul.f32 %v3497, %v1821
        %v3568 = vmul.f32 %v3500, %v1821
        %v3569 = vmul.f32 %v3505, %v1821
        %v3570 = vmul.f32 %v3508, %v1821
        %v3571 = vmul.f32 %v3513, %v1821
        %v3572 = vmul.f32 %v3516, %v1821
        %v3573 = vmul.f32 %v3521, %v1821
        %v3574 = vmul.f32 %v3524, %v1821
        %v3575 = vmul.f32 %v3529, %v1821
        %v3576 = vmul.f32 %v3532, %v1821
        %v3577 = vmul.f32 %v3537, %v1821
        %v3578 = vmul.f32 %v3540, %v1821
        %v3579 = vmul.f32 %v3545, %v1821
        %v3580 = vmul.f32 %v3548, %v1821
        %v3581 = vmul.f32 %v3553, %v1821
        %v3582 = vmul.f32 %v3556, %v1821
        %v3583 = vadd.f32 %v3559, %v1851
        %v3584 = vadd.f32 %v3560, %v1851
        %v3585 = vadd.f32 %v3561, %v1851
        %v3586 = vadd.f32 %v3562, %v1851
        %v3587 = vadd.f32 %v3563, %v1851
        %v3588 = vadd.f32 %v3564, %v1851
        %v3589 = vadd.f32 %v3565, %v1851
        %v3590 = vadd.f32 %v3566, %v1851
        %v3591 = vadd.f32 %v3567, %v1851
        %v3592 = vadd.f32 %v3568, %v1851
        %v3593 = vadd.f32 %v3569, %v1851
        %v3594 = vadd.f32 %v3570, %v1851
        %v3595 = vadd.f32 %v3571, %v1851
        %v3596 = vadd.f32 %v3572, %v1851
        %v3597 = vadd.f32 %v3573, %v1851
        %v3598 = vadd.f32 %v3574, %v1851
        %v3599 = vadd.f32 %v3575, %v1851
        %v3600 = vadd.f32 %v3576, %v1851
        %v3601 = vadd.f32 %v3577, %v1851
        %v3602 = vadd.f32 %v3578, %v1851
        %v3603 = vadd.f32 %v3579, %v1851
        %v3604 = vadd.f32 %v3580, %v1851
        %v3605 = vadd.f32 %v3581, %v1851
        %v3606 = vadd.f32 %v3582, %v1851
        %v3607 = vadd.f32 %v3166, %v3583
        %v3608 = vadd.f32 %v3167, %v3584
        %v3609 = vadd.f32 %v3168, %v3585
        %v3610 = vadd.f32 %v3169, %v3586
        %v3611 = vadd.f32 %v3170, %v3587
        %v3612 = vadd.f32 %v3171, %v3588
        %v3613 = vadd.f32 %v3172, %v3589
        %v3614 = vadd.f32 %v3173, %v3590
        %v3615 = vadd.f32 %v3174, %v3591
        %v3616 = vadd.f32 %v3175, %v3592
        %v3617 = vadd.f32 %v3176, %v3593
        %v3618 = vadd.f32 %v3177, %v3594
        %v3619 = vadd.f32 %v3178, %v3595
        %v3620 = vadd.f32 %v3179, %v3596
        %v3621 = vadd.f32 %v3180, %v3597
        %v3622 = vadd.f32 %v3181, %v3598
        %v3623 = vadd.f32 %v3182, %v3599
        %v3624 = vadd.f32 %v3183, %v3600
        %v3625 = vadd.f32 %v3184, %v3601
        %v3626 = vadd.f32 %v3185, %v3602
        %v3627 = vadd.f32 %v3186, %v3603
        %v3628 = vadd.f32 %v3187, %v3604
        %v3629 = vadd.f32 %v3188, %v3605
        %v3630 = vadd.f32 %v3189, %v3606
        %v3631 = vmax.f32 %v3607, 0.0
        %v3632 = vmax.f32 %v3608, 0.0
        %v3633 = vmax.f32 %v3609, 0.0
        %v3634 = vmax.f32 %v3610, 0.0
        %v3635 = vmax.f32 %v3611, 0.0
        %v3636 = vmax.f32 %v3612, 0.0
        %v3637 = vmax.f32 %v3613, 0.0
        %v3638 = vmax.f32 %v3614, 0.0
        %v3639 = vmax.f32 %v3615, 0.0
        %v3640 = vmax.f32 %v3616, 0.0
        %v3641 = vmax.f32 %v3617, 0.0
        %v3642 = vmax.f32 %v3618, 0.0
        %v3643 = vmax.f32 %v3619, 0.0
        %v3644 = vmax.f32 %v3620, 0.0
        %v3645 = vmax.f32 %v3621, 0.0
        %v3646 = vmax.f32 %v3622, 0.0
        %v3647 = vmax.f32 %v3623, 0.0
        %v3648 = vmax.f32 %v3624, 0.0
        %v3649 = vmax.f32 %v3625, 0.0
        %v3650 = vmax.f32 %v3626, 0.0
        %v3651 = vmax.f32 %v3627, 0.0
        %v3652 = vmax.f32 %v3628, 0.0
        %v3653 = vmax.f32 %v3629, 0.0
        %v3654 = vmax.f32 %v3630, 0.0
        %v3655 = vsel %vm713, %v3631, 0.0
        %v3656 = vsel %vm714, %v3632, 0.0
        %v3657 = vsel %vm715, %v3633, 0.0
        %v3658 = vsel %vm716, %v3634, 0.0
        %v3659 = vsel %vm717, %v3635, 0.0
        %v3660 = vsel %vm718, %v3636, 0.0
        %v3661 = vsel %vm719, %v3637, 0.0
        %v3662 = vsel %vm720, %v3638, 0.0
        %v3663 = vsel %vm721, %v3639, 0.0
        %v3664 = vsel %vm722, %v3640, 0.0
        %v3665 = vsel %vm723, %v3641, 0.0
        %v3666 = vsel %vm724, %v3642, 0.0
        %v3667 = vsel %vm725, %v3643, 0.0
        %v3668 = vsel %vm726, %v3644, 0.0
        %v3669 = vsel %vm727, %v3645, 0.0
        %v3670 = vsel %vm728, %v3646, 0.0
        %v3671 = vsel %vm729, %v3647, 0.0
        %v3672 = vsel %vm730, %v3648, 0.0
        %v3673 = vsel %vm731, %v3649, 0.0
        %v3674 = vsel %vm732, %v3650, 0.0
        %v3675 = vsel %vm733, %v3651, 0.0
        %v3676 = vsel %vm734, %v3652, 0.0
        %v3677 = vsel %vm735, %v3653, 0.0
        %v3678 = vsel %vm736, %v3654, 0.0
        %v3679 = vpack.c.bf16 %v3656, %v3655
        %v3680 = vpack.c.bf16 %v3658, %v3657
        %v3681 = vpack.c.bf16 %v3660, %v3659
        %v3682 = vpack.c.bf16 %v3662, %v3661
        %v3683 = vpack.c.bf16 %v3664, %v3663
        %v3684 = vpack.c.bf16 %v3666, %v3665
        %v3685 = vpack.c.bf16 %v3668, %v3667
        %v3686 = vpack.c.bf16 %v3670, %v3669
        %v3687 = vpack.c.bf16 %v3672, %v3671
        %v3688 = vpack.c.bf16 %v3674, %v3673
        %v3689 = vpack.c.bf16 %v3676, %v3675
        %v3690 = vpack.c.bf16 %v3678, %v3677
        %v3703 = vunpack.c.l.b16 %v3679
        %v3704 = vunpack.c.h.b16 %v3679
        %v3705 = vunpack.c.l.b16 %v3680
        %v3706 = vunpack.c.h.b16 %v3680
        %v3707 = vunpack.c.l.b16 %v3681
        %v3708 = vunpack.c.h.b16 %v3681
        %v3709 = vunpack.c.l.b16 %v3682
        %v3710 = vunpack.c.h.b16 %v3682
        %v3711 = vunpack.c.l.b16 %v3683
        %v3712 = vunpack.c.h.b16 %v3683
        %v3713 = vunpack.c.l.b16 %v3684
        %v3714 = vunpack.c.h.b16 %v3684
        %v3715 = vunpack.c.l.b16 %v3685
        %v3716 = vunpack.c.h.b16 %v3685
        %v3717 = vunpack.c.l.b16 %v3686
        %v3718 = vunpack.c.h.b16 %v3686
        %v3719 = vunpack.c.l.b16 %v3687
        %v3720 = vunpack.c.h.b16 %v3687
        %v3721 = vunpack.c.l.b16 %v3688
        %v3722 = vunpack.c.h.b16 %v3688
        %v3723 = vunpack.c.l.b16 %v3689
        %v3724 = vunpack.c.h.b16 %v3689
        %v3725 = vunpack.c.l.b16 %v3690
        %v3726 = vunpack.c.h.b16 %v3690
        %v3727 = vpack.c.b16 %v3703, %v3703
        %v3728 = vpack.c.b16 %v3704, %v3704
        %v3729 = vpack.c.b16 %v3705, %v3705
        %v3730 = vpack.c.b16 %v3706, %v3706
        %v3731 = vpack.c.b16 %v3707, %v3707
        %v3732 = vpack.c.b16 %v3708, %v3708
        %v3733 = vpack.c.b16 %v3709, %v3709
        %v3734 = vpack.c.b16 %v3710, %v3710
        %v3735 = vpack.c.b16 %v3711, %v3711
        %v3736 = vpack.c.b16 %v3712, %v3712
        %v3737 = vpack.c.b16 %v3713, %v3713
        %v3738 = vpack.c.b16 %v3714, %v3714
        %v3739 = vpack.c.b16 %v3715, %v3715
        %v3740 = vpack.c.b16 %v3716, %v3716
        %v3741 = vpack.c.b16 %v3717, %v3717
        %v3742 = vpack.c.b16 %v3718, %v3718
        %v3743 = vpack.c.b16 %v3719, %v3719
        %v3744 = vpack.c.b16 %v3720, %v3720
        %v3745 = vpack.c.b16 %v3721, %v3721
        %v3746 = vpack.c.b16 %v3722, %v3722
        %v3747 = vpack.c.b16 %v3723, %v3723
        %v3748 = vpack.c.b16 %v3724, %v3724
        %v3749 = vpack.c.b16 %v3725, %v3725
        %v3750 = vpack.c.b16 %v3726, %v3726
        %v3752 = vshrl.u32 %v3727, 16
        %v3754 = vrot.slane %v3752, 7
        %v3755 = vshll.u32 %v3727, 16
        %v3757 = vor.u32 %v3754, %v3755
        %v3758 = vrot.slane %v3754, 4
        %v3760 = vshrl.u32 %v3728, 16
        %v3762 = vrot.slane %v3760, 7
        %v3763 = vshll.u32 %v3728, 16
        %v3765 = vor.u32 %v3762, %v3763
        %v3766 = vsel %vm1998, %v3758, %v3765
        %v3767 = vrot.slane %v3762, 4
        %v3769 = vshrl.u32 %v3729, 16
        %v3771 = vrot.slane %v3769, 7
        %v3772 = vshll.u32 %v3729, 16
        %v3774 = vor.u32 %v3771, %v3772
        %v3775 = vsel %vm1998, %v3767, %v3774
        %v3776 = vrot.slane %v3771, 4
        %v3778 = vshrl.u32 %v3730, 16
        %v3780 = vrot.slane %v3778, 7
        %v3781 = vshll.u32 %v3730, 16
        %v3783 = vor.u32 %v3780, %v3781
        %v3784 = vsel %vm1998, %v3776, %v3783
        %v3785 = vrot.slane %v3780, 4
        %v3787 = vshrl.u32 %v3731, 16
        %v3789 = vrot.slane %v3787, 7
        %v3790 = vshll.u32 %v3731, 16
        %v3792 = vor.u32 %v3789, %v3790
        %v3793 = vsel %vm1998, %v3785, %v3792
        %v3794 = vrot.slane %v3789, 4
        %v3796 = vshrl.u32 %v3732, 16
        %v3798 = vrot.slane %v3796, 7
        %v3799 = vshll.u32 %v3732, 16
        %v3801 = vor.u32 %v3798, %v3799
        %v3802 = vsel %vm1998, %v3794, %v3801
        %v3803 = vrot.slane %v3798, 4
        %v3805 = vshrl.u32 %v3733, 16
        %v3807 = vrot.slane %v3805, 7
        %v3808 = vshll.u32 %v3733, 16
        %v3810 = vor.u32 %v3807, %v3808
        %v3811 = vsel %vm1998, %v3803, %v3810
        %v3812 = vrot.slane %v3807, 4
        %v3814 = vshrl.u32 %v3734, 16
        %v3816 = vrot.slane %v3814, 7
        %v3817 = vshll.u32 %v3734, 16
        %v3819 = vor.u32 %v3816, %v3817
        %v3820 = vsel %vm1998, %v3812, %v3819
        %v3821 = vrot.slane %v3816, 4
        %v3823 = vshrl.u32 %v3735, 16
        %v3825 = vrot.slane %v3823, 7
        %v3826 = vshll.u32 %v3735, 16
        %v3828 = vor.u32 %v3825, %v3826
        %v3829 = vsel %vm1998, %v3821, %v3828
        %v3830 = vrot.slane %v3825, 4
        %v3832 = vshrl.u32 %v3736, 16
        %v3834 = vrot.slane %v3832, 7
        %v3835 = vshll.u32 %v3736, 16
        %v3837 = vor.u32 %v3834, %v3835
        %v3838 = vsel %vm1998, %v3830, %v3837
        %v3839 = vrot.slane %v3834, 4
        %v3841 = vshrl.u32 %v3737, 16
        %v3843 = vrot.slane %v3841, 7
        %v3844 = vshll.u32 %v3737, 16
        %v3846 = vor.u32 %v3843, %v3844
        %v3847 = vsel %vm1998, %v3839, %v3846
        %v3848 = vrot.slane %v3843, 4
        %v3850 = vshrl.u32 %v3738, 16
        %v3852 = vrot.slane %v3850, 7
        %v3853 = vshll.u32 %v3738, 16
        %v3855 = vor.u32 %v3852, %v3853
        %v3856 = vsel %vm1998, %v3848, %v3855
        %v3857 = vrot.slane %v3852, 4
        %v3859 = vshrl.u32 %v3739, 16
        %v3861 = vrot.slane %v3859, 7
        %v3862 = vshll.u32 %v3739, 16
        %v3864 = vor.u32 %v3861, %v3862
        %v3865 = vsel %vm1998, %v3857, %v3864
        %v3866 = vrot.slane %v3861, 4
        %v3868 = vshrl.u32 %v3740, 16
        %v3870 = vrot.slane %v3868, 7
        %v3871 = vshll.u32 %v3740, 16
        %v3873 = vor.u32 %v3870, %v3871
        %v3874 = vsel %vm1998, %v3866, %v3873
        %v3875 = vrot.slane %v3870, 4
        %v3877 = vshrl.u32 %v3741, 16
        %v3879 = vrot.slane %v3877, 7
        %v3880 = vshll.u32 %v3741, 16
        %v3882 = vor.u32 %v3879, %v3880
        %v3883 = vsel %vm1998, %v3875, %v3882
        %v3884 = vrot.slane %v3879, 4
        %v3886 = vshrl.u32 %v3742, 16
        %v3888 = vrot.slane %v3886, 7
        %v3889 = vshll.u32 %v3742, 16
        %v3891 = vor.u32 %v3888, %v3889
        %v3892 = vsel %vm1998, %v3884, %v3891
        %v3893 = vrot.slane %v3888, 4
        %v3895 = vshrl.u32 %v3743, 16
        %v3897 = vrot.slane %v3895, 7
        %v3898 = vshll.u32 %v3743, 16
        %v3900 = vor.u32 %v3897, %v3898
        %v3901 = vsel %vm1998, %v3893, %v3900
        %v3902 = vrot.slane %v3897, 4
        %v3904 = vshrl.u32 %v3744, 16
        %v3906 = vrot.slane %v3904, 7
        %v3907 = vshll.u32 %v3744, 16
        %v3909 = vor.u32 %v3906, %v3907
        %v3910 = vsel %vm1998, %v3902, %v3909
        %v3911 = vrot.slane %v3906, 4
        %v3913 = vshrl.u32 %v3745, 16
        %v3915 = vrot.slane %v3913, 7
        %v3916 = vshll.u32 %v3745, 16
        %v3918 = vor.u32 %v3915, %v3916
        %v3919 = vsel %vm1998, %v3911, %v3918
        %v3920 = vrot.slane %v3915, 4
        %v3922 = vshrl.u32 %v3746, 16
        %v3924 = vrot.slane %v3922, 7
        %v3925 = vshll.u32 %v3746, 16
        %v3927 = vor.u32 %v3924, %v3925
        %v3928 = vsel %vm1998, %v3920, %v3927
        %v3929 = vrot.slane %v3924, 4
        %v3931 = vshrl.u32 %v3747, 16
        %v3933 = vrot.slane %v3931, 7
        %v3934 = vshll.u32 %v3747, 16
        %v3936 = vor.u32 %v3933, %v3934
        %v3937 = vsel %vm1998, %v3929, %v3936
        %v3938 = vrot.slane %v3933, 4
        %v3940 = vshrl.u32 %v3748, 16
        %v3942 = vrot.slane %v3940, 7
        %v3943 = vshll.u32 %v3748, 16
        %v3945 = vor.u32 %v3942, %v3943
        %v3946 = vsel %vm1998, %v3938, %v3945
        %v3947 = vrot.slane %v3942, 4
        %v3949 = vshrl.u32 %v3749, 16
        %v3951 = vrot.slane %v3949, 7
        %v3952 = vshll.u32 %v3749, 16
        %v3954 = vor.u32 %v3951, %v3952
        %v3955 = vsel %vm1998, %v3947, %v3954
        %v3956 = vrot.slane %v3951, 4
        %v3958 = vshrl.u32 %v3750, 16
        %v3960 = vrot.slane %v3958, 7
        %v3961 = vshll.u32 %v3750, 16
        %v3963 = vor.u32 %v3960, %v3961
        %v3964 = vsel %vm1998, %v3956, %v3963
        %v3965 = vrot.slane %v3960, 4
        %v3991 = vld [vmem:[#allocation3 + $0x8] sm:$0xf]
        %v3992 = vsel %vm748, %v3757, %v3991
        %3993 = vst [vmem:[#allocation3 + $0x8] sm:$0xf] %v3992
        %3994 = vst.msk [vmem:[#allocation3 + $0xc] sm:$0xf] %vm737, %v3766
        %3995 = vst.msk [vmem:[#allocation3 + $0x10] sm:$0xf] %vm737, %v3775
        %3996 = vst.msk [vmem:[#allocation3 + $0x14] sm:$0xf] %vm737, %v3784
        %3997 = vst.msk [vmem:[#allocation3 + $0x18] sm:$0xf] %vm737, %v3793
        %3998 = vst.msk [vmem:[#allocation3 + $0x1c] sm:$0xf] %vm737, %v3802
        %3999 = vst.msk [vmem:[#allocation3 + $0x20] sm:$0xf] %vm737, %v3811
        %4000 = vst.msk [vmem:[#allocation3 + $0x24] sm:$0xf] %vm737, %v3820
        %4001 = vst.msk [vmem:[#allocation3 + $0x28] sm:$0xf] %vm737, %v3829
        %4002 = vst.msk [vmem:[#allocation3 + $0x2c] sm:$0xf] %vm737, %v3838
        %4003 = vst.msk [vmem:[#allocation3 + $0x30] sm:$0xf] %vm737, %v3847
        %4004 = vst.msk [vmem:[#allocation3 + $0x34] sm:$0xf] %vm737, %v3856
        %4005 = vst.msk [vmem:[#allocation3 + $0x38] sm:$0xf] %vm737, %v3865
        %4006 = vst.msk [vmem:[#allocation3 + $0x3c] sm:$0xf] %vm737, %v3874
        %4007 = vst.msk [vmem:[#allocation3 + $0x40] sm:$0xf] %vm737, %v3883
        %4008 = vst.msk [vmem:[#allocation3 + $0x44] sm:$0xf] %vm737, %v3892
        %4009 = vst.msk [vmem:[#allocation3 + $0x48] sm:$0xf] %vm737, %v3901
        %4010 = vst.msk [vmem:[#allocation3 + $0x4c] sm:$0xf] %vm737, %v3910
        %4011 = vst.msk [vmem:[#allocation3 + $0x50] sm:$0xf] %vm737, %v3919
        %4012 = vst.msk [vmem:[#allocation3 + $0x54] sm:$0xf] %vm737, %v3928
        %4013 = vst.msk [vmem:[#allocation3 + $0x58] sm:$0xf] %vm737, %v3937
        %4014 = vst.msk [vmem:[#allocation3 + $0x5c] sm:$0xf] %vm737, %v3946
        %4015 = vst.msk [vmem:[#allocation3 + $0x60] sm:$0xf] %vm737, %v3955
        %4016 = vst.msk [vmem:[#allocation3 + $0x64] sm:$0xf] %vm737, %v3964
        %v4017 = vld [vmem:[#allocation3 + $0x68] sm:$0x1]
        %v4018 = vsel %vm742, %v3965, %v4017
        %4019 = vst [vmem:[#allocation3 + $0x68] sm:$0x1] %v4018
        %v4020 = vld [vmem:[#allocation3] sm:$0xf]
        %v4021 = vld [vmem:[#allocation3 + $0x4] sm:$0xf]
        %v4022 = vld [vmem:[#allocation3 + $0x8] sm:$0xf]
        %v4023 = vld [vmem:[#allocation3 + $0xc] sm:$0xf]
        %v4024 = vld [vmem:[#allocation3 + $0x10] sm:$0xf]
        %v4025 = vld [vmem:[#allocation3 + $0x14] sm:$0xf]
        %v4026 = vld [vmem:[#allocation3 + $0x18] sm:$0xf]
        %v4027 = vld [vmem:[#allocation3 + $0x1c] sm:$0xf]
        %v4028 = vld [vmem:[#allocation3 + $0x20] sm:$0xf]
        %v4029 = vld [vmem:[#allocation3 + $0x24] sm:$0xf]
        %v4030 = vld [vmem:[#allocation3 + $0x28] sm:$0xf]
        %v4031 = vld [vmem:[#allocation3 + $0x2c] sm:$0xf]
        %v4032 = vld [vmem:[#allocation3 + $0x30] sm:$0xf]
        %v4033 = vld [vmem:[#allocation3 + $0x34] sm:$0xf]
        %v4034 = vld [vmem:[#allocation3 + $0x38] sm:$0xf]
        %v4035 = vld [vmem:[#allocation3 + $0x3c] sm:$0xf]
        %v4036 = vld [vmem:[#allocation3 + $0x40] sm:$0xf]
        %v4037 = vld [vmem:[#allocation3 + $0x44] sm:$0xf]
        %v4038 = vld [vmem:[#allocation3 + $0x48] sm:$0xf]
        %v4039 = vld [vmem:[#allocation3 + $0x4c] sm:$0xf]
        %v4040 = vld [vmem:[#allocation3 + $0x50] sm:$0xf]
        %v4041 = vld [vmem:[#allocation3 + $0x54] sm:$0xf]
        %v4042 = vld [vmem:[#allocation3 + $0x58] sm:$0xf]
        %v4043 = vld [vmem:[#allocation3 + $0x5c] sm:$0xf]
        %v4044 = vld [vmem:[#allocation3 + $0x60] sm:$0x1]
        %v4045 = vld [vmem:[#allocation3] sm:$0xe]
        %v4046 = vld [vmem:[#allocation3 + $0x60] sm:$0xf]
        %v4047 = vld [vmem:[#allocation3 + $0x64] sm:$0xf]
        %v4048 = vld [vmem:[#allocation3 + $0x68] sm:$0x1]
        %v4049 = vld [vmem:[#allocation3 + $0x8] sm:$0xe]
        %v4050 = vld [vmem:[#allocation3 + $0x68] sm:$0xf]
        %v4051 = vld [vmem:[#allocation3 + $0x6c] sm:$0xf]
        %v4052 = vld [vmem:[#allocation3 + $0x70] sm:$0x1]
        %v4053 = vld [vmem:[#allocation3 + $0x10] sm:$0xe]
        %v4078 = vunpack.c.l.b16 %v4020
        %v4079 = vunpack.c.l.b16 %v4021
        %v4080 = vunpack.c.l.b16 %v4022
        %v4081 = vunpack.c.l.b16 %v4023
        %v4082 = vunpack.c.l.b16 %v4024
        %v4083 = vunpack.c.l.b16 %v4025
        %v4084 = vunpack.c.l.b16 %v4026
        %v4085 = vunpack.c.l.b16 %v4027
        %v4086 = vunpack.c.l.b16 %v4028
        %v4087 = vunpack.c.l.b16 %v4029
        %v4088 = vunpack.c.l.b16 %v4030
        %v4089 = vunpack.c.l.b16 %v4031
        %v4090 = vunpack.c.l.b16 %v4032
        %v4091 = vunpack.c.l.b16 %v4033
        %v4092 = vunpack.c.l.b16 %v4034
        %v4093 = vunpack.c.l.b16 %v4035
        %v4094 = vunpack.c.l.b16 %v4036
        %v4095 = vunpack.c.l.b16 %v4037
        %v4096 = vunpack.c.l.b16 %v4038
        %v4097 = vunpack.c.l.b16 %v4039
        %v4098 = vunpack.c.l.b16 %v4040
        %v4099 = vunpack.c.l.b16 %v4041
        %v4100 = vunpack.c.l.b16 %v4042
        %v4101 = vunpack.c.l.b16 %v4043
        %v4102 = vpack.c.b16 %v4079, %v4078
        %v4103 = vpack.c.b16 %v4081, %v4080
        %v4104 = vpack.c.b16 %v4083, %v4082
        %v4105 = vpack.c.b16 %v4085, %v4084
        %v4106 = vpack.c.b16 %v4087, %v4086
        %v4107 = vpack.c.b16 %v4089, %v4088
        %v4108 = vpack.c.b16 %v4091, %v4090
        %v4109 = vpack.c.b16 %v4093, %v4092
        %v4110 = vpack.c.b16 %v4095, %v4094
        %v4111 = vpack.c.b16 %v4097, %v4096
        %v4112 = vpack.c.b16 %v4099, %v4098
        %v4113 = vpack.c.b16 %v4101, %v4100
        %v4115 = vunpack.c.l.b16 %v4044
        %v4116 = vpack.c.b16 %v4115, %v4115
        %v4118 = vshrl.u32 %v4102, 16
        %v4120 = vshll.u32 %v4102, 16
        %v4122 = vrot.slane %v4120, 1
        %v4123 = vor.u32 %v4118, %v4122
        %v4125 = vshll.u32 %v4103, 16
        %v4127 = vrot.slane %v4125, 1
        %v4128 = vsel %vm862, %v4123, %v4127
        %v4129 = vshrl.u32 %v4103, 16
        %v4131 = vor.u32 %v4129, %v4127
        %v4133 = vshll.u32 %v4104, 16
        %v4135 = vrot.slane %v4133, 1
        %v4136 = vsel %vm862, %v4131, %v4135
        %v4137 = vshrl.u32 %v4104, 16
        %v4139 = vor.u32 %v4137, %v4135
        %v4141 = vshll.u32 %v4105, 16
        %v4143 = vrot.slane %v4141, 1
        %v4144 = vsel %vm862, %v4139, %v4143
        %v4145 = vshrl.u32 %v4105, 16
        %v4147 = vor.u32 %v4145, %v4143
        %v4149 = vshll.u32 %v4106, 16
        %v4151 = vrot.slane %v4149, 1
        %v4152 = vsel %vm862, %v4147, %v4151
        %v4153 = vshrl.u32 %v4106, 16
        %v4155 = vor.u32 %v4153, %v4151
        %v4157 = vshll.u32 %v4107, 16
        %v4159 = vrot.slane %v4157, 1
        %v4160 = vsel %vm862, %v4155, %v4159
        %v4161 = vshrl.u32 %v4107, 16
        %v4163 = vor.u32 %v4161, %v4159
        %v4165 = vshll.u32 %v4108, 16
        %v4167 = vrot.slane %v4165, 1
        %v4168 = vsel %vm862, %v4163, %v4167
        %v4169 = vshrl.u32 %v4108, 16
        %v4171 = vor.u32 %v4169, %v4167
        %v4173 = vshll.u32 %v4109, 16
        %v4175 = vrot.slane %v4173, 1
        %v4176 = vsel %vm862, %v4171, %v4175
        %v4177 = vshrl.u32 %v4109, 16
        %v4179 = vor.u32 %v4177, %v4175
        %v4181 = vshll.u32 %v4110, 16
        %v4183 = vrot.slane %v4181, 1
        %v4184 = vsel %vm862, %v4179, %v4183
        %v4185 = vshrl.u32 %v4110, 16
        %v4187 = vor.u32 %v4185, %v4183
        %v4189 = vshll.u32 %v4111, 16
        %v4191 = vrot.slane %v4189, 1
        %v4192 = vsel %vm862, %v4187, %v4191
        %v4193 = vshrl.u32 %v4111, 16
        %v4195 = vor.u32 %v4193, %v4191
        %v4197 = vshll.u32 %v4112, 16
        %v4199 = vrot.slane %v4197, 1
        %v4200 = vsel %vm862, %v4195, %v4199
        %v4201 = vshrl.u32 %v4112, 16
        %v4203 = vor.u32 %v4201, %v4199
        %v4205 = vshll.u32 %v4113, 16
        %v4207 = vrot.slane %v4205, 1
        %v4208 = vsel %vm862, %v4203, %v4207
        %v4209 = vshrl.u32 %v4113, 16
        %v4211 = vor.u32 %v4209, %v4207
        %v4213 = vshll.u32 %v4116, 16
        %v4215 = vrot.slane %v4213, 1
        %v4216 = vsel %vm862, %v4211, %v4215
        %4217 = vrot.lane.b32.xlu0 %v4128, 16
        %v4218 = vpop.permute.xlu0 %4217
        %4219 = vrot.lane.b32.xlu0 %v4136, 16
        %v4220 = vpop.permute.xlu0 %4219
        %4221 = vrot.lane.b32.xlu0 %v4144, 16
        %v4222 = vpop.permute.xlu0 %4221
        %4223 = vrot.lane.b32.xlu0 %v4152, 16
        %v4224 = vpop.permute.xlu0 %4223
        %4225 = vrot.lane.b32.xlu0 %v4160, 16
        %v4226 = vpop.permute.xlu0 %4225
        %4227 = vrot.lane.b32.xlu0 %v4168, 16
        %v4228 = vpop.permute.xlu0 %4227
        %4229 = vrot.lane.b32.xlu0 %v4176, 16
        %v4230 = vpop.permute.xlu0 %4229
        %4231 = vrot.lane.b32.xlu0 %v4184, 16
        %v4232 = vpop.permute.xlu0 %4231
        %4233 = vrot.lane.b32.xlu0 %v4192, 16
        %v4234 = vpop.permute.xlu0 %4233
        %4235 = vrot.lane.b32.xlu0 %v4200, 16
        %v4236 = vpop.permute.xlu0 %4235
        %4237 = vrot.lane.b32.xlu0 %v4208, 16
        %v4238 = vpop.permute.xlu0 %4237
        %4239 = vrot.lane.b32.xlu0 %v4216, 16
        %v4240 = vpop.permute.xlu0 %4239
        %v4242 = vunpack.c.l.b16 %v4045
        %v4243 = vpack.c.b16 %v4079, %v4242
        %v4244 = vrot.slane %v4243, 1
        %v4245 = vrot.slane %v4103, 1
        %v4246 = vsel %vm990, %v4244, %v4245
        %v4247 = vrot.slane %v4104, 1
        %v4248 = vsel %vm990, %v4245, %v4247
        %v4249 = vrot.slane %v4105, 1
        %v4250 = vsel %vm990, %v4247, %v4249
        %v4251 = vrot.slane %v4106, 1
        %v4252 = vsel %vm990, %v4249, %v4251
        %v4253 = vrot.slane %v4107, 1
        %v4254 = vsel %vm990, %v4251, %v4253
        %v4255 = vrot.slane %v4108, 1
        %v4256 = vsel %vm990, %v4253, %v4255
        %v4257 = vrot.slane %v4109, 1
        %v4258 = vsel %vm990, %v4255, %v4257
        %v4259 = vrot.slane %v4110, 1
        %v4260 = vsel %vm990, %v4257, %v4259
        %v4261 = vrot.slane %v4111, 1
        %v4262 = vsel %vm990, %v4259, %v4261
        %v4263 = vrot.slane %v4112, 1
        %v4264 = vsel %vm990, %v4261, %v4263
        %v4265 = vrot.slane %v4113, 1
        %v4266 = vsel %vm990, %v4263, %v4265
        %v4267 = vrot.slane %v4116, 1
        %v4268 = vsel %vm990, %v4265, %v4267
        %4269 = vrot.lane.b32.xlu0 %v4246, 32
        %v4270 = vpop.permute.xlu0 %4269
        %4271 = vrot.lane.b32.xlu0 %v4248, 32
        %v4272 = vpop.permute.xlu0 %4271
        %4273 = vrot.lane.b32.xlu0 %v4250, 32
        %v4274 = vpop.permute.xlu0 %4273
        %4275 = vrot.lane.b32.xlu0 %v4252, 32
        %v4276 = vpop.permute.xlu0 %4275
        %4277 = vrot.lane.b32.xlu0 %v4254, 32
        %v4278 = vpop.permute.xlu0 %4277
        %4279 = vrot.lane.b32.xlu0 %v4256, 32
        %v4280 = vpop.permute.xlu0 %4279
        %4281 = vrot.lane.b32.xlu0 %v4258, 32
        %v4282 = vpop.permute.xlu0 %4281
        %4283 = vrot.lane.b32.xlu0 %v4260, 32
        %v4284 = vpop.permute.xlu0 %4283
        %4285 = vrot.lane.b32.xlu0 %v4262, 32
        %v4286 = vpop.permute.xlu0 %4285
        %4287 = vrot.lane.b32.xlu0 %v4264, 32
        %v4288 = vpop.permute.xlu0 %4287
        %4289 = vrot.lane.b32.xlu0 %v4266, 32
        %v4290 = vpop.permute.xlu0 %4289
        %4291 = vrot.lane.b32.xlu0 %v4268, 32
        %v4292 = vpop.permute.xlu0 %4291
        %v4295 = vunpack.c.l.b16 %v4046
        %v4296 = vunpack.c.l.b16 %v4047
        %v4297 = vpack.c.b16 %v4296, %v4295
        %4298 = vrot.lane.b32.xlu0 %v4103, 48
        %v4299 = vpop.permute.xlu0 %4298
        %4300 = vrot.lane.b32.xlu0 %v4104, 48
        %v4301 = vpop.permute.xlu0 %4300
        %4302 = vrot.lane.b32.xlu0 %v4105, 48
        %v4303 = vpop.permute.xlu0 %4302
        %4304 = vrot.lane.b32.xlu0 %v4106, 48
        %v4305 = vpop.permute.xlu0 %4304
        %4306 = vrot.lane.b32.xlu0 %v4107, 48
        %v4307 = vpop.permute.xlu0 %4306
        %4308 = vrot.lane.b32.xlu0 %v4108, 48
        %v4309 = vpop.permute.xlu0 %4308
        %4310 = vrot.lane.b32.xlu0 %v4109, 48
        %v4311 = vpop.permute.xlu0 %4310
        %4312 = vrot.lane.b32.xlu0 %v4110, 48
        %v4313 = vpop.permute.xlu0 %4312
        %4314 = vrot.lane.b32.xlu0 %v4111, 48
        %v4315 = vpop.permute.xlu0 %4314
        %4316 = vrot.lane.b32.xlu0 %v4112, 48
        %v4317 = vpop.permute.xlu0 %4316
        %4318 = vrot.lane.b32.xlu0 %v4113, 48
        %v4319 = vpop.permute.xlu0 %4318
        %4320 = vrot.lane.b32.xlu0 %v4297, 48
        %v4321 = vpop.permute.xlu0 %4320
        %v4323 = vunpack.c.l.b16 %v4048
        %v4324 = vpack.c.b16 %v4323, %v4323
        %v4326 = vshll.u32 %v4297, 16
        %v4328 = vrot.slane %v4326, 1
        %v4329 = vsel %vm862, %v4211, %v4328
        %v4330 = vshrl.u32 %v4297, 16
        %v4332 = vor.u32 %v4330, %v4328
        %v4334 = vshll.u32 %v4324, 16
        %v4336 = vrot.slane %v4334, 1
        %v4337 = vsel %vm862, %v4332, %v4336
        %4338 = vrot.lane.b32.xlu0 %v4136, 64
        %v4339 = vpop.permute.xlu0 %4338
        %4340 = vrot.lane.b32.xlu0 %v4144, 64
        %v4341 = vpop.permute.xlu0 %4340
        %4342 = vrot.lane.b32.xlu0 %v4152, 64
        %v4343 = vpop.permute.xlu0 %4342
        %4344 = vrot.lane.b32.xlu0 %v4160, 64
        %v4345 = vpop.permute.xlu0 %4344
        %4346 = vrot.lane.b32.xlu0 %v4168, 64
        %v4347 = vpop.permute.xlu0 %4346
        %4348 = vrot.lane.b32.xlu0 %v4176, 64
        %v4349 = vpop.permute.xlu0 %4348
        %4350 = vrot.lane.b32.xlu0 %v4184, 64
        %v4351 = vpop.permute.xlu0 %4350
        %4352 = vrot.lane.b32.xlu0 %v4192, 64
        %v4353 = vpop.permute.xlu0 %4352
        %4354 = vrot.lane.b32.xlu0 %v4200, 64
        %v4355 = vpop.permute.xlu0 %4354
        %4356 = vrot.lane.b32.xlu0 %v4208, 64
        %v4357 = vpop.permute.xlu0 %4356
        %4358 = vrot.lane.b32.xlu0 %v4329, 64
        %v4359 = vpop.permute.xlu0 %4358
        %4360 = vrot.lane.b32.xlu0 %v4337, 64
        %v4361 = vpop.permute.xlu0 %4360
        %v4363 = vunpack.c.l.b16 %v4049
        %v4364 = vpack.c.b16 %v4081, %v4363
        %v4365 = vrot.slane %v4364, 1
        %v4366 = vsel %vm990, %v4365, %v4247
        %v4367 = vrot.slane %v4297, 1
        %v4368 = vsel %vm990, %v4265, %v4367
        %v4369 = vrot.slane %v4324, 1
        %v4370 = vsel %vm990, %v4367, %v4369
        %4371 = vrot.lane.b32.xlu0 %v4366, 80
        %v4372 = vpop.permute.xlu0 %4371
        %4373 = vrot.lane.b32.xlu0 %v4250, 80
        %v4374 = vpop.permute.xlu0 %4373
        %4375 = vrot.lane.b32.xlu0 %v4252, 80
        %v4376 = vpop.permute.xlu0 %4375
        %4377 = vrot.lane.b32.xlu0 %v4254, 80
        %v4378 = vpop.permute.xlu0 %4377
        %4379 = vrot.lane.b32.xlu0 %v4256, 80
        %v4380 = vpop.permute.xlu0 %4379
        %4381 = vrot.lane.b32.xlu0 %v4258, 80
        %v4382 = vpop.permute.xlu0 %4381
        %4383 = vrot.lane.b32.xlu0 %v4260, 80
        %v4384 = vpop.permute.xlu0 %4383
        %4385 = vrot.lane.b32.xlu0 %v4262, 80
        %v4386 = vpop.permute.xlu0 %4385
        %4387 = vrot.lane.b32.xlu0 %v4264, 80
        %v4388 = vpop.permute.xlu0 %4387
        %4389 = vrot.lane.b32.xlu0 %v4266, 80
        %v4390 = vpop.permute.xlu0 %4389
        %4391 = vrot.lane.b32.xlu0 %v4368, 80
        %v4392 = vpop.permute.xlu0 %4391
        %4393 = vrot.lane.b32.xlu0 %v4370, 80
        %v4394 = vpop.permute.xlu0 %4393
        %v4397 = vunpack.c.l.b16 %v4050
        %v4398 = vunpack.c.l.b16 %v4051
        %v4399 = vpack.c.b16 %v4398, %v4397
        %4400 = vrot.lane.b32.xlu0 %v4104, 96
        %v4401 = vpop.permute.xlu0 %4400
        %4402 = vrot.lane.b32.xlu0 %v4105, 96
        %v4403 = vpop.permute.xlu0 %4402
        %4404 = vrot.lane.b32.xlu0 %v4106, 96
        %v4405 = vpop.permute.xlu0 %4404
        %4406 = vrot.lane.b32.xlu0 %v4107, 96
        %v4407 = vpop.permute.xlu0 %4406
        %4408 = vrot.lane.b32.xlu0 %v4108, 96
        %v4409 = vpop.permute.xlu0 %4408
        %4410 = vrot.lane.b32.xlu0 %v4109, 96
        %v4411 = vpop.permute.xlu0 %4410
        %4412 = vrot.lane.b32.xlu0 %v4110, 96
        %v4413 = vpop.permute.xlu0 %4412
        %4414 = vrot.lane.b32.xlu0 %v4111, 96
        %v4415 = vpop.permute.xlu0 %4414
        %4416 = vrot.lane.b32.xlu0 %v4112, 96
        %v4417 = vpop.permute.xlu0 %4416
        %4418 = vrot.lane.b32.xlu0 %v4113, 96
        %v4419 = vpop.permute.xlu0 %4418
        %4420 = vrot.lane.b32.xlu0 %v4297, 96
        %v4421 = vpop.permute.xlu0 %4420
        %4422 = vrot.lane.b32.xlu0 %v4399, 96
        %v4423 = vpop.permute.xlu0 %4422
        %v4425 = vunpack.c.l.b16 %v4052
        %v4426 = vpack.c.b16 %v4425, %v4425
        %v4428 = vshll.u32 %v4399, 16
        %v4430 = vrot.slane %v4428, 1
        %v4431 = vsel %vm862, %v4332, %v4430
        %v4432 = vshrl.u32 %v4399, 16
        %v4434 = vor.u32 %v4432, %v4430
        %v4436 = vshll.u32 %v4426, 16
        %v4438 = vrot.slane %v4436, 1
        %v4439 = vsel %vm862, %v4434, %v4438
        %4440 = vrot.lane.b32.xlu0 %v4144, 112
        %v4441 = vpop.permute.xlu0 %4440
        %4442 = vrot.lane.b32.xlu0 %v4152, 112
        %v4443 = vpop.permute.xlu0 %4442
        %4444 = vrot.lane.b32.xlu0 %v4160, 112
        %v4445 = vpop.permute.xlu0 %4444
        %4446 = vrot.lane.b32.xlu0 %v4168, 112
        %v4447 = vpop.permute.xlu0 %4446
        %4448 = vrot.lane.b32.xlu0 %v4176, 112
        %v4449 = vpop.permute.xlu0 %4448
        %4450 = vrot.lane.b32.xlu0 %v4184, 112
        %v4451 = vpop.permute.xlu0 %4450
        %4452 = vrot.lane.b32.xlu0 %v4192, 112
        %v4453 = vpop.permute.xlu0 %4452
        %4454 = vrot.lane.b32.xlu0 %v4200, 112
        %v4455 = vpop.permute.xlu0 %4454
        %4456 = vrot.lane.b32.xlu0 %v4208, 112
        %v4457 = vpop.permute.xlu0 %4456
        %4458 = vrot.lane.b32.xlu0 %v4329, 112
        %v4459 = vpop.permute.xlu0 %4458
        %4460 = vrot.lane.b32.xlu0 %v4431, 112
        %v4461 = vpop.permute.xlu0 %4460
        %4462 = vrot.lane.b32.xlu0 %v4439, 112
        %v4463 = vpop.permute.xlu0 %4462
        %v4465 = vunpack.c.l.b16 %v4053
        %v4466 = vpack.c.b16 %v4083, %v4465
        %v4467 = vrot.slane %v4466, 1
        %v4468 = vsel %vm990, %v4467, %v4249
        %v4469 = vrot.slane %v4399, 1
        %v4470 = vsel %vm990, %v4367, %v4469
        %v4471 = vrot.slane %v4426, 1
        %v4472 = vsel %vm990, %v4469, %v4471
        %v4474 = vsel %vm2721, %v4102, %v4218
        %v4476 = vsel %vm2721, %v4103, %v4220
        %v4478 = vsel %vm2721, %v4104, %v4222
        %v4480 = vsel %vm2721, %v4105, %v4224
        %v4482 = vsel %vm2721, %v4106, %v4226
        %v4484 = vsel %vm2721, %v4107, %v4228
        %v4486 = vsel %vm2721, %v4108, %v4230
        %v4488 = vsel %vm2721, %v4109, %v4232
        %v4490 = vsel %vm2721, %v4110, %v4234
        %v4492 = vsel %vm2721, %v4111, %v4236
        %v4494 = vsel %vm2721, %v4112, %v4238
        %v4496 = vsel %vm2721, %v4113, %v4240
        %v4498 = vsel %vm1196, %v4474, %v4270
        %v4500 = vsel %vm1196, %v4476, %v4272
        %v4502 = vsel %vm1196, %v4478, %v4274
        %v4504 = vsel %vm1196, %v4480, %v4276
        %v4506 = vsel %vm1196, %v4482, %v4278
        %v4508 = vsel %vm1196, %v4484, %v4280
        %v4510 = vsel %vm1196, %v4486, %v4282
        %v4512 = vsel %vm1196, %v4488, %v4284
        %v4514 = vsel %vm1196, %v4490, %v4286
        %v4516 = vsel %vm1196, %v4492, %v4288
        %v4518 = vsel %vm1196, %v4494, %v4290
        %v4520 = vsel %vm1196, %v4496, %v4292
        %v4522 = vsel %vm2770, %v4498, %v4299
        %v4524 = vsel %vm2770, %v4500, %v4301
        %v4526 = vsel %vm2770, %v4502, %v4303
        %v4528 = vsel %vm2770, %v4504, %v4305
        %v4530 = vsel %vm2770, %v4506, %v4307
        %v4532 = vsel %vm2770, %v4508, %v4309
        %v4534 = vsel %vm2770, %v4510, %v4311
        %v4536 = vsel %vm2770, %v4512, %v4313
        %v4538 = vsel %vm2770, %v4514, %v4315
        %v4540 = vsel %vm2770, %v4516, %v4317
        %v4542 = vsel %vm2770, %v4518, %v4319
        %v4544 = vsel %vm2770, %v4520, %v4321
        %v4546 = vsel %vm1221, %v4522, %v4339
        %v4548 = vsel %vm1221, %v4524, %v4341
        %v4550 = vsel %vm1221, %v4526, %v4343
        %v4552 = vsel %vm1221, %v4528, %v4345
        %v4554 = vsel %vm1221, %v4530, %v4347
        %v4556 = vsel %vm1221, %v4532, %v4349
        %v4558 = vsel %vm1221, %v4534, %v4351
        %v4560 = vsel %vm1221, %v4536, %v4353
        %v4562 = vsel %vm1221, %v4538, %v4355
        %v4564 = vsel %vm1221, %v4540, %v4357
        %v4566 = vsel %vm1221, %v4542, %v4359
        %v4568 = vsel %vm1221, %v4544, %v4361
        %v4570 = vsel %vm2819, %v4546, %v4372
        %v4572 = vsel %vm2819, %v4548, %v4374
        %v4574 = vsel %vm2819, %v4550, %v4376
        %v4576 = vsel %vm2819, %v4552, %v4378
        %v4578 = vsel %vm2819, %v4554, %v4380
        %v4580 = vsel %vm2819, %v4556, %v4382
        %v4582 = vsel %vm2819, %v4558, %v4384
        %v4584 = vsel %vm2819, %v4560, %v4386
        %v4586 = vsel %vm2819, %v4562, %v4388
        %v4588 = vsel %vm2819, %v4564, %v4390
        %v4590 = vsel %vm2819, %v4566, %v4392
        %v4592 = vsel %vm2819, %v4568, %v4394
        %v4594 = vsel %vm1246, %v4570, %v4401
        %v4596 = vsel %vm1246, %v4572, %v4403
        %v4598 = vsel %vm1246, %v4574, %v4405
        %v4600 = vsel %vm1246, %v4576, %v4407
        %v4602 = vsel %vm1246, %v4578, %v4409
        %v4604 = vsel %vm1246, %v4580, %v4411
        %v4606 = vsel %vm1246, %v4582, %v4413
        %v4608 = vsel %vm1246, %v4584, %v4415
        %v4610 = vsel %vm1246, %v4586, %v4417
        %v4612 = vsel %vm1246, %v4588, %v4419
        %v4614 = vsel %vm1246, %v4590, %v4421
        %v4616 = vsel %vm1246, %v4592, %v4423
        %v4618 = vsel %vm2868, %v4594, %v4441
        %v4621 = vsel %vm2868, %v4596, %v4443
        %v4624 = vsel %vm2868, %v4598, %v4445
        %v4627 = vsel %vm2868, %v4600, %v4447
        %v4630 = vsel %vm2868, %v4602, %v4449
        %v4633 = vsel %vm2868, %v4604, %v4451
        %v4636 = vsel %vm2868, %v4606, %v4453
        %v4639 = vsel %vm2868, %v4608, %v4455
        %v4642 = vsel %vm2868, %v4610, %v4457
        %v4645 = vsel %vm2868, %v4612, %v4459
        %v4648 = vsel %vm2868, %v4614, %v4461
        %v4651 = vsel %vm2868, %v4616, %v4463
        %v4653 = vld [vmem:[%s4] sm:$0xf]
        %v4654 = vld [vmem:[%s4 + $0x4] sm:$0xf]
        %v4655 = vld [vmem:[%s4 + $0x8] sm:$0xf]
        %v4656 = vld [vmem:[%s4 + $0xc] sm:$0xf]
        %v4657 = vld [vmem:[%s4 + $0x10] sm:$0xf]
        %v4658 = vld [vmem:[%s4 + $0x14] sm:$0xf]
        %v4659 = vld [vmem:[%s4 + $0x18] sm:$0xf]
        %v4660 = vld [vmem:[%s4 + $0x1c] sm:$0xf]
        %v4661 = vld [vmem:[%s4 + $0x20] sm:$0xf]
        %v4662 = vld [vmem:[%s4 + $0x24] sm:$0xf]
        %v4663 = vld [vmem:[%s4 + $0x28] sm:$0xf]
        %v4664 = vld [vmem:[%s4 + $0x2c] sm:$0xf]
        %v4665 = vld [vmem:[%s4 + $0x30] sm:$0xf]
        %v4666 = vld [vmem:[%s4 + $0x34] sm:$0xf]
        %v4667 = vld [vmem:[%s4 + $0x38] sm:$0xf]
        %v4668 = vld [vmem:[%s4 + $0x3c] sm:$0xf]
        %v4669 = vld [vmem:[%s4 + $0x40] sm:$0xf]
        %v4670 = vld [vmem:[%s4 + $0x44] sm:$0xf]
        %v4689 = vunpack.c.l.b16 %v4653
        %v4690 = vunpack.c.l.b16 %v4654
        %v4691 = vunpack.c.l.b16 %v4655
        %v4692 = vunpack.c.l.b16 %v4656
        %v4693 = vunpack.c.l.b16 %v4657
        %v4694 = vunpack.c.l.b16 %v4658
        %v4695 = vunpack.c.l.b16 %v4659
        %v4696 = vunpack.c.l.b16 %v4660
        %v4697 = vunpack.c.l.b16 %v4661
        %v4698 = vunpack.c.l.b16 %v4662
        %v4699 = vunpack.c.l.b16 %v4663
        %v4700 = vunpack.c.l.b16 %v4664
        %v4701 = vunpack.c.l.b16 %v4665
        %v4702 = vunpack.c.l.b16 %v4666
        %v4703 = vunpack.c.l.b16 %v4667
        %v4704 = vunpack.c.l.b16 %v4668
        %v4705 = vunpack.c.l.b16 %v4669
        %v4706 = vunpack.c.l.b16 %v4670
        %v4707 = vpack.c.b16 %v4690, %v4689
        %v4708 = vpack.c.b16 %v4692, %v4691
        %v4709 = vpack.c.b16 %v4694, %v4693
        %v4710 = vpack.c.b16 %v4696, %v4695
        %v4711 = vpack.c.b16 %v4698, %v4697
        %v4712 = vpack.c.b16 %v4700, %v4699
        %v4713 = vpack.c.b16 %v4702, %v4701
        %v4714 = vpack.c.b16 %v4704, %v4703
        %v4715 = vpack.c.b16 %v4706, %v4705
        %v4726 = vsel %vm2721, %v4468, 0
        %v4729 = vsel %vm2721, %v4252, 0
        %v4732 = vsel %vm2721, %v4254, 0
        %v4735 = vsel %vm2721, %v4256, 0
        %v4738 = vsel %vm2721, %v4258, 0
        %v4741 = vsel %vm2721, %v4260, 0
        %v4744 = vsel %vm2721, %v4262, 0
        %v4747 = vsel %vm2721, %v4264, 0
        %v4750 = vsel %vm2721, %v4266, 0
        %v4753 = vsel %vm2721, %v4368, 0
        %v4756 = vsel %vm2721, %v4470, 0
        %v4759 = vsel %vm2721, %v4472, 0
        %4761 = vmatprep.subr.bf16.mxu0 0
        %4762 = vmatpush1.bf16.msra.mxu0 %v4707
        %4763 = vmatprep.subr.bf16.mxu0 0
        %4764 = vmatpush1.bf16.msra.mxu0 %v4708
        %4765 = vmatprep.subr.bf16.mxu0 0
        %4766 = vmatpush1.bf16.msra.mxu0 %v4709
        %4767 = vmatprep.subr.bf16.mxu0 0
        %4768 = vmatpush1.bf16.msra.mxu0 %v4710
        %4769 = vmatprep.subr.bf16.mxu0 0
        %4770 = vmatpush1.bf16.msra.mxu0 %v4711
        %4771 = vmatprep.subr.bf16.mxu0 0
        %4772 = vmatpush1.bf16.msra.mxu0 %v4712
        %4773 = vmatprep.subr.bf16.mxu0 0
        %4774 = vmatpush1.bf16.msra.mxu0 %v4713
        %4775 = vmatprep.subr.bf16.mxu0 0
        %4776 = vmatpush1.bf16.msra.mxu0 %v4714
        %4777 = vmatprep.subr.bf16.mxu0 0
        %4778 = vmatpush1.bf16.msra.mxu0 %v4715
        %4779 = vmatprep.subr.bf16.mxu0 0
        %4780 = vmatpush1.bf16.msra.mxu0 0
        %4781 = vmatprep.subr.bf16.mxu0 0
        %4782 = vmatpush1.bf16.msra.mxu0 0
        %4783 = vmatprep.subr.bf16.mxu0 0
        %4784 = vmatpush1.bf16.msra.mxu0 0
        %4785 = vmatprep.subr.bf16.mxu0 0
        %4786 = vmatpush1.bf16.msra.mxu0 0
        %4787 = vmatprep.subr.bf16.mxu0 0
        %4788 = vmatpush1.bf16.msra.mxu0 0
        %4789 = vmatprep.subr.bf16.mxu0 0
        %4790 = vmatpush1.bf16.msra.mxu0 0
        %4791 = vmatprep.subr.bf16.mxu0 0
        %4792 = vmatpush1.bf16.msra.mxu0 0
        %4793 = vmatprep.mubr.bf16.mxu0 %v4726
        %4794 = vmatmul.mubr.bf16.gmra.mrb[0].mxu0 %v4618
        %v4795 = vpop.f32.mrb[0].mxu0
        %v4796 = vadd.f32 0.0, %v4795
        %v4797 = vpop.f32.mrb[0].mxu0
        %v4798 = vpop.f32.mrb[0].mxu0
        %v4799 = vadd.f32 0.0, %v4798
        %v4800 = vpop.f32.mrb[0].mxu0
        %4801 = vmatprep.mubr.bf16.mxu0 %v4729
        %4802 = vmatmul.mubr.bf16.gmra.mrb[0].mxu0 %v4621
        %v4803 = vpop.f32.mrb[0].mxu0
        %v4804 = vadd.f32 0.0, %v4803
        %v4805 = vpop.f32.mrb[0].mxu0
        %v4806 = vpop.f32.mrb[0].mxu0
        %v4807 = vadd.f32 0.0, %v4806
        %v4808 = vpop.f32.mrb[0].mxu0
        %4809 = vmatprep.mubr.bf16.mxu0 %v4732
        %4810 = vmatmul.mubr.bf16.gmra.mrb[0].mxu0 %v4624
        %v4811 = vpop.f32.mrb[0].mxu0
        %v4812 = vadd.f32 0.0, %v4811
        %v4813 = vpop.f32.mrb[0].mxu0
        %v4814 = vpop.f32.mrb[0].mxu0
        %v4815 = vadd.f32 0.0, %v4814
        %v4816 = vpop.f32.mrb[0].mxu0
        %4817 = vmatprep.mubr.bf16.mxu0 %v4735
        %4818 = vmatmul.mubr.bf16.gmra.mrb[0].mxu0 %v4627
        %v4819 = vpop.f32.mrb[0].mxu0
        %v4820 = vadd.f32 0.0, %v4819
        %v4821 = vpop.f32.mrb[0].mxu0
        %v4822 = vpop.f32.mrb[0].mxu0
        %v4823 = vadd.f32 0.0, %v4822
        %v4824 = vpop.f32.mrb[0].mxu0
        %4825 = vmatprep.mubr.bf16.mxu0 %v4738
        %4826 = vmatmul.mubr.bf16.gmra.mrb[0].mxu0 %v4630
        %v4827 = vpop.f32.mrb[0].mxu0
        %v4828 = vadd.f32 0.0, %v4827
        %v4829 = vpop.f32.mrb[0].mxu0
        %v4830 = vpop.f32.mrb[0].mxu0
        %v4831 = vadd.f32 0.0, %v4830
        %v4832 = vpop.f32.mrb[0].mxu0
        %4833 = vmatprep.mubr.bf16.mxu0 %v4741
        %4834 = vmatmul.mubr.bf16.gmra.mrb[0].mxu0 %v4633
        %v4835 = vpop.f32.mrb[0].mxu0
        %v4836 = vadd.f32 0.0, %v4835
        %v4837 = vpop.f32.mrb[0].mxu0
        %v4838 = vpop.f32.mrb[0].mxu0
        %v4839 = vadd.f32 0.0, %v4838
        %v4840 = vpop.f32.mrb[0].mxu0
        %4841 = vmatprep.mubr.bf16.mxu0 %v4744
        %4842 = vmatmul.mubr.bf16.gmra.mrb[0].mxu0 %v4636
        %v4843 = vpop.f32.mrb[0].mxu0
        %v4844 = vadd.f32 0.0, %v4843
        %v4845 = vpop.f32.mrb[0].mxu0
        %v4846 = vpop.f32.mrb[0].mxu0
        %v4847 = vadd.f32 0.0, %v4846
        %v4848 = vpop.f32.mrb[0].mxu0
        %4849 = vmatprep.mubr.bf16.mxu0 %v4747
        %4850 = vmatmul.mubr.bf16.gmra.mrb[0].mxu0 %v4639
        %v4851 = vpop.f32.mrb[0].mxu0
        %v4852 = vadd.f32 0.0, %v4851
        %v4853 = vpop.f32.mrb[0].mxu0
        %v4854 = vpop.f32.mrb[0].mxu0
        %v4855 = vadd.f32 0.0, %v4854
        %v4856 = vpop.f32.mrb[0].mxu0
        %4857 = vmatprep.mubr.bf16.mxu0 %v4750
        %4858 = vmatmul.mubr.bf16.gmra.mrb[0].mxu0 %v4642
        %v4859 = vpop.f32.mrb[0].mxu0
        %v4860 = vadd.f32 0.0, %v4859
        %v4861 = vpop.f32.mrb[0].mxu0
        %v4862 = vpop.f32.mrb[0].mxu0
        %v4863 = vadd.f32 0.0, %v4862
        %v4864 = vpop.f32.mrb[0].mxu0
        %4865 = vmatprep.mubr.bf16.mxu0 %v4753
        %4866 = vmatmul.mubr.bf16.gmra.mrb[0].mxu0 %v4645
        %v4867 = vpop.f32.mrb[0].mxu0
        %v4868 = vadd.f32 0.0, %v4867
        %v4869 = vpop.f32.mrb[0].mxu0
        %v4870 = vpop.f32.mrb[0].mxu0
        %v4871 = vadd.f32 0.0, %v4870
        %v4872 = vpop.f32.mrb[0].mxu0
        %4873 = vmatprep.mubr.bf16.mxu0 %v4756
        %4874 = vmatmul.mubr.bf16.gmra.mrb[0].mxu0 %v4648
        %v4875 = vpop.f32.mrb[0].mxu0
        %v4876 = vadd.f32 0.0, %v4875
        %v4877 = vpop.f32.mrb[0].mxu0
        %v4878 = vpop.f32.mrb[0].mxu0
        %v4879 = vadd.f32 0.0, %v4878
        %v4880 = vpop.f32.mrb[0].mxu0
        %4881 = vmatprep.mubr.bf16.mxu0 %v4759
        %4882 = vmatmul.mubr.bf16.gmra.mrb[0].mxu0 %v4651
        %v4883 = vpop.f32.mrb[0].mxu0
        %v4884 = vadd.f32 0.0, %v4883
        %v4885 = vpop.f32.mrb[0].mxu0
        %v4886 = vpop.f32.mrb[0].mxu0
        %v4887 = vadd.f32 0.0, %v4886
        %v4888 = vpop.f32.mrb[0].mxu0
        %4889 = vdwg.mxu0
        %v4890 = vmul.f32 %v4796, %v1821
        %v4891 = vmul.f32 %v4799, %v1821
        %v4892 = vmul.f32 %v4804, %v1821
        %v4893 = vmul.f32 %v4807, %v1821
        %v4894 = vmul.f32 %v4812, %v1821
        %v4895 = vmul.f32 %v4815, %v1821
        %v4896 = vmul.f32 %v4820, %v1821
        %v4897 = vmul.f32 %v4823, %v1821
        %v4898 = vmul.f32 %v4828, %v1821
        %v4899 = vmul.f32 %v4831, %v1821
        %v4900 = vmul.f32 %v4836, %v1821
        %v4901 = vmul.f32 %v4839, %v1821
        %v4902 = vmul.f32 %v4844, %v1821
        %v4903 = vmul.f32 %v4847, %v1821
        %v4904 = vmul.f32 %v4852, %v1821
        %v4905 = vmul.f32 %v4855, %v1821
        %v4906 = vmul.f32 %v4860, %v1821
        %v4907 = vmul.f32 %v4863, %v1821
        %v4908 = vmul.f32 %v4868, %v1821
        %v4909 = vmul.f32 %v4871, %v1821
        %v4910 = vmul.f32 %v4876, %v1821
        %v4911 = vmul.f32 %v4879, %v1821
        %v4912 = vmul.f32 %v4884, %v1821
        %v4913 = vmul.f32 %v4887, %v1821
        %v4914 = vadd.f32 %v4890, %v1851
        %v4915 = vadd.f32 %v4891, %v1851
        %v4916 = vadd.f32 %v4892, %v1851
        %v4917 = vadd.f32 %v4893, %v1851
        %v4918 = vadd.f32 %v4894, %v1851
        %v4919 = vadd.f32 %v4895, %v1851
        %v4920 = vadd.f32 %v4896, %v1851
        %v4921 = vadd.f32 %v4897, %v1851
        %v4922 = vadd.f32 %v4898, %v1851
        %v4923 = vadd.f32 %v4899, %v1851
        %v4924 = vadd.f32 %v4900, %v1851
        %v4925 = vadd.f32 %v4901, %v1851
        %v4926 = vadd.f32 %v4902, %v1851
        %v4927 = vadd.f32 %v4903, %v1851
        %v4928 = vadd.f32 %v4904, %v1851
        %v4929 = vadd.f32 %v4905, %v1851
        %v4930 = vadd.f32 %v4906, %v1851
        %v4931 = vadd.f32 %v4907, %v1851
        %v4932 = vadd.f32 %v4908, %v1851
        %v4933 = vadd.f32 %v4909, %v1851
        %v4934 = vadd.f32 %v4910, %v1851
        %v4935 = vadd.f32 %v4911, %v1851
        %v4936 = vadd.f32 %v4912, %v1851
        %v4937 = vadd.f32 %v4913, %v1851
        %v4938 = vmax.f32 %v4914, 0.0
        %v4939 = vmax.f32 %v4915, 0.0
        %v4940 = vmax.f32 %v4916, 0.0
        %v4941 = vmax.f32 %v4917, 0.0
        %v4942 = vmax.f32 %v4918, 0.0
        %v4943 = vmax.f32 %v4919, 0.0
        %v4944 = vmax.f32 %v4920, 0.0
        %v4945 = vmax.f32 %v4921, 0.0
        %v4946 = vmax.f32 %v4922, 0.0
        %v4947 = vmax.f32 %v4923, 0.0
        %v4948 = vmax.f32 %v4924, 0.0
        %v4949 = vmax.f32 %v4925, 0.0
        %v4950 = vmax.f32 %v4926, 0.0
        %v4951 = vmax.f32 %v4927, 0.0
        %v4952 = vmax.f32 %v4928, 0.0
        %v4953 = vmax.f32 %v4929, 0.0
        %v4954 = vmax.f32 %v4930, 0.0
        %v4955 = vmax.f32 %v4931, 0.0
        %v4956 = vmax.f32 %v4932, 0.0
        %v4957 = vmax.f32 %v4933, 0.0
        %v4958 = vmax.f32 %v4934, 0.0
        %v4959 = vmax.f32 %v4935, 0.0
        %v4960 = vmax.f32 %v4936, 0.0
        %v4961 = vmax.f32 %v4937, 0.0
        %v4962 = vsel %vm713, %v4938, 0.0
        %v4963 = vsel %vm714, %v4939, 0.0
        %v4964 = vsel %vm715, %v4940, 0.0
        %v4965 = vsel %vm716, %v4941, 0.0
        %v4966 = vsel %vm717, %v4942, 0.0
        %v4967 = vsel %vm718, %v4943, 0.0
        %v4968 = vsel %vm719, %v4944, 0.0
        %v4969 = vsel %vm720, %v4945, 0.0
        %v4970 = vsel %vm721, %v4946, 0.0
        %v4971 = vsel %vm722, %v4947, 0.0
        %v4972 = vsel %vm723, %v4948, 0.0
        %v4973 = vsel %vm724, %v4949, 0.0
        %v4974 = vsel %vm725, %v4950, 0.0
        %v4975 = vsel %vm726, %v4951, 0.0
        %v4976 = vsel %vm727, %v4952, 0.0
        %v4977 = vsel %vm728, %v4953, 0.0
        %v4978 = vsel %vm729, %v4954, 0.0
        %v4979 = vsel %vm730, %v4955, 0.0
        %v4980 = vsel %vm731, %v4956, 0.0
        %v4981 = vsel %vm732, %v4957, 0.0
        %v4982 = vsel %vm733, %v4958, 0.0
        %v4983 = vsel %vm734, %v4959, 0.0
        %v4984 = vsel %vm735, %v4960, 0.0
        %v4985 = vsel %vm736, %v4961, 0.0
        %v4986 = vpack.c.bf16 %v4963, %v4962
        %v4987 = vpack.c.bf16 %v4965, %v4964
        %v4988 = vpack.c.bf16 %v4967, %v4966
        %v4989 = vpack.c.bf16 %v4969, %v4968
        %v4990 = vpack.c.bf16 %v4971, %v4970
        %v4991 = vpack.c.bf16 %v4973, %v4972
        %v4992 = vpack.c.bf16 %v4975, %v4974
        %v4993 = vpack.c.bf16 %v4977, %v4976
        %v4994 = vpack.c.bf16 %v4979, %v4978
        %v4995 = vpack.c.bf16 %v4981, %v4980
        %v4996 = vpack.c.bf16 %v4983, %v4982
        %v4997 = vpack.c.bf16 %v4985, %v4984
        %v5010 = vunpack.c.l.b16 %v4986
        %v5011 = vunpack.c.h.b16 %v4986
        %v5012 = vunpack.c.l.b16 %v4987
        %v5013 = vunpack.c.h.b16 %v4987
        %v5014 = vunpack.c.l.b16 %v4988
        %v5015 = vunpack.c.h.b16 %v4988
        %v5016 = vunpack.c.l.b16 %v4989
        %v5017 = vunpack.c.h.b16 %v4989
        %v5018 = vunpack.c.l.b16 %v4990
        %v5019 = vunpack.c.h.b16 %v4990
        %v5020 = vunpack.c.l.b16 %v4991
        %v5021 = vunpack.c.h.b16 %v4991
        %v5022 = vunpack.c.l.b16 %v4992
        %v5023 = vunpack.c.h.b16 %v4992
        %v5024 = vunpack.c.l.b16 %v4993
        %v5025 = vunpack.c.h.b16 %v4993
        %v5026 = vunpack.c.l.b16 %v4994
        %v5027 = vunpack.c.h.b16 %v4994
        %v5028 = vunpack.c.l.b16 %v4995
        %v5029 = vunpack.c.h.b16 %v4995
        %v5030 = vunpack.c.l.b16 %v4996
        %v5031 = vunpack.c.h.b16 %v4996
        %v5032 = vunpack.c.l.b16 %v4997
        %v5033 = vunpack.c.h.b16 %v4997
        %v5034 = vpack.c.b16 %v5010, %v5010
        %v5035 = vpack.c.b16 %v5011, %v5011
        %v5036 = vpack.c.b16 %v5012, %v5012
        %v5037 = vpack.c.b16 %v5013, %v5013
        %v5038 = vpack.c.b16 %v5014, %v5014
        %v5039 = vpack.c.b16 %v5015, %v5015
        %v5040 = vpack.c.b16 %v5016, %v5016
        %v5041 = vpack.c.b16 %v5017, %v5017
        %v5042 = vpack.c.b16 %v5018, %v5018
        %v5043 = vpack.c.b16 %v5019, %v5019
        %v5044 = vpack.c.b16 %v5020, %v5020
        %v5045 = vpack.c.b16 %v5021, %v5021
        %v5046 = vpack.c.b16 %v5022, %v5022
        %v5047 = vpack.c.b16 %v5023, %v5023
        %v5048 = vpack.c.b16 %v5024, %v5024
        %v5049 = vpack.c.b16 %v5025, %v5025
        %v5050 = vpack.c.b16 %v5026, %v5026
        %v5051 = vpack.c.b16 %v5027, %v5027
        %v5052 = vpack.c.b16 %v5028, %v5028
        %v5053 = vpack.c.b16 %v5029, %v5029
        %v5054 = vpack.c.b16 %v5030, %v5030
        %v5055 = vpack.c.b16 %v5031, %v5031
        %v5056 = vpack.c.b16 %v5032, %v5032
        %v5057 = vpack.c.b16 %v5033, %v5033
        %v5059 = vshrl.u32 %v5034, 16
        %v5061 = vrot.slane %v5059, 7
        %v5062 = vshll.u32 %v5034, 16
        %v5064 = vor.u32 %v5061, %v5062
        %v5065 = vrot.slane %v5061, 4
        %v5067 = vshrl.u32 %v5035, 16
        %v5069 = vrot.slane %v5067, 7
        %v5070 = vshll.u32 %v5035, 16
        %v5072 = vor.u32 %v5069, %v5070
        %v5073 = vsel %vm1998, %v5065, %v5072
        %v5074 = vrot.slane %v5069, 4
        %v5076 = vshrl.u32 %v5036, 16
        %v5078 = vrot.slane %v5076, 7
        %v5079 = vshll.u32 %v5036, 16
        %v5081 = vor.u32 %v5078, %v5079
        %v5082 = vsel %vm1998, %v5074, %v5081
        %v5083 = vrot.slane %v5078, 4
        %v5085 = vshrl.u32 %v5037, 16
        %v5087 = vrot.slane %v5085, 7
        %v5088 = vshll.u32 %v5037, 16
        %v5090 = vor.u32 %v5087, %v5088
        %v5091 = vsel %vm1998, %v5083, %v5090
        %v5092 = vrot.slane %v5087, 4
        %v5094 = vshrl.u32 %v5038, 16
        %v5096 = vrot.slane %v5094, 7
        %v5097 = vshll.u32 %v5038, 16
        %v5099 = vor.u32 %v5096, %v5097
        %v5100 = vsel %vm1998, %v5092, %v5099
        %v5101 = vrot.slane %v5096, 4
        %v5103 = vshrl.u32 %v5039, 16
        %v5105 = vrot.slane %v5103, 7
        %v5106 = vshll.u32 %v5039, 16
        %v5108 = vor.u32 %v5105, %v5106
        %v5109 = vsel %vm1998, %v5101, %v5108
        %v5110 = vrot.slane %v5105, 4
        %v5112 = vshrl.u32 %v5040, 16
        %v5114 = vrot.slane %v5112, 7
        %v5115 = vshll.u32 %v5040, 16
        %v5117 = vor.u32 %v5114, %v5115
        %v5118 = vsel %vm1998, %v5110, %v5117
        %v5119 = vrot.slane %v5114, 4
        %v5121 = vshrl.u32 %v5041, 16
        %v5123 = vrot.slane %v5121, 7
        %v5124 = vshll.u32 %v5041, 16
        %v5126 = vor.u32 %v5123, %v5124
        %v5127 = vsel %vm1998, %v5119, %v5126
        %v5128 = vrot.slane %v5123, 4
        %v5130 = vshrl.u32 %v5042, 16
        %v5132 = vrot.slane %v5130, 7
        %v5133 = vshll.u32 %v5042, 16
        %v5135 = vor.u32 %v5132, %v5133
        %v5136 = vsel %vm1998, %v5128, %v5135
        %v5137 = vrot.slane %v5132, 4
        %v5139 = vshrl.u32 %v5043, 16
        %v5141 = vrot.slane %v5139, 7
        %v5142 = vshll.u32 %v5043, 16
        %v5144 = vor.u32 %v5141, %v5142
        %v5145 = vsel %vm1998, %v5137, %v5144
        %v5146 = vrot.slane %v5141, 4
        %v5148 = vshrl.u32 %v5044, 16
        %v5150 = vrot.slane %v5148, 7
        %v5151 = vshll.u32 %v5044, 16
        %v5153 = vor.u32 %v5150, %v5151
        %v5154 = vsel %vm1998, %v5146, %v5153
        %v5155 = vrot.slane %v5150, 4
        %v5157 = vshrl.u32 %v5045, 16
        %v5159 = vrot.slane %v5157, 7
        %v5160 = vshll.u32 %v5045, 16
        %v5162 = vor.u32 %v5159, %v5160
        %v5163 = vsel %vm1998, %v5155, %v5162
        %v5164 = vrot.slane %v5159, 4
        %v5166 = vshrl.u32 %v5046, 16
        %v5168 = vrot.slane %v5166, 7
        %v5169 = vshll.u32 %v5046, 16
        %v5171 = vor.u32 %v5168, %v5169
        %v5172 = vsel %vm1998, %v5164, %v5171
        %v5173 = vrot.slane %v5168, 4
        %v5175 = vshrl.u32 %v5047, 16
        %v5177 = vrot.slane %v5175, 7
        %v5178 = vshll.u32 %v5047, 16
        %v5180 = vor.u32 %v5177, %v5178
        %v5181 = vsel %vm1998, %v5173, %v5180
        %v5182 = vrot.slane %v5177, 4
        %v5184 = vshrl.u32 %v5048, 16
        %v5186 = vrot.slane %v5184, 7
        %v5187 = vshll.u32 %v5048, 16
        %v5189 = vor.u32 %v5186, %v5187
        %v5190 = vsel %vm1998, %v5182, %v5189
        %v5191 = vrot.slane %v5186, 4
        %v5193 = vshrl.u32 %v5049, 16
        %v5195 = vrot.slane %v5193, 7
        %v5196 = vshll.u32 %v5049, 16
        %v5198 = vor.u32 %v5195, %v5196
        %v5199 = vsel %vm1998, %v5191, %v5198
        %v5200 = vrot.slane %v5195, 4
        %v5202 = vshrl.u32 %v5050, 16
        %v5204 = vrot.slane %v5202, 7
        %v5205 = vshll.u32 %v5050, 16
        %v5207 = vor.u32 %v5204, %v5205
        %v5208 = vsel %vm1998, %v5200, %v5207
        %v5209 = vrot.slane %v5204, 4
        %v5211 = vshrl.u32 %v5051, 16
        %v5213 = vrot.slane %v5211, 7
        %v5214 = vshll.u32 %v5051, 16
        %v5216 = vor.u32 %v5213, %v5214
        %v5217 = vsel %vm1998, %v5209, %v5216
        %v5218 = vrot.slane %v5213, 4
        %v5220 = vshrl.u32 %v5052, 16
        %v5222 = vrot.slane %v5220, 7
        %v5223 = vshll.u32 %v5052, 16
        %v5225 = vor.u32 %v5222, %v5223
        %v5226 = vsel %vm1998, %v5218, %v5225
        %v5227 = vrot.slane %v5222, 4
        %v5229 = vshrl.u32 %v5053, 16
        %v5231 = vrot.slane %v5229, 7
        %v5232 = vshll.u32 %v5053, 16
        %v5234 = vor.u32 %v5231, %v5232
        %v5235 = vsel %vm1998, %v5227, %v5234
        %v5236 = vrot.slane %v5231, 4
        %v5238 = vshrl.u32 %v5054, 16
        %v5240 = vrot.slane %v5238, 7
        %v5241 = vshll.u32 %v5054, 16
        %v5243 = vor.u32 %v5240, %v5241
        %v5244 = vsel %vm1998, %v5236, %v5243
        %v5245 = vrot.slane %v5240, 4
        %v5247 = vshrl.u32 %v5055, 16
        %v5249 = vrot.slane %v5247, 7
        %v5250 = vshll.u32 %v5055, 16
        %v5252 = vor.u32 %v5249, %v5250
        %v5253 = vsel %vm1998, %v5245, %v5252
        %v5254 = vrot.slane %v5249, 4
        %v5256 = vshrl.u32 %v5056, 16
        %v5258 = vrot.slane %v5256, 7
        %v5259 = vshll.u32 %v5056, 16
        %v5261 = vor.u32 %v5258, %v5259
        %v5262 = vsel %vm1998, %v5254, %v5261
        %v5263 = vrot.slane %v5258, 4
        %v5265 = vshrl.u32 %v5057, 16
        %v5267 = vrot.slane %v5265, 7
        %v5268 = vshll.u32 %v5057, 16
        %v5270 = vor.u32 %v5267, %v5268
        %v5271 = vsel %vm1998, %v5263, %v5270
        %v5272 = vrot.slane %v5267, 4
        %v5298 = vld [vmem:[#allocation2 + $0x8] sm:$0xf]
        %v5299 = vsel %vm748, %v5064, %v5298
        %5300 = vst [vmem:[#allocation2 + $0x8] sm:$0xf] %v5299
        %5301 = vst.msk [vmem:[#allocation2 + $0xc] sm:$0xf] %vm737, %v5073
        %5302 = vst.msk [vmem:[#allocation2 + $0x10] sm:$0xf] %vm737, %v5082
        %5303 = vst.msk [vmem:[#allocation2 + $0x14] sm:$0xf] %vm737, %v5091
        %5304 = vst.msk [vmem:[#allocation2 + $0x18] sm:$0xf] %vm737, %v5100
        %5305 = vst.msk [vmem:[#allocation2 + $0x1c] sm:$0xf] %vm737, %v5109
        %5306 = vst.msk [vmem:[#allocation2 + $0x20] sm:$0xf] %vm737, %v5118
        %5307 = vst.msk [vmem:[#allocation2 + $0x24] sm:$0xf] %vm737, %v5127
        %5308 = vst.msk [vmem:[#allocation2 + $0x28] sm:$0xf] %vm737, %v5136
        %5309 = vst.msk [vmem:[#allocation2 + $0x2c] sm:$0xf] %vm737, %v5145
        %5310 = vst.msk [vmem:[#allocation2 + $0x30] sm:$0xf] %vm737, %v5154
        %5311 = vst.msk [vmem:[#allocation2 + $0x34] sm:$0xf] %vm737, %v5163
        %5312 = vst.msk [vmem:[#allocation2 + $0x38] sm:$0xf] %vm737, %v5172
        %5313 = vst.msk [vmem:[#allocation2 + $0x3c] sm:$0xf] %vm737, %v5181
        %5314 = vst.msk [vmem:[#allocation2 + $0x40] sm:$0xf] %vm737, %v5190
        %5315 = vst.msk [vmem:[#allocation2 + $0x44] sm:$0xf] %vm737, %v5199
        %5316 = vst.msk [vmem:[#allocation2 + $0x48] sm:$0xf] %vm737, %v5208
        %5317 = vst.msk [vmem:[#allocation2 + $0x4c] sm:$0xf] %vm737, %v5217
        %5318 = vst.msk [vmem:[#allocation2 + $0x50] sm:$0xf] %vm737, %v5226
        %5319 = vst.msk [vmem:[#allocation2 + $0x54] sm:$0xf] %vm737, %v5235
        %5320 = vst.msk [vmem:[#allocation2 + $0x58] sm:$0xf] %vm737, %v5244
        %5321 = vst.msk [vmem:[#allocation2 + $0x5c] sm:$0xf] %vm737, %v5253
        %5322 = vst.msk [vmem:[#allocation2 + $0x60] sm:$0xf] %vm737, %v5262
        %5323 = vst.msk [vmem:[#allocation2 + $0x64] sm:$0xf] %vm737, %v5271
        %v5324 = vld [vmem:[#allocation2 + $0x68] sm:$0x1]
        %v5325 = vsel %vm742, %v5272, %v5324
        %5326 = vst [vmem:[#allocation2 + $0x68] sm:$0x1] %v5325
        %v5327 = vld [vmem:[#allocation2] sm:$0xf]
        %v5328 = vld [vmem:[#allocation2 + $0x4] sm:$0xf]
        %v5329 = vld [vmem:[#allocation2 + $0x8] sm:$0xf]
        %v5330 = vld [vmem:[#allocation2 + $0xc] sm:$0xf]
        %v5331 = vld [vmem:[#allocation2 + $0x10] sm:$0xf]
        %v5332 = vld [vmem:[#allocation2 + $0x14] sm:$0xf]
        %v5333 = vld [vmem:[#allocation2 + $0x18] sm:$0xf]
        %v5334 = vld [vmem:[#allocation2 + $0x1c] sm:$0xf]
        %v5335 = vld [vmem:[#allocation2 + $0x20] sm:$0xf]
        %v5336 = vld [vmem:[#allocation2 + $0x24] sm:$0xf]
        %v5337 = vld [vmem:[#allocation2 + $0x28] sm:$0xf]
        %v5338 = vld [vmem:[#allocation2 + $0x2c] sm:$0xf]
        %v5339 = vld [vmem:[#allocation2 + $0x30] sm:$0xf]
        %v5340 = vld [vmem:[#allocation2 + $0x34] sm:$0xf]
        %v5341 = vld [vmem:[#allocation2 + $0x38] sm:$0xf]
        %v5342 = vld [vmem:[#allocation2 + $0x3c] sm:$0xf]
        %v5343 = vld [vmem:[#allocation2 + $0x40] sm:$0xf]
        %v5344 = vld [vmem:[#allocation2 + $0x44] sm:$0xf]
        %v5345 = vld [vmem:[#allocation2 + $0x48] sm:$0xf]
        %v5346 = vld [vmem:[#allocation2 + $0x4c] sm:$0xf]
        %v5347 = vld [vmem:[#allocation2 + $0x50] sm:$0xf]
        %v5348 = vld [vmem:[#allocation2 + $0x54] sm:$0xf]
        %v5349 = vld [vmem:[#allocation2 + $0x58] sm:$0xf]
        %v5350 = vld [vmem:[#allocation2 + $0x5c] sm:$0xf]
        %v5351 = vld [vmem:[#allocation2 + $0x60] sm:$0x1]
        %v5352 = vld [vmem:[#allocation2] sm:$0xe]
        %v5353 = vld [vmem:[#allocation2 + $0x60] sm:$0xf]
        %v5354 = vld [vmem:[#allocation2 + $0x64] sm:$0xf]
        %v5355 = vld [vmem:[#allocation2 + $0x68] sm:$0x1]
        %v5356 = vld [vmem:[#allocation2 + $0x8] sm:$0xe]
        %v5357 = vld [vmem:[#allocation2 + $0x68] sm:$0xf]
        %v5358 = vld [vmem:[#allocation2 + $0x6c] sm:$0xf]
        %v5359 = vld [vmem:[#allocation2 + $0x70] sm:$0x1]
        %v5360 = vld [vmem:[#allocation2 + $0x10] sm:$0xe]
        %v5385 = vunpack.c.l.b16 %v5327
        %v5386 = vunpack.c.l.b16 %v5328
        %v5387 = vunpack.c.l.b16 %v5329
        %v5388 = vunpack.c.l.b16 %v5330
        %v5389 = vunpack.c.l.b16 %v5331
        %v5390 = vunpack.c.l.b16 %v5332
        %v5391 = vunpack.c.l.b16 %v5333
        %v5392 = vunpack.c.l.b16 %v5334
        %v5393 = vunpack.c.l.b16 %v5335
        %v5394 = vunpack.c.l.b16 %v5336
        %v5395 = vunpack.c.l.b16 %v5337
        %v5396 = vunpack.c.l.b16 %v5338
        %v5397 = vunpack.c.l.b16 %v5339
        %v5398 = vunpack.c.l.b16 %v5340
        %v5399 = vunpack.c.l.b16 %v5341
        %v5400 = vunpack.c.l.b16 %v5342
        %v5401 = vunpack.c.l.b16 %v5343
        %v5402 = vunpack.c.l.b16 %v5344
        %v5403 = vunpack.c.l.b16 %v5345
        %v5404 = vunpack.c.l.b16 %v5346
        %v5405 = vunpack.c.l.b16 %v5347
        %v5406 = vunpack.c.l.b16 %v5348
        %v5407 = vunpack.c.l.b16 %v5349
        %v5408 = vunpack.c.l.b16 %v5350
        %v5409 = vpack.c.b16 %v5386, %v5385
        %v5410 = vpack.c.b16 %v5388, %v5387
        %v5411 = vpack.c.b16 %v5390, %v5389
        %v5412 = vpack.c.b16 %v5392, %v5391
        %v5413 = vpack.c.b16 %v5394, %v5393
        %v5414 = vpack.c.b16 %v5396, %v5395
        %v5415 = vpack.c.b16 %v5398, %v5397
        %v5416 = vpack.c.b16 %v5400, %v5399
        %v5417 = vpack.c.b16 %v5402, %v5401
        %v5418 = vpack.c.b16 %v5404, %v5403
        %v5419 = vpack.c.b16 %v5406, %v5405
        %v5420 = vpack.c.b16 %v5408, %v5407
        %v5422 = vunpack.c.l.b16 %v5351
        %v5423 = vpack.c.b16 %v5422, %v5422
        %v5425 = vshrl.u32 %v5409, 16
        %v5427 = vshll.u32 %v5409, 16
        %v5429 = vrot.slane %v5427, 1
        %v5430 = vor.u32 %v5425, %v5429
        %v5432 = vshll.u32 %v5410, 16
        %v5434 = vrot.slane %v5432, 1
        %v5435 = vsel %vm862, %v5430, %v5434
        %v5436 = vshrl.u32 %v5410, 16
        %v5438 = vor.u32 %v5436, %v5434
        %v5440 = vshll.u32 %v5411, 16
        %v5442 = vrot.slane %v5440, 1
        %v5443 = vsel %vm862, %v5438, %v5442
        %v5444 = vshrl.u32 %v5411, 16
        %v5446 = vor.u32 %v5444, %v5442
        %v5448 = vshll.u32 %v5412, 16
        %v5450 = vrot.slane %v5448, 1
        %v5451 = vsel %vm862, %v5446, %v5450
        %v5452 = vshrl.u32 %v5412, 16
        %v5454 = vor.u32 %v5452, %v5450
        %v5456 = vshll.u32 %v5413, 16
        %v5458 = vrot.slane %v5456, 1
        %v5459 = vsel %vm862, %v5454, %v5458
        %v5460 = vshrl.u32 %v5413, 16
        %v5462 = vor.u32 %v5460, %v5458
        %v5464 = vshll.u32 %v5414, 16
        %v5466 = vrot.slane %v5464, 1
        %v5467 = vsel %vm862, %v5462, %v5466
        %v5468 = vshrl.u32 %v5414, 16
        %v5470 = vor.u32 %v5468, %v5466
        %v5472 = vshll.u32 %v5415, 16
        %v5474 = vrot.slane %v5472, 1
        %v5475 = vsel %vm862, %v5470, %v5474
        %v5476 = vshrl.u32 %v5415, 16
        %v5478 = vor.u32 %v5476, %v5474
        %v5480 = vshll.u32 %v5416, 16
        %v5482 = vrot.slane %v5480, 1
        %v5483 = vsel %vm862, %v5478, %v5482
        %v5484 = vshrl.u32 %v5416, 16
        %v5486 = vor.u32 %v5484, %v5482
        %v5488 = vshll.u32 %v5417, 16
        %v5490 = vrot.slane %v5488, 1
        %v5491 = vsel %vm862, %v5486, %v5490
        %v5492 = vshrl.u32 %v5417, 16
        %v5494 = vor.u32 %v5492, %v5490
        %v5496 = vshll.u32 %v5418, 16
        %v5498 = vrot.slane %v5496, 1
        %v5499 = vsel %vm862, %v5494, %v5498
        %v5500 = vshrl.u32 %v5418, 16
        %v5502 = vor.u32 %v5500, %v5498
        %v5504 = vshll.u32 %v5419, 16
        %v5506 = vrot.slane %v5504, 1
        %v5507 = vsel %vm862, %v5502, %v5506
        %v5508 = vshrl.u32 %v5419, 16
        %v5510 = vor.u32 %v5508, %v5506
        %v5512 = vshll.u32 %v5420, 16
        %v5514 = vrot.slane %v5512, 1
        %v5515 = vsel %vm862, %v5510, %v5514
        %v5516 = vshrl.u32 %v5420, 16
        %v5518 = vor.u32 %v5516, %v5514
        %v5520 = vshll.u32 %v5423, 16
        %v5522 = vrot.slane %v5520, 1
        %v5523 = vsel %vm862, %v5518, %v5522
        %5524 = vrot.lane.b32.xlu0 %v5435, 16
        %v5525 = vpop.permute.xlu0 %5524
        %5526 = vrot.lane.b32.xlu0 %v5443, 16
        %v5527 = vpop.permute.xlu0 %5526
        %5528 = vrot.lane.b32.xlu0 %v5451, 16
        %v5529 = vpop.permute.xlu0 %5528
        %5530 = vrot.lane.b32.xlu0 %v5459, 16
        %v5531 = vpop.permute.xlu0 %5530
        %5532 = vrot.lane.b32.xlu0 %v5467, 16
        %v5533 = vpop.permute.xlu0 %5532
        %5534 = vrot.lane.b32.xlu0 %v5475, 16
        %v5535 = vpop.permute.xlu0 %5534
        %5536 = vrot.lane.b32.xlu0 %v5483, 16
        %v5537 = vpop.permute.xlu0 %5536
        %5538 = vrot.lane.b32.xlu0 %v5491, 16
        %v5539 = vpop.permute.xlu0 %5538
        %5540 = vrot.lane.b32.xlu0 %v5499, 16
        %v5541 = vpop.permute.xlu0 %5540
        %5542 = vrot.lane.b32.xlu0 %v5507, 16
        %v5543 = vpop.permute.xlu0 %5542
        %5544 = vrot.lane.b32.xlu0 %v5515, 16
        %v5545 = vpop.permute.xlu0 %5544
        %5546 = vrot.lane.b32.xlu0 %v5523, 16
        %v5547 = vpop.permute.xlu0 %5546
        %v5549 = vunpack.c.l.b16 %v5352
        %v5550 = vpack.c.b16 %v5386, %v5549
        %v5551 = vrot.slane %v5550, 1
        %v5552 = vrot.slane %v5410, 1
        %v5553 = vsel %vm990, %v5551, %v5552
        %v5554 = vrot.slane %v5411, 1
        %v5555 = vsel %vm990, %v5552, %v5554
        %v5556 = vrot.slane %v5412, 1
        %v5557 = vsel %vm990, %v5554, %v5556
        %v5558 = vrot.slane %v5413, 1
        %v5559 = vsel %vm990, %v5556, %v5558
        %v5560 = vrot.slane %v5414, 1
        %v5561 = vsel %vm990, %v5558, %v5560
        %v5562 = vrot.slane %v5415, 1
        %v5563 = vsel %vm990, %v5560, %v5562
        %v5564 = vrot.slane %v5416, 1
        %v5565 = vsel %vm990, %v5562, %v5564
        %v5566 = vrot.slane %v5417, 1
        %v5567 = vsel %vm990, %v5564, %v5566
        %v5568 = vrot.slane %v5418, 1
        %v5569 = vsel %vm990, %v5566, %v5568
        %v5570 = vrot.slane %v5419, 1
        %v5571 = vsel %vm990, %v5568, %v5570
        %v5572 = vrot.slane %v5420, 1
        %v5573 = vsel %vm990, %v5570, %v5572
        %v5574 = vrot.slane %v5423, 1
        %v5575 = vsel %vm990, %v5572, %v5574
        %5576 = vrot.lane.b32.xlu0 %v5553, 32
        %v5577 = vpop.permute.xlu0 %5576
        %5578 = vrot.lane.b32.xlu0 %v5555, 32
        %v5579 = vpop.permute.xlu0 %5578
        %5580 = vrot.lane.b32.xlu0 %v5557, 32
        %v5581 = vpop.permute.xlu0 %5580
        %5582 = vrot.lane.b32.xlu0 %v5559, 32
        %v5583 = vpop.permute.xlu0 %5582
        %5584 = vrot.lane.b32.xlu0 %v5561, 32
        %v5585 = vpop.permute.xlu0 %5584
        %5586 = vrot.lane.b32.xlu0 %v5563, 32
        %v5587 = vpop.permute.xlu0 %5586
        %5588 = vrot.lane.b32.xlu0 %v5565, 32
        %v5589 = vpop.permute.xlu0 %5588
        %5590 = vrot.lane.b32.xlu0 %v5567, 32
        %v5591 = vpop.permute.xlu0 %5590
        %5592 = vrot.lane.b32.xlu0 %v5569, 32
        %v5593 = vpop.permute.xlu0 %5592
        %5594 = vrot.lane.b32.xlu0 %v5571, 32
        %v5595 = vpop.permute.xlu0 %5594
        %5596 = vrot.lane.b32.xlu0 %v5573, 32
        %v5597 = vpop.permute.xlu0 %5596
        %5598 = vrot.lane.b32.xlu0 %v5575, 32
        %v5599 = vpop.permute.xlu0 %5598
        %v5602 = vunpack.c.l.b16 %v5353
        %v5603 = vunpack.c.l.b16 %v5354
        %v5604 = vpack.c.b16 %v5603, %v5602
        %5605 = vrot.lane.b32.xlu0 %v5410, 48
        %v5606 = vpop.permute.xlu0 %5605
        %5607 = vrot.lane.b32.xlu0 %v5411, 48
        %v5608 = vpop.permute.xlu0 %5607
        %5609 = vrot.lane.b32.xlu0 %v5412, 48
        %v5610 = vpop.permute.xlu0 %5609
        %5611 = vrot.lane.b32.xlu0 %v5413, 48
        %v5612 = vpop.permute.xlu0 %5611
        %5613 = vrot.lane.b32.xlu0 %v5414, 48
        %v5614 = vpop.permute.xlu0 %5613
        %5615 = vrot.lane.b32.xlu0 %v5415, 48
        %v5616 = vpop.permute.xlu0 %5615
        %5617 = vrot.lane.b32.xlu0 %v5416, 48
        %v5618 = vpop.permute.xlu0 %5617
        %5619 = vrot.lane.b32.xlu0 %v5417, 48
        %v5620 = vpop.permute.xlu0 %5619
        %5621 = vrot.lane.b32.xlu0 %v5418, 48
        %v5622 = vpop.permute.xlu0 %5621
        %5623 = vrot.lane.b32.xlu0 %v5419, 48
        %v5624 = vpop.permute.xlu0 %5623
        %5625 = vrot.lane.b32.xlu0 %v5420, 48
        %v5626 = vpop.permute.xlu0 %5625
        %5627 = vrot.lane.b32.xlu0 %v5604, 48
        %v5628 = vpop.permute.xlu0 %5627
        %v5630 = vunpack.c.l.b16 %v5355
        %v5631 = vpack.c.b16 %v5630, %v5630
        %v5633 = vshll.u32 %v5604, 16
        %v5635 = vrot.slane %v5633, 1
        %v5636 = vsel %vm862, %v5518, %v5635
        %v5637 = vshrl.u32 %v5604, 16
        %v5639 = vor.u32 %v5637, %v5635
        %v5641 = vshll.u32 %v5631, 16
        %v5643 = vrot.slane %v5641, 1
        %v5644 = vsel %vm862, %v5639, %v5643
        %5645 = vrot.lane.b32.xlu0 %v5443, 64
        %v5646 = vpop.permute.xlu0 %5645
        %5647 = vrot.lane.b32.xlu0 %v5451, 64
        %v5648 = vpop.permute.xlu0 %5647
        %5649 = vrot.lane.b32.xlu0 %v5459, 64
        %v5650 = vpop.permute.xlu0 %5649
        %5651 = vrot.lane.b32.xlu0 %v5467, 64
        %v5652 = vpop.permute.xlu0 %5651
        %5653 = vrot.lane.b32.xlu0 %v5475, 64
        %v5654 = vpop.permute.xlu0 %5653
        %5655 = vrot.lane.b32.xlu0 %v5483, 64
        %v5656 = vpop.permute.xlu0 %5655
        %5657 = vrot.lane.b32.xlu0 %v5491, 64
        %v5658 = vpop.permute.xlu0 %5657
        %5659 = vrot.lane.b32.xlu0 %v5499, 64
        %v5660 = vpop.permute.xlu0 %5659
        %5661 = vrot.lane.b32.xlu0 %v5507, 64
        %v5662 = vpop.permute.xlu0 %5661
        %5663 = vrot.lane.b32.xlu0 %v5515, 64
        %v5664 = vpop.permute.xlu0 %5663
        %5665 = vrot.lane.b32.xlu0 %v5636, 64
        %v5666 = vpop.permute.xlu0 %5665
        %5667 = vrot.lane.b32.xlu0 %v5644, 64
        %v5668 = vpop.permute.xlu0 %5667
        %v5670 = vunpack.c.l.b16 %v5356
        %v5671 = vpack.c.b16 %v5388, %v5670
        %v5672 = vrot.slane %v5671, 1
        %v5673 = vsel %vm990, %v5672, %v5554
        %v5674 = vrot.slane %v5604, 1
        %v5675 = vsel %vm990, %v5572, %v5674
        %v5676 = vrot.slane %v5631, 1
        %v5677 = vsel %vm990, %v5674, %v5676
        %5678 = vrot.lane.b32.xlu0 %v5673, 80
        %v5679 = vpop.permute.xlu0 %5678
        %5680 = vrot.lane.b32.xlu0 %v5557, 80
        %v5681 = vpop.permute.xlu0 %5680
        %5682 = vrot.lane.b32.xlu0 %v5559, 80
        %v5683 = vpop.permute.xlu0 %5682
        %5684 = vrot.lane.b32.xlu0 %v5561, 80
        %v5685 = vpop.permute.xlu0 %5684
        %5686 = vrot.lane.b32.xlu0 %v5563, 80
        %v5687 = vpop.permute.xlu0 %5686
        %5688 = vrot.lane.b32.xlu0 %v5565, 80
        %v5689 = vpop.permute.xlu0 %5688
        %5690 = vrot.lane.b32.xlu0 %v5567, 80
        %v5691 = vpop.permute.xlu0 %5690
        %5692 = vrot.lane.b32.xlu0 %v5569, 80
        %v5693 = vpop.permute.xlu0 %5692
        %5694 = vrot.lane.b32.xlu0 %v5571, 80
        %v5695 = vpop.permute.xlu0 %5694
        %5696 = vrot.lane.b32.xlu0 %v5573, 80
        %v5697 = vpop.permute.xlu0 %5696
        %5698 = vrot.lane.b32.xlu0 %v5675, 80
        %v5699 = vpop.permute.xlu0 %5698
        %5700 = vrot.lane.b32.xlu0 %v5677, 80
        %v5701 = vpop.permute.xlu0 %5700
        %v5704 = vunpack.c.l.b16 %v5357
        %v5705 = vunpack.c.l.b16 %v5358
        %v5706 = vpack.c.b16 %v5705, %v5704
        %5707 = vrot.lane.b32.xlu0 %v5411, 96
        %v5708 = vpop.permute.xlu0 %5707
        %5709 = vrot.lane.b32.xlu0 %v5412, 96
        %v5710 = vpop.permute.xlu0 %5709
        %5711 = vrot.lane.b32.xlu0 %v5413, 96
        %v5712 = vpop.permute.xlu0 %5711
        %5713 = vrot.lane.b32.xlu0 %v5414, 96
        %v5714 = vpop.permute.xlu0 %5713
        %5715 = vrot.lane.b32.xlu0 %v5415, 96
        %v5716 = vpop.permute.xlu0 %5715
        %5717 = vrot.lane.b32.xlu0 %v5416, 96
        %v5718 = vpop.permute.xlu0 %5717
        %5719 = vrot.lane.b32.xlu0 %v5417, 96
        %v5720 = vpop.permute.xlu0 %5719
        %5721 = vrot.lane.b32.xlu0 %v5418, 96
        %v5722 = vpop.permute.xlu0 %5721
        %5723 = vrot.lane.b32.xlu0 %v5419, 96
        %v5724 = vpop.permute.xlu0 %5723
        %5725 = vrot.lane.b32.xlu0 %v5420, 96
        %v5726 = vpop.permute.xlu0 %5725
        %5727 = vrot.lane.b32.xlu0 %v5604, 96
        %v5728 = vpop.permute.xlu0 %5727
        %5729 = vrot.lane.b32.xlu0 %v5706, 96
        %v5730 = vpop.permute.xlu0 %5729
        %v5732 = vunpack.c.l.b16 %v5359
        %v5733 = vpack.c.b16 %v5732, %v5732
        %v5735 = vshll.u32 %v5706, 16
        %v5737 = vrot.slane %v5735, 1
        %v5738 = vsel %vm862, %v5639, %v5737
        %v5739 = vshrl.u32 %v5706, 16
        %v5741 = vor.u32 %v5739, %v5737
        %v5743 = vshll.u32 %v5733, 16
        %v5745 = vrot.slane %v5743, 1
        %v5746 = vsel %vm862, %v5741, %v5745
        %5747 = vrot.lane.b32.xlu0 %v5451, 112
        %v5748 = vpop.permute.xlu0 %5747
        %5749 = vrot.lane.b32.xlu0 %v5459, 112
        %v5750 = vpop.permute.xlu0 %5749
        %5751 = vrot.lane.b32.xlu0 %v5467, 112
        %v5752 = vpop.permute.xlu0 %5751
        %5753 = vrot.lane.b32.xlu0 %v5475, 112
        %v5754 = vpop.permute.xlu0 %5753
        %5755 = vrot.lane.b32.xlu0 %v5483, 112
        %v5756 = vpop.permute.xlu0 %5755
        %5757 = vrot.lane.b32.xlu0 %v5491, 112
        %v5758 = vpop.permute.xlu0 %5757
        %5759 = vrot.lane.b32.xlu0 %v5499, 112
        %v5760 = vpop.permute.xlu0 %5759
        %5761 = vrot.lane.b32.xlu0 %v5507, 112
        %v5762 = vpop.permute.xlu0 %5761
        %5763 = vrot.lane.b32.xlu0 %v5515, 112
        %v5764 = vpop.permute.xlu0 %5763
        %5765 = vrot.lane.b32.xlu0 %v5636, 112
        %v5766 = vpop.permute.xlu0 %5765
        %5767 = vrot.lane.b32.xlu0 %v5738, 112
        %v5768 = vpop.permute.xlu0 %5767
        %5769 = vrot.lane.b32.xlu0 %v5746, 112
        %v5770 = vpop.permute.xlu0 %5769
        %v5772 = vunpack.c.l.b16 %v5360
        %v5773 = vpack.c.b16 %v5390, %v5772
        %v5774 = vrot.slane %v5773, 1
        %v5775 = vsel %vm990, %v5774, %v5556
        %v5776 = vrot.slane %v5706, 1
        %v5777 = vsel %vm990, %v5674, %v5776
        %v5778 = vrot.slane %v5733, 1
        %v5779 = vsel %vm990, %v5776, %v5778
        %v5781 = vsel %vm2721, %v5409, %v5525
        %v5783 = vsel %vm2721, %v5410, %v5527
        %v5785 = vsel %vm2721, %v5411, %v5529
        %v5787 = vsel %vm2721, %v5412, %v5531
        %v5789 = vsel %vm2721, %v5413, %v5533
        %v5791 = vsel %vm2721, %v5414, %v5535
        %v5793 = vsel %vm2721, %v5415, %v5537
        %v5795 = vsel %vm2721, %v5416, %v5539
        %v5797 = vsel %vm2721, %v5417, %v5541
        %v5799 = vsel %vm2721, %v5418, %v5543
        %v5801 = vsel %vm2721, %v5419, %v5545
        %v5803 = vsel %vm2721, %v5420, %v5547
        %v5805 = vsel %vm1196, %v5781, %v5577
        %v5807 = vsel %vm1196, %v5783, %v5579
        %v5809 = vsel %vm1196, %v5785, %v5581
        %v5811 = vsel %vm1196, %v5787, %v5583
        %v5813 = vsel %vm1196, %v5789, %v5585
        %v5815 = vsel %vm1196, %v5791, %v5587
        %v5817 = vsel %vm1196, %v5793, %v5589
        %v5819 = vsel %vm1196, %v5795, %v5591
        %v5821 = vsel %vm1196, %v5797, %v5593
        %v5823 = vsel %vm1196, %v5799, %v5595
        %v5825 = vsel %vm1196, %v5801, %v5597
        %v5827 = vsel %vm1196, %v5803, %v5599
        %v5829 = vsel %vm2770, %v5805, %v5606
        %v5831 = vsel %vm2770, %v5807, %v5608
        %v5833 = vsel %vm2770, %v5809, %v5610
        %v5835 = vsel %vm2770, %v5811, %v5612
        %v5837 = vsel %vm2770, %v5813, %v5614
        %v5839 = vsel %vm2770, %v5815, %v5616
        %v5841 = vsel %vm2770, %v5817, %v5618
        %v5843 = vsel %vm2770, %v5819, %v5620
        %v5845 = vsel %vm2770, %v5821, %v5622
        %v5847 = vsel %vm2770, %v5823, %v5624
        %v5849 = vsel %vm2770, %v5825, %v5626
        %v5851 = vsel %vm2770, %v5827, %v5628
        %v5853 = vsel %vm1221, %v5829, %v5646
        %v5855 = vsel %vm1221, %v5831, %v5648
        %v5857 = vsel %vm1221, %v5833, %v5650
        %v5859 = vsel %vm1221, %v5835, %v5652
        %v5861 = vsel %vm1221, %v5837, %v5654
        %v5863 = vsel %vm1221, %v5839, %v5656
        %v5865 = vsel %vm1221, %v5841, %v5658
        %v5867 = vsel %vm1221, %v5843, %v5660
        %v5869 = vsel %vm1221, %v5845, %v5662
        %v5871 = vsel %vm1221, %v5847, %v5664
        %v5873 = vsel %vm1221, %v5849, %v5666
        %v5875 = vsel %vm1221, %v5851, %v5668
        %v5877 = vsel %vm2819, %v5853, %v5679
        %v5879 = vsel %vm2819, %v5855, %v5681
        %v5881 = vsel %vm2819, %v5857, %v5683
        %v5883 = vsel %vm2819, %v5859, %v5685
        %v5885 = vsel %vm2819, %v5861, %v5687
        %v5887 = vsel %vm2819, %v5863, %v5689
        %v5889 = vsel %vm2819, %v5865, %v5691
        %v5891 = vsel %vm2819, %v5867, %v5693
        %v5893 = vsel %vm2819, %v5869, %v5695
        %v5895 = vsel %vm2819, %v5871, %v5697
        %v5897 = vsel %vm2819, %v5873, %v5699
        %v5899 = vsel %vm2819, %v5875, %v5701
        %v5901 = vsel %vm1246, %v5877, %v5708
        %v5903 = vsel %vm1246, %v5879, %v5710
        %v5905 = vsel %vm1246, %v5881, %v5712
        %v5907 = vsel %vm1246, %v5883, %v5714
        %v5909 = vsel %vm1246, %v5885, %v5716
        %v5911 = vsel %vm1246, %v5887, %v5718
        %v5913 = vsel %vm1246, %v5889, %v5720
        %v5915 = vsel %vm1246, %v5891, %v5722
        %v5917 = vsel %vm1246, %v5893, %v5724
        %v5919 = vsel %vm1246, %v5895, %v5726
        %v5921 = vsel %vm1246, %v5897, %v5728
        %v5923 = vsel %vm1246, %v5899, %v5730
        %v5925 = vsel %vm2868, %v5901, %v5748
        %v5928 = vsel %vm2868, %v5903, %v5750
        %v5931 = vsel %vm2868, %v5905, %v5752
        %v5934 = vsel %vm2868, %v5907, %v5754
        %v5937 = vsel %vm2868, %v5909, %v5756
        %v5940 = vsel %vm2868, %v5911, %v5758
        %v5943 = vsel %vm2868, %v5913, %v5760
        %v5946 = vsel %vm2868, %v5915, %v5762
        %v5949 = vsel %vm2868, %v5917, %v5764
        %v5952 = vsel %vm2868, %v5919, %v5766
        %v5955 = vsel %vm2868, %v5921, %v5768
        %v5958 = vsel %vm2868, %v5923, %v5770
        %v5960 = vld [vmem:[%s5] sm:$0xf]
        %v5961 = vld [vmem:[%s5 + $0x4] sm:$0xf]
        %v5962 = vld [vmem:[%s5 + $0x8] sm:$0xf]
        %v5963 = vld [vmem:[%s5 + $0xc] sm:$0xf]
        %v5964 = vld [vmem:[%s5 + $0x10] sm:$0xf]
        %v5965 = vld [vmem:[%s5 + $0x14] sm:$0xf]
        %v5966 = vld [vmem:[%s5 + $0x18] sm:$0xf]
        %v5967 = vld [vmem:[%s5 + $0x1c] sm:$0xf]
        %v5968 = vld [vmem:[%s5 + $0x20] sm:$0xf]
        %v5969 = vld [vmem:[%s5 + $0x24] sm:$0xf]
        %v5970 = vld [vmem:[%s5 + $0x28] sm:$0xf]
        %v5971 = vld [vmem:[%s5 + $0x2c] sm:$0xf]
        %v5972 = vld [vmem:[%s5 + $0x30] sm:$0xf]
        %v5973 = vld [vmem:[%s5 + $0x34] sm:$0xf]
        %v5974 = vld [vmem:[%s5 + $0x38] sm:$0xf]
        %v5975 = vld [vmem:[%s5 + $0x3c] sm:$0xf]
        %v5976 = vld [vmem:[%s5 + $0x40] sm:$0xf]
        %v5977 = vld [vmem:[%s5 + $0x44] sm:$0xf]
        %v5996 = vunpack.c.l.b16 %v5960
        %v5997 = vunpack.c.l.b16 %v5961
        %v5998 = vunpack.c.l.b16 %v5962
        %v5999 = vunpack.c.l.b16 %v5963
        %v6000 = vunpack.c.l.b16 %v5964
        %v6001 = vunpack.c.l.b16 %v5965
        %v6002 = vunpack.c.l.b16 %v5966
        %v6003 = vunpack.c.l.b16 %v5967
        %v6004 = vunpack.c.l.b16 %v5968
        %v6005 = vunpack.c.l.b16 %v5969
        %v6006 = vunpack.c.l.b16 %v5970
        %v6007 = vunpack.c.l.b16 %v5971
        %v6008 = vunpack.c.l.b16 %v5972
        %v6009 = vunpack.c.l.b16 %v5973
        %v6010 = vunpack.c.l.b16 %v5974
        %v6011 = vunpack.c.l.b16 %v5975
        %v6012 = vunpack.c.l.b16 %v5976
        %v6013 = vunpack.c.l.b16 %v5977
        %v6014 = vpack.c.b16 %v5997, %v5996
        %v6015 = vpack.c.b16 %v5999, %v5998
        %v6016 = vpack.c.b16 %v6001, %v6000
        %v6017 = vpack.c.b16 %v6003, %v6002
        %v6018 = vpack.c.b16 %v6005, %v6004
        %v6019 = vpack.c.b16 %v6007, %v6006
        %v6020 = vpack.c.b16 %v6009, %v6008
        %v6021 = vpack.c.b16 %v6011, %v6010
        %v6022 = vpack.c.b16 %v6013, %v6012
        %v6033 = vsel %vm2721, %v5775, 0
        %v6036 = vsel %vm2721, %v5559, 0
        %v6039 = vsel %vm2721, %v5561, 0
        %v6042 = vsel %vm2721, %v5563, 0
        %v6045 = vsel %vm2721, %v5565, 0
        %v6048 = vsel %vm2721, %v5567, 0
        %v6051 = vsel %vm2721, %v5569, 0
        %v6054 = vsel %vm2721, %v5571, 0
        %v6057 = vsel %vm2721, %v5573, 0
        %v6060 = vsel %vm2721, %v5675, 0
        %v6063 = vsel %vm2721, %v5777, 0
        %v6066 = vsel %vm2721, %v5779, 0
        %6068 = vmatprep.subr.bf16.mxu0 0
        %6069 = vmatpush1.bf16.msra.mxu0 %v6014
        %6070 = vmatprep.subr.bf16.mxu0 0
        %6071 = vmatpush1.bf16.msra.mxu0 %v6015
        %6072 = vmatprep.subr.bf16.mxu0 0
        %6073 = vmatpush1.bf16.msra.mxu0 %v6016
        %6074 = vmatprep.subr.bf16.mxu0 0
        %6075 = vmatpush1.bf16.msra.mxu0 %v6017
        %6076 = vmatprep.subr.bf16.mxu0 0
        %6077 = vmatpush1.bf16.msra.mxu0 %v6018
        %6078 = vmatprep.subr.bf16.mxu0 0
        %6079 = vmatpush1.bf16.msra.mxu0 %v6019
        %6080 = vmatprep.subr.bf16.mxu0 0
        %6081 = vmatpush1.bf16.msra.mxu0 %v6020
        %6082 = vmatprep.subr.bf16.mxu0 0
        %6083 = vmatpush1.bf16.msra.mxu0 %v6021
        %6084 = vmatprep.subr.bf16.mxu0 0
        %6085 = vmatpush1.bf16.msra.mxu0 %v6022
        %6086 = vmatprep.subr.bf16.mxu0 0
        %6087 = vmatpush1.bf16.msra.mxu0 0
        %6088 = vmatprep.subr.bf16.mxu0 0
        %6089 = vmatpush1.bf16.msra.mxu0 0
        %6090 = vmatprep.subr.bf16.mxu0 0
        %6091 = vmatpush1.bf16.msra.mxu0 0
        %6092 = vmatprep.subr.bf16.mxu0 0
        %6093 = vmatpush1.bf16.msra.mxu0 0
        %6094 = vmatprep.subr.bf16.mxu0 0
        %6095 = vmatpush1.bf16.msra.mxu0 0
        %6096 = vmatprep.subr.bf16.mxu0 0
        %6097 = vmatpush1.bf16.msra.mxu0 0
        %6098 = vmatprep.subr.bf16.mxu0 0
        %6099 = vmatpush1.bf16.msra.mxu0 0
        %6100 = vmatprep.mubr.bf16.mxu0 %v6033
        %6101 = vmatmul.mubr.bf16.gmra.mrb[0].mxu0 %v5925
        %v6102 = vpop.f32.mrb[0].mxu0
        %v6103 = vadd.f32 0.0, %v6102
        %v6104 = vpop.f32.mrb[0].mxu0
        %v6105 = vpop.f32.mrb[0].mxu0
        %v6106 = vadd.f32 0.0, %v6105
        %v6107 = vpop.f32.mrb[0].mxu0
        %6108 = vmatprep.mubr.bf16.mxu0 %v6036
        %6109 = vmatmul.mubr.bf16.gmra.mrb[0].mxu0 %v5928
        %v6110 = vpop.f32.mrb[0].mxu0
        %v6111 = vadd.f32 0.0, %v6110
        %v6112 = vpop.f32.mrb[0].mxu0
        %v6113 = vpop.f32.mrb[0].mxu0
        %v6114 = vadd.f32 0.0, %v6113
        %v6115 = vpop.f32.mrb[0].mxu0
        %6116 = vmatprep.mubr.bf16.mxu0 %v6039
        %6117 = vmatmul.mubr.bf16.gmra.mrb[0].mxu0 %v5931
        %v6118 = vpop.f32.mrb[0].mxu0
        %v6119 = vadd.f32 0.0, %v6118
        %v6120 = vpop.f32.mrb[0].mxu0
        %v6121 = vpop.f32.mrb[0].mxu0
        %v6122 = vadd.f32 0.0, %v6121
        %v6123 = vpop.f32.mrb[0].mxu0
        %6124 = vmatprep.mubr.bf16.mxu0 %v6042
        %6125 = vmatmul.mubr.bf16.gmra.mrb[0].mxu0 %v5934
        %v6126 = vpop.f32.mrb[0].mxu0
        %v6127 = vadd.f32 0.0, %v6126
        %v6128 = vpop.f32.mrb[0].mxu0
        %v6129 = vpop.f32.mrb[0].mxu0
        %v6130 = vadd.f32 0.0, %v6129
        %v6131 = vpop.f32.mrb[0].mxu0
        %6132 = vmatprep.mubr.bf16.mxu0 %v6045
        %6133 = vmatmul.mubr.bf16.gmra.mrb[0].mxu0 %v5937
        %v6134 = vpop.f32.mrb[0].mxu0
        %v6135 = vadd.f32 0.0, %v6134
        %v6136 = vpop.f32.mrb[0].mxu0
        %v6137 = vpop.f32.mrb[0].mxu0
        %v6138 = vadd.f32 0.0, %v6137
        %v6139 = vpop.f32.mrb[0].mxu0
        %6140 = vmatprep.mubr.bf16.mxu0 %v6048
        %6141 = vmatmul.mubr.bf16.gmra.mrb[0].mxu0 %v5940
        %v6142 = vpop.f32.mrb[0].mxu0
        %v6143 = vadd.f32 0.0, %v6142
        %v6144 = vpop.f32.mrb[0].mxu0
        %v6145 = vpop.f32.mrb[0].mxu0
        %v6146 = vadd.f32 0.0, %v6145
        %v6147 = vpop.f32.mrb[0].mxu0
        %6148 = vmatprep.mubr.bf16.mxu0 %v6051
        %6149 = vmatmul.mubr.bf16.gmra.mrb[0].mxu0 %v5943
        %v6150 = vpop.f32.mrb[0].mxu0
        %v6151 = vadd.f32 0.0, %v6150
        %v6152 = vpop.f32.mrb[0].mxu0
        %v6153 = vpop.f32.mrb[0].mxu0
        %v6154 = vadd.f32 0.0, %v6153
        %v6155 = vpop.f32.mrb[0].mxu0
        %6156 = vmatprep.mubr.bf16.mxu0 %v6054
        %6157 = vmatmul.mubr.bf16.gmra.mrb[0].mxu0 %v5946
        %v6158 = vpop.f32.mrb[0].mxu0
        %v6159 = vadd.f32 0.0, %v6158
        %v6160 = vpop.f32.mrb[0].mxu0
        %v6161 = vpop.f32.mrb[0].mxu0
        %v6162 = vadd.f32 0.0, %v6161
        %v6163 = vpop.f32.mrb[0].mxu0
        %6164 = vmatprep.mubr.bf16.mxu0 %v6057
        %6165 = vmatmul.mubr.bf16.gmra.mrb[0].mxu0 %v5949
        %v6166 = vpop.f32.mrb[0].mxu0
        %v6167 = vadd.f32 0.0, %v6166
        %v6168 = vpop.f32.mrb[0].mxu0
        %v6169 = vpop.f32.mrb[0].mxu0
        %v6170 = vadd.f32 0.0, %v6169
        %v6171 = vpop.f32.mrb[0].mxu0
        %6172 = vmatprep.mubr.bf16.mxu0 %v6060
        %6173 = vmatmul.mubr.bf16.gmra.mrb[0].mxu0 %v5952
        %v6174 = vpop.f32.mrb[0].mxu0
        %v6175 = vadd.f32 0.0, %v6174
        %v6176 = vpop.f32.mrb[0].mxu0
        %v6177 = vpop.f32.mrb[0].mxu0
        %v6178 = vadd.f32 0.0, %v6177
        %v6179 = vpop.f32.mrb[0].mxu0
        %6180 = vmatprep.mubr.bf16.mxu0 %v6063
        %6181 = vmatmul.mubr.bf16.gmra.mrb[0].mxu0 %v5955
        %v6182 = vpop.f32.mrb[0].mxu0
        %v6183 = vadd.f32 0.0, %v6182
        %v6184 = vpop.f32.mrb[0].mxu0
        %v6185 = vpop.f32.mrb[0].mxu0
        %v6186 = vadd.f32 0.0, %v6185
        %v6187 = vpop.f32.mrb[0].mxu0
        %6188 = vmatprep.mubr.bf16.mxu0 %v6066
        %6189 = vmatmul.mubr.bf16.gmra.mrb[0].mxu0 %v5958
        %v6190 = vpop.f32.mrb[0].mxu0
        %v6191 = vadd.f32 0.0, %v6190
        %v6192 = vpop.f32.mrb[0].mxu0
        %v6193 = vpop.f32.mrb[0].mxu0
        %v6194 = vadd.f32 0.0, %v6193
        %v6195 = vpop.f32.mrb[0].mxu0
        %6196 = vdwg.mxu0
        %v6197 = vmul.f32 %v6103, %v1821
        %v6198 = vmul.f32 %v6106, %v1821
        %v6199 = vmul.f32 %v6111, %v1821
        %v6200 = vmul.f32 %v6114, %v1821
        %v6201 = vmul.f32 %v6119, %v1821
        %v6202 = vmul.f32 %v6122, %v1821
        %v6203 = vmul.f32 %v6127, %v1821
        %v6204 = vmul.f32 %v6130, %v1821
        %v6205 = vmul.f32 %v6135, %v1821
        %v6206 = vmul.f32 %v6138, %v1821
        %v6207 = vmul.f32 %v6143, %v1821
        %v6208 = vmul.f32 %v6146, %v1821
        %v6209 = vmul.f32 %v6151, %v1821
        %v6210 = vmul.f32 %v6154, %v1821
        %v6211 = vmul.f32 %v6159, %v1821
        %v6212 = vmul.f32 %v6162, %v1821
        %v6213 = vmul.f32 %v6167, %v1821
        %v6214 = vmul.f32 %v6170, %v1821
        %v6215 = vmul.f32 %v6175, %v1821
        %v6216 = vmul.f32 %v6178, %v1821
        %v6217 = vmul.f32 %v6183, %v1821
        %v6218 = vmul.f32 %v6186, %v1821
        %v6219 = vmul.f32 %v6191, %v1821
        %v6220 = vmul.f32 %v6194, %v1821
        %v6221 = vadd.f32 %v6197, %v1851
        %v6222 = vadd.f32 %v6198, %v1851
        %v6223 = vadd.f32 %v6199, %v1851
        %v6224 = vadd.f32 %v6200, %v1851
        %v6225 = vadd.f32 %v6201, %v1851
        %v6226 = vadd.f32 %v6202, %v1851
        %v6227 = vadd.f32 %v6203, %v1851
        %v6228 = vadd.f32 %v6204, %v1851
        %v6229 = vadd.f32 %v6205, %v1851
        %v6230 = vadd.f32 %v6206, %v1851
        %v6231 = vadd.f32 %v6207, %v1851
        %v6232 = vadd.f32 %v6208, %v1851
        %v6233 = vadd.f32 %v6209, %v1851
        %v6234 = vadd.f32 %v6210, %v1851
        %v6235 = vadd.f32 %v6211, %v1851
        %v6236 = vadd.f32 %v6212, %v1851
        %v6237 = vadd.f32 %v6213, %v1851
        %v6238 = vadd.f32 %v6214, %v1851
        %v6239 = vadd.f32 %v6215, %v1851
        %v6240 = vadd.f32 %v6216, %v1851
        %v6241 = vadd.f32 %v6217, %v1851
        %v6242 = vadd.f32 %v6218, %v1851
        %v6243 = vadd.f32 %v6219, %v1851
        %v6244 = vadd.f32 %v6220, %v1851
        %v6245 = vadd.f32 %v6221, %v3631
        %v6246 = vadd.f32 %v6222, %v3632
        %v6247 = vadd.f32 %v6223, %v3633
        %v6248 = vadd.f32 %v6224, %v3634
        %v6249 = vadd.f32 %v6225, %v3635
        %v6250 = vadd.f32 %v6226, %v3636
        %v6251 = vadd.f32 %v6227, %v3637
        %v6252 = vadd.f32 %v6228, %v3638
        %v6253 = vadd.f32 %v6229, %v3639
        %v6254 = vadd.f32 %v6230, %v3640
        %v6255 = vadd.f32 %v6231, %v3641
        %v6256 = vadd.f32 %v6232, %v3642
        %v6257 = vadd.f32 %v6233, %v3643
        %v6258 = vadd.f32 %v6234, %v3644
        %v6259 = vadd.f32 %v6235, %v3645
        %v6260 = vadd.f32 %v6236, %v3646
        %v6261 = vadd.f32 %v6237, %v3647
        %v6262 = vadd.f32 %v6238, %v3648
        %v6263 = vadd.f32 %v6239, %v3649
        %v6264 = vadd.f32 %v6240, %v3650
        %v6265 = vadd.f32 %v6241, %v3651
        %v6266 = vadd.f32 %v6242, %v3652
        %v6267 = vadd.f32 %v6243, %v3653
        %v6268 = vadd.f32 %v6244, %v3654
        %v6269 = vmax.f32 %v6245, 0.0
        %v6270 = vmax.f32 %v6246, 0.0
        %v6271 = vmax.f32 %v6247, 0.0
        %v6272 = vmax.f32 %v6248, 0.0
        %v6273 = vmax.f32 %v6249, 0.0
        %v6274 = vmax.f32 %v6250, 0.0
        %v6275 = vmax.f32 %v6251, 0.0
        %v6276 = vmax.f32 %v6252, 0.0
        %v6277 = vmax.f32 %v6253, 0.0
        %v6278 = vmax.f32 %v6254, 0.0
        %v6279 = vmax.f32 %v6255, 0.0
        %v6280 = vmax.f32 %v6256, 0.0
        %v6281 = vmax.f32 %v6257, 0.0
        %v6282 = vmax.f32 %v6258, 0.0
        %v6283 = vmax.f32 %v6259, 0.0
        %v6284 = vmax.f32 %v6260, 0.0
        %v6285 = vmax.f32 %v6261, 0.0
        %v6286 = vmax.f32 %v6262, 0.0
        %v6287 = vmax.f32 %v6263, 0.0
        %v6288 = vmax.f32 %v6264, 0.0
        %v6289 = vmax.f32 %v6265, 0.0
        %v6290 = vmax.f32 %v6266, 0.0
        %v6291 = vmax.f32 %v6267, 0.0
        %v6292 = vmax.f32 %v6268, 0.0
        %6293 = vst.msk [vmem:[%s396] sm:$0xff] %vm2721, %v6269
        %6294 = vst.msk [vmem:[%s396 + $0x8] sm:$0xff] %vm2721, %v6270
        %6295 = vst.msk [vmem:[%s396 + $0x10] sm:$0xff] %vm2721, %v6271
        %6296 = vst.msk [vmem:[%s396 + $0x18] sm:$0xff] %vm2721, %v6272
        %6297 = vst.msk [vmem:[%s396 + $0x20] sm:$0xff] %vm2721, %v6273
        %6298 = vst.msk [vmem:[%s396 + $0x28] sm:$0xff] %vm2721, %v6274
        %6299 = vst.msk [vmem:[%s396 + $0x30] sm:$0xff] %vm2721, %v6275
        %6300 = vst.msk [vmem:[%s396 + $0x38] sm:$0xff] %vm2721, %v6276
        %6301 = vst.msk [vmem:[%s396 + $0x40] sm:$0xff] %vm2721, %v6277
        %6302 = vst.msk [vmem:[%s396 + $0x48] sm:$0xff] %vm2721, %v6278
        %6303 = vst.msk [vmem:[%s396 + $0x50] sm:$0xff] %vm2721, %v6279
        %6304 = vst.msk [vmem:[%s396 + $0x58] sm:$0xff] %vm2721, %v6280
        %6305 = vst.msk [vmem:[%s396 + $0x60] sm:$0xff] %vm2721, %v6281
        %6306 = vst.msk [vmem:[%s396 + $0x68] sm:$0xff] %vm2721, %v6282
        %6307 = vst.msk [vmem:[%s396 + $0x70] sm:$0xff] %vm2721, %v6283
        %6308 = vst.msk [vmem:[%s396 + $0x78] sm:$0xff] %vm2721, %v6284
        %6309 = vst.msk [vmem:[%s396 + $0x80] sm:$0xff] %vm2721, %v6285
        %6310 = vst.msk [vmem:[%s396 + $0x88] sm:$0xff] %vm2721, %v6286
        %6311 = vst.msk [vmem:[%s396 + $0x90] sm:$0xff] %vm2721, %v6287
        %6312 = vst.msk [vmem:[%s396 + $0x98] sm:$0xff] %vm2721, %v6288
        %6313 = vst.msk [vmem:[%s396 + $0xa0] sm:$0xff] %vm2721, %v6289
        %6314 = vst.msk [vmem:[%s396 + $0xa8] sm:$0xff] %vm2721, %v6290
        %6315 = vst.msk [vmem:[%s396 + $0xb0] sm:$0xff] %vm2721, %v6291
        %6316 = vst.msk [vmem:[%s396 + $0xb8] sm:$0xff] %vm2721, %v6292
        %v6317 = vmax.f32 %v6269, %v6271
        %v6318 = vmax.f32 %v6317, %v6273
        %v6319 = vmax.f32 %v6318, %v6275
        %v6320 = vsel %vm737, %v6319, -inf
        %v6321 = vrot.slane %v6320, 4
        %v6322 = vmax.f32 %v6320, %v6321
        %v6323 = vrot.slane %v6322, 2
        %v6324 = vmax.f32 %v6322, %v6323
        %v6325 = vrot.slane %v6324, 1
        %v6326 = vmax.f32 %v6324, %v6325
        %vm6327 = vcmask 130052
        %v6328 = vsel %vm6327, %v6319, -inf
        %v6329 = vrot.slane %v6328, 4
        %v6330 = vmax.f32 %v6328, %v6329
        %v6331 = vrot.slane %v6330, 2
        %v6332 = vmax.f32 %v6330, %v6331
        %v6333 = vrot.slane %v6332, 1
        %v6334 = vmax.f32 %v6332, %v6333
        %v6335 = vmax.f32 %v6270, %v6272
        %v6336 = vmax.f32 %v6335, %v6274
        %v6337 = vmax.f32 %v6336, %v6276
        %v6338 = vsel %vm737, %v6337, -inf
        %v6339 = vrot.slane %v6338, 4
        %v6340 = vmax.f32 %v6338, %v6339
        %v6341 = vrot.slane %v6340, 2
        %v6342 = vmax.f32 %v6340, %v6341
        %v6343 = vrot.slane %v6342, 1
        %v6344 = vmax.f32 %v6342, %v6343
        %v6345 = vmax.f32 %v6277, %v6279
        %v6346 = vmax.f32 %v6345, %v6281
        %v6347 = vmax.f32 %v6346, %v6283
        %v6348 = vsel %vm737, %v6347, -inf
        %v6349 = vrot.slane %v6348, 4
        %v6350 = vmax.f32 %v6348, %v6349
        %v6351 = vrot.slane %v6350, 2
        %v6352 = vmax.f32 %v6350, %v6351
        %v6353 = vrot.slane %v6352, 1
        %v6354 = vmax.f32 %v6352, %v6353
        %v6355 = vsel %vm6327, %v6347, -inf
        %v6356 = vrot.slane %v6355, 4
        %v6357 = vmax.f32 %v6355, %v6356
        %v6358 = vrot.slane %v6357, 2
        %v6359 = vmax.f32 %v6357, %v6358
        %v6360 = vrot.slane %v6359, 1
        %v6361 = vmax.f32 %v6359, %v6360
        %v6362 = vmax.f32 %v6278, %v6280
        %v6363 = vmax.f32 %v6362, %v6282
        %v6364 = vmax.f32 %v6363, %v6284
        %v6365 = vsel %vm737, %v6364, -inf
        %v6366 = vrot.slane %v6365, 4
        %v6367 = vmax.f32 %v6365, %v6366
        %v6368 = vrot.slane %v6367, 2
        %v6369 = vmax.f32 %v6367, %v6368
        %v6370 = vrot.slane %v6369, 1
        %v6371 = vmax.f32 %v6369, %v6370
        %v6372 = vmax.f32 %v6285, %v6287
        %v6373 = vmax.f32 %v6372, %v6289
        %v6374 = vmax.f32 %v6373, %v6291
        %v6375 = vsel %vm737, %v6374, -inf
        %v6376 = vrot.slane %v6375, 4
        %v6377 = vmax.f32 %v6375, %v6376
        %v6378 = vrot.slane %v6377, 2
        %v6379 = vmax.f32 %v6377, %v6378
        %v6380 = vrot.slane %v6379, 1
        %v6381 = vmax.f32 %v6379, %v6380
        %v6382 = vsel %vm6327, %v6374, -inf
        %v6383 = vrot.slane %v6382, 4
        %v6384 = vmax.f32 %v6382, %v6383
        %v6385 = vrot.slane %v6384, 2
        %v6386 = vmax.f32 %v6384, %v6385
        %v6387 = vrot.slane %v6386, 1
        %v6388 = vmax.f32 %v6386, %v6387
        %v6389 = vmax.f32 %v6286, %v6288
        %v6390 = vmax.f32 %v6389, %v6290
        %v6391 = vmax.f32 %v6390, %v6292
        %v6392 = vsel %vm737, %v6391, -inf
        %v6393 = vrot.slane %v6392, 4
        %v6394 = vmax.f32 %v6392, %v6393
        %v6395 = vrot.slane %v6394, 2
        %v6396 = vmax.f32 %v6394, %v6395
        %v6397 = vrot.slane %v6396, 1
        %v6398 = vmax.f32 %v6396, %v6397
        %6400 = vrot.lane.b32.xlu0 %v6334, 16
        %v6401 = vpop.permute.xlu0 %6400
        %6404 = vrot.lane.b32.xlu0 %v6344, 32
        %v6405 = vpop.permute.xlu0 %6404
        %6408 = vrot.lane.b32.xlu0 %v6354, 48
        %v6409 = vpop.permute.xlu0 %6408
        %6412 = vrot.lane.b32.xlu0 %v6361, 64
        %v6413 = vpop.permute.xlu0 %6412
        %6416 = vrot.lane.b32.xlu0 %v6371, 80
        %v6417 = vpop.permute.xlu0 %6416
        %6420 = vrot.lane.b32.xlu0 %v6381, 96
        %v6421 = vpop.permute.xlu0 %6420
        %6424 = vrot.lane.b32.xlu0 %v6388, 112
        %v6425 = vpop.permute.xlu0 %6424
        %v6427 = vsel %vm2721, %v6326, %v6401
        %v6428 = vsel %vm1196, %v6427, %v6405
        %v6429 = vsel %vm2770, %v6428, %v6409
        %v6430 = vsel %vm1221, %v6429, %v6413
        %v6431 = vsel %vm2819, %v6430, %v6417
        %v6432 = vsel %vm1246, %v6431, %v6421
        %v6433 = vsel %vm2868, %v6432, %v6425
        %v6434 = vpack.c.bf16 %v6433, %v6433
        %v6435 = vpack.c.bf16 %v6398, %v6398
        %v6436 = vld [vmem:[%s8] sm:$0xf]
        %v6437 = vld [vmem:[%s8 + $0x4] sm:$0xf]
        %v6438 = vld [vmem:[%s8 + $0x8] sm:$0xf]
        %v6439 = vld [vmem:[%s8 + $0xc] sm:$0xf]
        %v6440 = vld [vmem:[%s8 + $0x10] sm:$0xf]
        %v6441 = vld [vmem:[%s8 + $0x14] sm:$0xf]
        %v6442 = vld [vmem:[%s8 + $0x18] sm:$0xf]
        %v6443 = vld [vmem:[%s8 + $0x1c] sm:$0xf]
        %v6444 = vld [vmem:[%s8 + $0x20] sm:$0xf]
        %v6445 = vld [vmem:[%s8 + $0x24] sm:$0xf]
        %v6446 = vld [vmem:[%s8 + $0x28] sm:$0xf]
        %v6447 = vld [vmem:[%s8 + $0x2c] sm:$0xf]
        %v6448 = vld [vmem:[%s8 + $0x30] sm:$0xf]
        %v6449 = vld [vmem:[%s8 + $0x34] sm:$0xf]
        %v6450 = vld [vmem:[%s8 + $0x38] sm:$0xf]
        %v6451 = vld [vmem:[%s8 + $0x3c] sm:$0xf]
        %v6452 = vld [vmem:[%s8 + $0x40] sm:$0xf]
        %v6453 = vld [vmem:[%s8 + $0x44] sm:$0xf]
        %v6454 = vld [vmem:[%s9] sm:$0x1]
        %v6473 = vunpack.c.l.b16 %v6436
        %v6474 = vunpack.c.l.b16 %v6437
        %v6475 = vunpack.c.l.b16 %v6438
        %v6476 = vunpack.c.l.b16 %v6439
        %v6477 = vunpack.c.l.b16 %v6440
        %v6478 = vunpack.c.l.b16 %v6441
        %v6479 = vunpack.c.l.b16 %v6442
        %v6480 = vunpack.c.l.b16 %v6443
        %v6481 = vunpack.c.l.b16 %v6444
        %v6482 = vunpack.c.l.b16 %v6445
        %v6483 = vunpack.c.l.b16 %v6446
        %v6484 = vunpack.c.l.b16 %v6447
        %v6485 = vunpack.c.l.b16 %v6448
        %v6486 = vunpack.c.l.b16 %v6449
        %v6487 = vunpack.c.l.b16 %v6450
        %v6488 = vunpack.c.l.b16 %v6451
        %v6489 = vunpack.c.l.b16 %v6452
        %v6490 = vunpack.c.l.b16 %v6453
        %v6491 = vpack.c.b16 %v6474, %v6473
        %v6492 = vpack.c.b16 %v6476, %v6475
        %v6493 = vpack.c.b16 %v6478, %v6477
        %v6494 = vpack.c.b16 %v6480, %v6479
        %v6495 = vpack.c.b16 %v6482, %v6481
        %v6496 = vpack.c.b16 %v6484, %v6483
        %v6497 = vpack.c.b16 %v6486, %v6485
        %v6498 = vpack.c.b16 %v6488, %v6487
        %v6499 = vpack.c.b16 %v6490, %v6489
        %v6510 = vsel %vm2721, %v6435, 0
        %6512 = vmatprep.subr.bf16.mxu0 0
        %6513 = vmatpush1.bf16.msra.mxu0 %v6491
        %6514 = vmatprep.subr.bf16.mxu0 0
        %6515 = vmatpush1.bf16.msra.mxu0 %v6492
        %6516 = vmatprep.subr.bf16.mxu0 0
        %6517 = vmatpush1.bf16.msra.mxu0 %v6493
        %6518 = vmatprep.subr.bf16.mxu0 0
        %6519 = vmatpush1.bf16.msra.mxu0 %v6494
        %6520 = vmatprep.subr.bf16.mxu0 0
        %6521 = vmatpush1.bf16.msra.mxu0 %v6495
        %6522 = vmatprep.subr.bf16.mxu0 0
        %6523 = vmatpush1.bf16.msra.mxu0 %v6496
        %6524 = vmatprep.subr.bf16.mxu0 0
        %6525 = vmatpush1.bf16.msra.mxu0 %v6497
        %6526 = vmatprep.subr.bf16.mxu0 0
        %6527 = vmatpush1.bf16.msra.mxu0 %v6498
        %6528 = vmatprep.subr.bf16.mxu0 0
        %6529 = vmatpush1.bf16.msra.mxu0 %v6499
        %6530 = vmatprep.subr.bf16.mxu0 0
        %6531 = vmatpush1.bf16.msra.mxu0 0
        %6532 = vmatprep.subr.bf16.mxu0 0
        %6533 = vmatpush1.bf16.msra.mxu0 0
        %6534 = vmatprep.subr.bf16.mxu0 0
        %6535 = vmatpush1.bf16.msra.mxu0 0
        %6536 = vmatprep.subr.bf16.mxu0 0
        %6537 = vmatpush1.bf16.msra.mxu0 0
        %6538 = vmatprep.subr.bf16.mxu0 0
        %6539 = vmatpush1.bf16.msra.mxu0 0
        %6540 = vmatprep.subr.bf16.mxu0 0
        %6541 = vmatpush1.bf16.msra.mxu0 0
        %6542 = vmatprep.subr.bf16.mxu0 0
        %6543 = vmatpush1.bf16.msra.mxu0 0
        %6544 = vmatprep.mubr.bf16.mxu0 %v6510
        %6545 = vmatmul.mubr.bf16.gmra.mrb[0].mxu0 %v6434
        %v6546 = vpop.f32.mrb[0].mxu0
        %v6547 = vadd.f32 %v6454, %v6546
        %v6548 = vpop.f32.mrb[0].mxu0
        %v6549 = vpop.f32.mrb[0].mxu0
        %v6550 = vpop.f32.mrb[0].mxu0
        %6551 = vdwg.mxu0
        %vm6552 = vcmask 16384
        %6553 = vst.msk [vmem:[%s386] sm:$0x1] %vm6552, %v6547
        %p6554 = scmp.lt.s32.totalorder %s26, 1
        %s6555 = scalar_select %p6554, %s26, 1
        %s6556 = smul.addr %s6555, 24
        %s6557 = smul.addr %s6556, 8
        %s6558 = scalar_lea.vmem %s10, %s6557
        %s6559 = sand.u32 %s275, 1
        %s6560 = scalar_lea.sflag [#allocation5], %s6559
        %s6561 = sand.u32 %s275, 1
        %s6562 = scalar_lea.vmem [#allocation4], %s6561
        // Predicated region
        $region61: #{texture_scene_forward.1} parent=59 // pred_check
          %p6563 = pneg %p259
        $region62: #{texture_scene_forward.1} parent=59 // pred_check_branch
          %6565 = sbr.rel (%p6563) target = $region64
        $region63: #{texture_scene_forward.1} parent=59 // pred_region
          _
        $region64: #{texture_scene_forward.1} parent=59 // pred_fallthru
          _
        // Predicated region
        $region65: #{texture_scene_forward.1} parent=59 // pred_check
          %p6566 = pneg %p285
        $region66: #{texture_scene_forward.1} parent=59 // pred_check_branch
          %6568 = sbr.rel (%p6566) target = $region68
        $region67: #{texture_scene_forward.1} parent=59 // pred_region
          %s6570 = ssub.s32 16, 16
          %6571 = vsyncadd %s6560, %s6570
          %s6572 = smul.addr %s26, 16
          %s6573 = scalar_lea.hbm %s11, %s6572
          %s6575 = sshll.u32 %s6562, 4
          %s6576 = int_to_ptr.vmem [resolvable:$true] %s6575
          %6578 = dma.vmem_to_hbm [thread:$0]  %s6576, 16, %s6573, %s6560
        $region68: #{texture_scene_forward.1} parent=59 // pred_fallthru
          _
      $region60: #{texture_scene_forward.1} parent=5 // pred_fallthru
        _
      %p6579 = scmp.le.s32.totalorder 2, %s21
      // Predicated region
      $region69: #{texture_scene_forward.1} parent=5 // pred_check
        %p6580 = pneg %p6579
      $region70: #{texture_scene_forward.1} parent=5 // pred_check_branch
        %6582 = sbr.rel (%p6580) target = $region72
      $region71: #{texture_scene_forward.1} parent=5 // pred_region
        %s6583 = ssub.s32 %s21, 2
        // Predicated region
        $region73: #{texture_scene_forward.1} parent=71 // pred_check
          %p6584 = pneg %p265
        $region74: #{texture_scene_forward.1} parent=71 // pred_check_branch
          %6586 = sbr.rel (%p6584) target = $region76
        $region75: #{texture_scene_forward.1} parent=71 // pred_region
          %p6587 = scmp.lt.s32.totalorder %s27, 1
          %s6588 = scalar_select %p6587, %s27, 1
          %s6589 = smul.addr %s6588, 24
          %s6590 = smul.addr %s6589, 8
          %s6591 = scalar_lea.vmem %s10, %s6590
        $region76: #{texture_scene_forward.1} parent=71 // pred_fallthru
          _
        // Predicated region
        $region77: #{texture_scene_forward.1} parent=71 // pred_check
          %p6592 = pneg %p291
        $region78: #{texture_scene_forward.1} parent=71 // pred_check_branch
          %6594 = sbr.rel (%p6592) target = $region80
        $region79: #{texture_scene_forward.1} parent=71 // pred_region
          %s6595 = sand.u32 %s276, 1
          %s6596 = scalar_lea.sflag [#allocation5], %s6595
          %s6597 = sand.u32 %s276, 1
          %s6598 = scalar_lea.vmem [#allocation4], %s6597
          %6599 = dma.done %s6596, 16
        $region80: #{texture_scene_forward.1} parent=71 // pred_fallthru
          _
      $region72: #{texture_scene_forward.1} parent=5 // pred_fallthru
        _
    $region6: #{texture_scene_forward.1} parent=1 // loop_footer
      %s25 = sadd.s32 1, %s21
    $region7: #{texture_scene_forward.1} parent=1 // loop_footer_branch
      %20 = sbr.rel target = $region3
    $region8: #{texture_scene_forward.1} parent=1 // loop_exit
      _
    %6600 = vsyncpa [#allocation5], 1
    %s6601 = scalar_lea.sflag [#allocation5], 1
    %6602 = vsyncpa %s6601, 1

</llo_original>
